<compile_context>
chip_gen: v5e
topology: v5e:2x2
jax: 0.10.0
libtpu: 0.0.40
codegen_flags: <defaults>
</compile_context>

<pallas_src>
import jax
import jax.numpy as jnp
from jax.experimental import pallas as pl
from jax.experimental.pallas import tpu as pltpu

# --- model hyper-parameters (img_shape = (1, channels, img_size, img_size)) ---
CHANNELS = 4
IMG_SIZE = 16
N_CLASSES = 17
D_IN = 1 * CHANNELS * IMG_SIZE * IMG_SIZE  # prod(img_shape) = 1024
H1, H2 = 512, 256
OUT_PAD = 128                              # lane-dense padded head width


def _leaky_relu(x, slope=0.2):
    return jnp.where(x > 0, x, slope * x)


def _round_up(n, m):
    return ((n + m - 1) // m) * m


# ---------------------------------------------------------------------------
# Kernel: one batch tile per grid step; weights resident across tiles.
# ---------------------------------------------------------------------------
def discriminator_kernel(x_ref, w1_ref, b1_ref, w2a_ref, b2a_ref,
                         w2x_ref, b2x_ref, w3a_ref, w3x_ref, b3_ref, out_ref):
    x = x_ref[...]                                              # (BLK, 1024) bf16

    # Layer 1: shared input, concatenated [W1_adv | W1_aux] -> (BLK, 1024)
    h = jnp.dot(x, w1_ref[...], preferred_element_type=jnp.float32) + b1_ref[...]
    h = _leaky_relu(h).astype(jnp.bfloat16)

    # Layer 2: two real dense (512,256) dots — no zero-padded block-diag MACs.
    # Static lane slices of h are free (512 is a multiple of 128 lanes).
    h2a = jnp.dot(h[:, :H1], w2a_ref[...],
                  preferred_element_type=jnp.float32) + b2a_ref[...]
    h2b = jnp.dot(h[:, H1:], w2x_ref[...],
                  preferred_element_type=jnp.float32) + b2x_ref[...]
    h2a = _leaky_relu(h2a).astype(jnp.bfloat16)
    h2b = _leaky_relu(h2b).astype(jnp.bfloat16)

    # Layer 3: two additive (BLK,256)@(256,128) dots into a lane-dense head:
    #   col 0 = adv logit, cols 1..17 = aux logits, cols 18..127 = zeros.
    logits = (jnp.dot(h2a, w3a_ref[...], preferred_element_type=jnp.float32)
              + jnp.dot(h2b, w3x_ref[...], preferred_element_type=jnp.float32)
              + b3_ref[...])

    lane = jax.lax.broadcasted_iota(jnp.int32, logits.shape, 1)
    aux_mask = (lane >= 1) & (lane < 1 + N_CLASSES)

    # Fused epilogue: a single exp pass feeds both sigmoid and softmax.
    neg = jnp.float32(-1e30)
    aux_logits = jnp.where(aux_mask, logits, neg)               # pads -> -1e30
    m = jnp.max(aux_logits, axis=-1, keepdims=True)
    z = jnp.where(lane == 0, -logits, aux_logits - m)
    z = jnp.minimum(z, jnp.float32(80.0))        # no inf for very negative adv logit
    e = jnp.exp(z)                               # padded lanes underflow to exactly 0

    denom = jnp.sum(jnp.where(lane == 0, 0.0, e), axis=-1, keepdims=True)
    sig = pl.reciprocal(1.0 + e, approx=True)                   # EUP slot
    label = e * pl.reciprocal(denom, approx=True)

    # Lane-dense store: col 0 = validity, 1..17 = label, rest = 0.
    out_ref[...] = jnp.where(lane == 0, sig, label)


# ---------------------------------------------------------------------------
# Wrapper
# ---------------------------------------------------------------------------
def _vmem_limit_bytes(blk):
    """Derived VMEM budget (2x headroom), clamped to [16 MiB, 32 MiB]."""
    bf16, f32 = 2, 4
    io = 2 * blk * D_IN * bf16 + 2 * blk * OUT_PAD * f32         # dbl-buffered x/out
    wgt = (D_IN * 2 * H1 + 2 * H1 * H2 + 2 * H2 * OUT_PAD) * bf16  # single-buffered
    bias = (2 * H1 + 2 * H2 + OUT_PAD) * f32
    act = blk * (2 * H1 + 2 * H2 + 4 * OUT_PAD) * f32            # live activations
    need = io + wgt + bias + act
    return int(min(32 << 20, max(16 << 20, 2 * need)))


def discriminator_forward(img, fused_params):
    """img: (B, 1, CHANNELS, IMG_SIZE, IMG_SIZE). Returns (validity (B,1),
    label (B, N_CLASSES))."""
    B = img.shape[0]
    # bf16 input: halves the dominant per-tile HBM read; cast folds into pad.
    x = img.reshape(B, -1).astype(jnp.bfloat16)
    assert x.shape[1] == D_IN

    # Batch tile: multiple of 16 (bf16 sublane packing).  Large tiles amortize
    # the ~0.35us/step grid overhead; keep >= 2 grid steps so both v7x TCs work.
    if B <= 16:
        blk = 16
    else:
        blk = min(512, _round_up(_round_up(B, 16) // 2, 16))
    b_pad = _round_up(B, blk)
    if b_pad != B:
        x = jnp.pad(x, ((0, b_pad - B), (0, 0)))

    w1, b1, w2a, b2a, w2x, b2x, w3a, w3x, b3 = fused_params
    const2 = lambda i: (0, 0)   # weights/biases resident across batch tiles

    def wspec(a):               # constant block index -> single-buffer it
        return pl.BlockSpec(a.shape, const2, pipeline_mode=pl.Buffered(1))

    out = pl.pallas_call(
        discriminator_kernel,
        out_shape=jax.ShapeDtypeStruct((b_pad, OUT_PAD), jnp.float32),
        grid_spec=pltpu.PrefetchScalarGridSpec(
            num_scalar_prefetch=0,
            grid=(b_pad // blk,),
            in_specs=[
                pl.BlockSpec((blk, D_IN), lambda i: (i, 0)),
                wspec(w1), wspec(b1),
                wspec(w2a), wspec(b2a), wspec(w2x), wspec(b2x),
                wspec(w3a), wspec(w3x), wspec(b3),
            ],
            out_specs=pl.BlockSpec((blk, OUT_PAD), lambda i: (i, 0)),
        ),
        compiler_params=pltpu.CompilerParams(
            dimension_semantics=("parallel",),
            vmem_limit_bytes=_vmem_limit_bytes(blk),
        ),
    )(x, w1, b1, w2a, b2a, w2x, b2x, w3a, w3x, b3)

    validity = out[:B, 0:1]
    label = out[:B, 1:1 + N_CLASSES]
    return validity, label


# ---------------------------------------------------------------------------
# Parameters
# ---------------------------------------------------------------------------
def init_params(key):
    """Per-branch Linear weights as (in, out) f32; biases as (1, out) f32."""
    dims_adv = [(D_IN, H1), (H1, H2), (H2, 1)]
    dims_aux = [(D_IN, H1), (H1, H2), (H2, N_CLASSES)]
    params = []
    keys = jax.random.split(key, 12)
    ki = 0
    for dims in (dims_adv, dims_aux):
        for (fan_in, fan_out) in dims:
            bound = 1.0 / jnp.sqrt(jnp.float32(fan_in))
            w = jax.random.uniform(keys[ki], (fan_in, fan_out),
                                   jnp.float32, -bound, bound)
            ki += 1
            b = jax.random.uniform(keys[ki], (1, fan_out),
                                   jnp.float32, -bound, bound)
            ki += 1
            params.extend([w, b])
    return tuple(params)


def fuse_params(params):
    """L1 concat, L2 as two dense (512,256) blocks, L3 padded to a 128 head."""
    (w1a, b1a, w2a, b2a, w3a, b3a, w1x, b1x, w2x, b2x, w3x, b3x) = params

    w1 = jnp.concatenate([w1a, w1x], axis=1)                      # (1024, 1024)
    b1 = jnp.concatenate([b1a, b1x], axis=1)                      # (1, 1024)

    # L3 heads padded to lane-dense width 128 (additive in the kernel).
    w3a_p = jnp.zeros((H2, OUT_PAD), jnp.float32).at[:, 0:1].set(w3a)
    w3x_p = jnp.zeros((H2, OUT_PAD), jnp.float32).at[:, 1:1 + N_CLASSES].set(w3x)
    b3 = jnp.zeros((1, OUT_PAD), jnp.float32)
    b3 = b3.at[:, 0:1].set(b3a).at[:, 1:1 + N_CLASSES].set(b3x)

    return (w1.astype(jnp.bfloat16), b1,
            w2a.astype(jnp.bfloat16), b2a,
            w2x.astype(jnp.bfloat16), b2x,
            w3a_p.astype(jnp.bfloat16), w3x_p.astype(jnp.bfloat16), b3)


# ---------------------------------------------------------------------------
# Pure-JAX reference (un-fused branches, same bf16 quantization)
# ---------------------------------------------------------------------------
def reference_forward(img, params):
    B = img.shape[0]
    x = img.reshape(B, -1).astype(jnp.float32)
    (w1a, b1a, w2a, b2a, w3a, b3a, w1x, b1x, w2x, b2x, w3x, b3x) = params

    def dot_bf16(a, w):
        return jnp.dot(a.astype(jnp.bfloat16), w.astype(jnp.bfloat16),
                       preferred_element_type=jnp.float32)

    def mlp(x, w1, b1, w2, b2, w3, b3):
        h = _leaky_relu(dot_bf16(x, w1) + b1)
        h = _leaky_relu(dot_bf16(h, w2) + b2)
        return dot_bf16(h, w3) + b3

    validity = jax.nn.sigmoid(mlp(x, w1a, b1a, w2a, b2a, w3a, b3a))
    label = jax.nn.softmax(mlp(x, w1x, b1x, w2x, b2x, w3x, b3x), axis=-1)
    return validity, label


if __name__ == "__main__":
    key = jax.random.PRNGKey(0)
    k_img, k_par = jax.random.split(key)

    B = 2
    img = jax.random.normal(k_img, (B, 1, CHANNELS, IMG_SIZE, IMG_SIZE),
                            dtype=jnp.float32)
    params = init_params(k_par)
    fused = fuse_params(params)

    validity, label = discriminator_forward(img, fused)
    jax.block_until_ready((validity, label))

    v_ref, l_ref = reference_forward(img, params)
    assert validity.shape == (B, 1) and label.shape == (B, N_CLASSES)
    assert jnp.allclose(validity, v_ref, atol=2e-3, rtol=2e-3), (
        jnp.max(jnp.abs(validity - v_ref)))
    assert jnp.allclose(label, l_ref, atol=2e-3, rtol=2e-3), (
        jnp.max(jnp.abs(label - l_ref)))
    assert jnp.allclose(jnp.sum(label, axis=-1), 1.0, atol=2e-3)

    print("KERNEL_OK")
</pallas_src>

<mosaic_0001>
module attributes {stable_mosaic.version = 11 : i64} {
  func.func @discriminator_kernel(%arg0: i32, %arg1: memref<16x1024xbf16, #tpu.memory_space<vmem>>, %arg2: memref<1024x1024xbf16, #tpu.memory_space<vmem>>, %arg3: memref<1x1024xf32, #tpu.memory_space<vmem>>, %arg4: memref<512x256xbf16, #tpu.memory_space<vmem>>, %arg5: memref<1x256xf32, #tpu.memory_space<vmem>>, %arg6: memref<512x256xbf16, #tpu.memory_space<vmem>>, %arg7: memref<1x256xf32, #tpu.memory_space<vmem>>, %arg8: memref<256x128xbf16, #tpu.memory_space<vmem>>, %arg9: memref<256x128xbf16, #tpu.memory_space<vmem>>, %arg10: memref<1x128xf32, #tpu.memory_space<vmem>>, %arg11: memref<16x128xf32, #tpu.memory_space<vmem>>) attributes {dimension_semantics = [#tpu.dimension_semantics<parallel>], iteration_bounds = array<i64: 1>, scalar_prefetch = 0 : i64, scratch_operands = 0 : i64, tpu.core_type = #tpu.core_type<tc>, window_params = [{transform_indices = @transform_0, window_bounds = array<i64: 16, 1024>}, {pipeline_mode = #tpu.pipeline_mode<synchronous>, transform_indices = @transform_1, window_bounds = array<i64: 1024, 1024>}, {pipeline_mode = #tpu.pipeline_mode<synchronous>, transform_indices = @transform_2, window_bounds = array<i64: 1, 1024>}, {pipeline_mode = #tpu.pipeline_mode<synchronous>, transform_indices = @transform_3, window_bounds = array<i64: 512, 256>}, {pipeline_mode = #tpu.pipeline_mode<synchronous>, transform_indices = @transform_4, window_bounds = array<i64: 1, 256>}, {pipeline_mode = #tpu.pipeline_mode<synchronous>, transform_indices = @transform_5, window_bounds = array<i64: 512, 256>}, {pipeline_mode = #tpu.pipeline_mode<synchronous>, transform_indices = @transform_6, window_bounds = array<i64: 1, 256>}, {pipeline_mode = #tpu.pipeline_mode<synchronous>, transform_indices = @transform_7, window_bounds = array<i64: 256, 128>}, {pipeline_mode = #tpu.pipeline_mode<synchronous>, transform_indices = @transform_8, window_bounds = array<i64: 256, 128>}, {pipeline_mode = #tpu.pipeline_mode<synchronous>, transform_indices = @transform_9, window_bounds = array<i64: 1, 128>}, {transform_indices = @transform_10, window_bounds = array<i64: 16, 128>}]} {
    %c0 = arith.constant 0 : index
    %c0_0 = arith.constant 0 : index
    %0 = vector.load %arg1[%c0, %c0_0] : memref<16x1024xbf16, #tpu.memory_space<vmem>>, vector<16x1024xbf16>
    %c0_1 = arith.constant 0 : index
    %c0_2 = arith.constant 0 : index
    %1 = vector.load %arg2[%c0_1, %c0_2] : memref<1024x1024xbf16, #tpu.memory_space<vmem>>, vector<1024x1024xbf16>
    %cst = arith.constant dense<0.000000e+00> : vector<16x1024xf32>
    %2 = tpu.matmul %0, %1, %cst {dimension_numbers = #tpu.dot_dimension_numbers<[1], [0], [0], [1], [0, 0, 1, 1], [], []>} : vector<16x1024xbf16>, vector<1024x1024xbf16>, vector<16x1024xf32> -> vector<16x1024xf32>
    %c0_3 = arith.constant 0 : index
    %c0_4 = arith.constant 0 : index
    %3 = vector.load %arg3[%c0_3, %c0_4] : memref<1x1024xf32, #tpu.memory_space<vmem>>, vector<1x1024xf32>
    %4 = vector.broadcast %3 : vector<1x1024xf32> to vector<16x1024xf32>
    %5 = arith.addf %2, %4 : vector<16x1024xf32>
    %cst_5 = arith.constant 0.000000e+00 : f32
    %6 = vector.broadcast %cst_5 : f32 to vector<16x1024xf32>
    %7 = arith.cmpf ogt, %5, %6 : vector<16x1024xf32>
    %cst_6 = arith.constant 2.000000e-01 : f32
    %8 = vector.broadcast %cst_6 : f32 to vector<16x1024xf32>
    %9 = arith.mulf %8, %5 : vector<16x1024xf32>
    %10 = arith.select %7, %5, %9 : vector<16x1024xi1>, vector<16x1024xf32>
    %11 = arith.truncf %10 : vector<16x1024xf32> to vector<16x1024xbf16>
    %12 = vector.extract_strided_slice %11 {offsets = [0, 0], sizes = [16, 512], strides = [1, 1]} : vector<16x1024xbf16> to vector<16x512xbf16>
    %c0_7 = arith.constant 0 : index
    %c0_8 = arith.constant 0 : index
    %13 = vector.load %arg4[%c0_7, %c0_8] : memref<512x256xbf16, #tpu.memory_space<vmem>>, vector<512x256xbf16>
    %cst_9 = arith.constant dense<0.000000e+00> : vector<16x256xf32>
    %14 = tpu.matmul %12, %13, %cst_9 {dimension_numbers = #tpu.dot_dimension_numbers<[1], [0], [0], [1], [0, 0, 1, 1], [], []>} : vector<16x512xbf16>, vector<512x256xbf16>, vector<16x256xf32> -> vector<16x256xf32>
    %c0_10 = arith.constant 0 : index
    %c0_11 = arith.constant 0 : index
    %15 = vector.load %arg5[%c0_10, %c0_11] : memref<1x256xf32, #tpu.memory_space<vmem>>, vector<1x256xf32>
    %16 = vector.broadcast %15 : vector<1x256xf32> to vector<16x256xf32>
    %17 = arith.addf %14, %16 : vector<16x256xf32>
    %18 = vector.extract_strided_slice %11 {offsets = [0, 512], sizes = [16, 512], strides = [1, 1]} : vector<16x1024xbf16> to vector<16x512xbf16>
    %c0_12 = arith.constant 0 : index
    %c0_13 = arith.constant 0 : index
    %19 = vector.load %arg6[%c0_12, %c0_13] : memref<512x256xbf16, #tpu.memory_space<vmem>>, vector<512x256xbf16>
    %cst_14 = arith.constant dense<0.000000e+00> : vector<16x256xf32>
    %20 = tpu.matmul %18, %19, %cst_14 {dimension_numbers = #tpu.dot_dimension_numbers<[1], [0], [0], [1], [0, 0, 1, 1], [], []>} : vector<16x512xbf16>, vector<512x256xbf16>, vector<16x256xf32> -> vector<16x256xf32>
    %c0_15 = arith.constant 0 : index
    %c0_16 = arith.constant 0 : index
    %21 = vector.load %arg7[%c0_15, %c0_16] : memref<1x256xf32, #tpu.memory_space<vmem>>, vector<1x256xf32>
    %22 = vector.broadcast %21 : vector<1x256xf32> to vector<16x256xf32>
    %23 = arith.addf %20, %22 : vector<16x256xf32>
    %cst_17 = arith.constant 0.000000e+00 : f32
    %24 = vector.broadcast %cst_17 : f32 to vector<16x256xf32>
    %25 = arith.cmpf ogt, %17, %24 : vector<16x256xf32>
    %cst_18 = arith.constant 2.000000e-01 : f32
    %26 = vector.broadcast %cst_18 : f32 to vector<16x256xf32>
    %27 = arith.mulf %26, %17 : vector<16x256xf32>
    %28 = arith.select %25, %17, %27 : vector<16x256xi1>, vector<16x256xf32>
    %29 = arith.truncf %28 : vector<16x256xf32> to vector<16x256xbf16>
    %cst_19 = arith.constant 0.000000e+00 : f32
    %30 = vector.broadcast %cst_19 : f32 to vector<16x256xf32>
    %31 = arith.cmpf ogt, %23, %30 : vector<16x256xf32>
    %cst_20 = arith.constant 2.000000e-01 : f32
    %32 = vector.broadcast %cst_20 : f32 to vector<16x256xf32>
    %33 = arith.mulf %32, %23 : vector<16x256xf32>
    %34 = arith.select %31, %23, %33 : vector<16x256xi1>, vector<16x256xf32>
    %35 = arith.truncf %34 : vector<16x256xf32> to vector<16x256xbf16>
    %c0_21 = arith.constant 0 : index
    %c0_22 = arith.constant 0 : index
    %36 = vector.load %arg8[%c0_21, %c0_22] : memref<256x128xbf16, #tpu.memory_space<vmem>>, vector<256x128xbf16>
    %cst_23 = arith.constant dense<0.000000e+00> : vector<16x128xf32>
    %37 = tpu.matmul %29, %36, %cst_23 {dimension_numbers = #tpu.dot_dimension_numbers<[1], [0], [0], [1], [0, 0, 1, 1], [], []>} : vector<16x256xbf16>, vector<256x128xbf16>, vector<16x128xf32> -> vector<16x128xf32>
    %c0_24 = arith.constant 0 : index
    %c0_25 = arith.constant 0 : index
    %38 = vector.load %arg9[%c0_24, %c0_25] : memref<256x128xbf16, #tpu.memory_space<vmem>>, vector<256x128xbf16>
    %cst_26 = arith.constant dense<0.000000e+00> : vector<16x128xf32>
    %39 = tpu.matmul %35, %38, %cst_26 {dimension_numbers = #tpu.dot_dimension_numbers<[1], [0], [0], [1], [0, 0, 1, 1], [], []>} : vector<16x256xbf16>, vector<256x128xbf16>, vector<16x128xf32> -> vector<16x128xf32>
    %40 = arith.addf %37, %39 : vector<16x128xf32>
    %c0_27 = arith.constant 0 : index
    %c0_28 = arith.constant 0 : index
    %41 = vector.load %arg10[%c0_27, %c0_28] : memref<1x128xf32, #tpu.memory_space<vmem>>, vector<1x128xf32>
    %42 = vector.broadcast %41 : vector<1x128xf32> to vector<16x128xf32>
    %43 = arith.addf %40, %42 : vector<16x128xf32>
    %44 = tpu.iota {dimensions = array<i32: 1>} : vector<16x128xi32>
    %c1_i32 = arith.constant 1 : i32
    %45 = vector.broadcast %c1_i32 : i32 to vector<16x128xi32>
    %46 = arith.cmpi sge, %44, %45 : vector<16x128xi32>
    %c18_i32 = arith.constant 18 : i32
    %47 = vector.broadcast %c18_i32 : i32 to vector<16x128xi32>
    %48 = arith.cmpi slt, %44, %47 : vector<16x128xi32>
    %49 = arith.andi %46, %48 : vector<16x128xi1>
    %cst_29 = arith.constant -1.000000e+30 : f32
    %50 = vector.broadcast %cst_29 : f32 to vector<16x128xf32>
    %51 = arith.select %49, %43, %50 : vector<16x128xi1>, vector<16x128xf32>
    %cst_30 = arith.constant dense<0xFF800000> : vector<16xf32>
    %52 = vector.multi_reduction <maximumf>, %51, %cst_30 [1] : vector<16x128xf32> to vector<16xf32>
    %53 = vector.shape_cast %52 : vector<16xf32> to vector<16x1xf32>
    %c0_i32 = arith.constant 0 : i32
    %54 = vector.broadcast %c0_i32 : i32 to vector<16x128xi32>
    %55 = arith.cmpi eq, %44, %54 : vector<16x128xi32>
    %cst_31 = arith.constant 0.000000e+00 : f32
    %56 = vector.broadcast %cst_31 : f32 to vector<16x128xf32>
    %57 = arith.subf %56, %43 : vector<16x128xf32>
    %58 = vector.broadcast %53 : vector<16x1xf32> to vector<16x128xf32>
    %59 = arith.subf %51, %58 : vector<16x128xf32>
    %60 = arith.select %55, %57, %59 : vector<16x128xi1>, vector<16x128xf32>
    %cst_32 = arith.constant 8.000000e+01 : f32
    %61 = vector.broadcast %cst_32 : f32 to vector<16x128xf32>
    %62 = arith.minimumf %60, %61 : vector<16x128xf32>
    %63 = math.exp %62 : vector<16x128xf32>
    %c0_i32_33 = arith.constant 0 : i32
    %64 = vector.broadcast %c0_i32_33 : i32 to vector<16x128xi32>
    %65 = arith.cmpi eq, %44, %64 : vector<16x128xi32>
    %cst_34 = arith.constant 0.000000e+00 : f32
    %66 = vector.broadcast %cst_34 : f32 to vector<16x128xf32>
    %67 = arith.select %65, %66, %63 : vector<16x128xi1>, vector<16x128xf32>
    %cst_35 = arith.constant dense<0.000000e+00> : vector<16xf32>
    %68 = vector.multi_reduction <add>, %67, %cst_35 [1] : vector<16x128xf32> to vector<16xf32>
    %69 = vector.shape_cast %68 : vector<16xf32> to vector<16x1xf32>
    %cst_36 = arith.constant 1.000000e+00 : f32
    %70 = vector.broadcast %cst_36 : f32 to vector<16x128xf32>
    %71 = arith.addf %70, %63 : vector<16x128xf32>
    %72 = tpu.reciprocal %71 {approx = true} : vector<16x128xf32> -> vector<16x128xf32>
    %73 = tpu.reciprocal %69 {approx = true} : vector<16x1xf32> -> vector<16x1xf32>
    %74 = vector.broadcast %73 : vector<16x1xf32> to vector<16x128xf32>
    %75 = arith.mulf %63, %74 : vector<16x128xf32>
    %c0_i32_37 = arith.constant 0 : i32
    %76 = vector.broadcast %c0_i32_37 : i32 to vector<16x128xi32>
    %77 = arith.cmpi eq, %44, %76 : vector<16x128xi32>
    %78 = arith.select %77, %72, %75 : vector<16x128xi1>, vector<16x128xf32>
    %c0_38 = arith.constant 0 : index
    %c0_39 = arith.constant 0 : index
    %79 = vector.load %arg11[%c0_38, %c0_39] : memref<16x128xf32, #tpu.memory_space<vmem>>, vector<16x128xf32>
    tpu.vector_store %arg11[%c0_38, %c0_39], %78 {strides = array<i32>} : memref<16x128xf32, #tpu.memory_space<vmem>>, vector<16x128xf32>,
    return
  }
  func.func @transform_0(%arg0: i32) -> (i32, i32) {
    %c0_i32 = arith.constant 0 : i32
    %c0_i32_0 = arith.constant 0 : i32
    return %arg0, %c0_i32 : i32, i32
  }
  func.func @transform_1(%arg0: i32) -> (i32, i32) {
    %c0_i32 = arith.constant 0 : i32
    %c0_i32_0 = arith.constant 0 : i32
    %c0_i32_1 = arith.constant 0 : i32
    return %c0_i32, %c0_i32_0 : i32, i32
  }
  func.func @transform_2(%arg0: i32) -> (i32, i32) {
    %c0_i32 = arith.constant 0 : i32
    %c0_i32_0 = arith.constant 0 : i32
    %c0_i32_1 = arith.constant 0 : i32
    return %c0_i32, %c0_i32_0 : i32, i32
  }
  func.func @transform_3(%arg0: i32) -> (i32, i32) {
    %c0_i32 = arith.constant 0 : i32
    %c0_i32_0 = arith.constant 0 : i32
    %c0_i32_1 = arith.constant 0 : i32
    return %c0_i32, %c0_i32_0 : i32, i32
  }
  func.func @transform_4(%arg0: i32) -> (i32, i32) {
    %c0_i32 = arith.constant 0 : i32
    %c0_i32_0 = arith.constant 0 : i32
    %c0_i32_1 = arith.constant 0 : i32
    return %c0_i32, %c0_i32_0 : i32, i32
  }
  func.func @transform_5(%arg0: i32) -> (i32, i32) {
    %c0_i32 = arith.constant 0 : i32
    %c0_i32_0 = arith.constant 0 : i32
    %c0_i32_1 = arith.constant 0 : i32
    return %c0_i32, %c0_i32_0 : i32, i32
  }
  func.func @transform_6(%arg0: i32) -> (i32, i32) {
    %c0_i32 = arith.constant 0 : i32
    %c0_i32_0 = arith.constant 0 : i32
    %c0_i32_1 = arith.constant 0 : i32
    return %c0_i32, %c0_i32_0 : i32, i32
  }
  func.func @transform_7(%arg0: i32) -> (i32, i32) {
    %c0_i32 = arith.constant 0 : i32
    %c0_i32_0 = arith.constant 0 : i32
    %c0_i32_1 = arith.constant 0 : i32
    return %c0_i32, %c0_i32_0 : i32, i32
  }
  func.func @transform_8(%arg0: i32) -> (i32, i32) {
    %c0_i32 = arith.constant 0 : i32
    %c0_i32_0 = arith.constant 0 : i32
    %c0_i32_1 = arith.constant 0 : i32
    return %c0_i32, %c0_i32_0 : i32, i32
  }
  func.func @transform_9(%arg0: i32) -> (i32, i32) {
    %c0_i32 = arith.constant 0 : i32
    %c0_i32_0 = arith.constant 0 : i32
    %c0_i32_1 = arith.constant 0 : i32
    return %c0_i32, %c0_i32_0 : i32, i32
  }
  func.func @transform_10(%arg0: i32) -> (i32, i32) {
    %c0_i32 = arith.constant 0 : i32
    %c0_i32_0 = arith.constant 0 : i32
    return %arg0, %c0_i32 : i32, i32
  }
}

</mosaic_0001>

<llo_original>
// kernel: tpu_custom_call.1
$region0: #{tpu_custom_call.1}
  #allocation0 [shape = 'u32[]', space=smem, size = 0x4, offset = 0x4, fixed_abs, tag = 'smem constant byte address 0x4 - core index']
  #allocation1 [shape = 'u32[72,128]{1,0:T(1,128)}', space=vmem, size = 0x9000, scoped, tag = 'internal scratch']
  %s0 = inlined_call_operand.hbm [shape: bf16[16,1024], index: 0, kind: input, shape index: {}]
  %s1 = inlined_call_operand.hbm [shape: bf16[1024,1024], index: 1, kind: input, shape index: {}]
  %s2 = inlined_call_operand.hbm [shape: f32[1,1024], index: 2, kind: input, shape index: {}]
  %s3 = inlined_call_operand.hbm [shape: bf16[512,256], index: 3, kind: input, shape index: {}]
  %s4 = inlined_call_operand.hbm [shape: f32[1,256], index: 4, kind: input, shape index: {}]
  %s5 = inlined_call_operand.hbm [shape: bf16[512,256], index: 5, kind: input, shape index: {}]
  %s6 = inlined_call_operand.hbm [shape: f32[1,256], index: 6, kind: input, shape index: {}]
  %s7 = inlined_call_operand.hbm [shape: bf16[256,128], index: 7, kind: input, shape index: {}]
  %s8 = inlined_call_operand.hbm [shape: bf16[256,128], index: 8, kind: input, shape index: {}]
  %s9 = inlined_call_operand.hbm [shape: f32[1,128], index: 9, kind: input, shape index: {}]
  %s10 = inlined_call_operand.hbm [shape: f32[16,128], index: 10, kind: output, shape index: {}]
  %s11 = sld [smem:[#allocation0]]
  $region90: #{tpu_custom_call.1} parent=0
    _
  %s13 = ssub.s32 1, %s11
  %s14 = scalar_select 0, %s13, %s11
  $region1: #{tpu_custom_call.1} parent=0
    #allocation2 [shape = 'u8[32768]{0}', space=vmem, size = 0x8000, scoped, tag = 'input window, operand 0, single buffered']
    #allocation3 [shape = 's32[1]{0}', space=sflag, size = 0x4, scoped, tag = 'scoped memory for tpu_custom_call.1']
    #allocation4 [shape = 's32[1]{0}', space=sflag, size = 0x4, scoped, tag = 'scoped memory for tpu_custom_call.1']
    #allocation5 [shape = 'u8[2097152]{0}', space=vmem, size = 0x200000, scoped, tag = 'input window, operand 1, single buffered']
    #allocation6 [shape = 's32[1]{0}', space=sflag, size = 0x4, scoped, tag = 'scoped memory for tpu_custom_call.1']
    #allocation7 [shape = 'u8[4096]{0}', space=vmem, size = 0x1000, scoped, tag = 'input window, operand 2, single buffered']
    #allocation8 [shape = 'u8[262144]{0}', space=vmem, size = 0x40000, scoped, tag = 'input window, operand 3, single buffered']
    #allocation9 [shape = 's32[1]{0}', space=sflag, size = 0x4, scoped, tag = 'scoped memory for tpu_custom_call.1']
    #allocation10 [shape = 'u8[1024]{0}', space=vmem, size = 0x400, scoped, tag = 'input window, operand 4, single buffered']
    #allocation11 [shape = 'u8[262144]{0}', space=vmem, size = 0x40000, scoped, tag = 'input window, operand 5, single buffered']
    #allocation12 [shape = 's32[1]{0}', space=sflag, size = 0x4, scoped, tag = 'scoped memory for tpu_custom_call.1']
    #allocation13 [shape = 'u8[1024]{0}', space=vmem, size = 0x400, scoped, tag = 'input window, operand 6, single buffered']
    #allocation14 [shape = 'u8[65536]{0}', space=vmem, size = 0x10000, scoped, tag = 'input window, operand 7, single buffered']
    #allocation15 [shape = 's32[1]{0}', space=sflag, size = 0x4, scoped, tag = 'scoped memory for tpu_custom_call.1']
    #allocation16 [shape = 'u8[65536]{0}', space=vmem, size = 0x10000, scoped, tag = 'input window, operand 8, single buffered']
    #allocation17 [shape = 'u8[512]{0}', space=vmem, size = 0x400, scoped, tag = 'input window, operand 9, single buffered']
    #allocation18 [shape = 's32[1]{0}', space=sflag, size = 0x4, scoped, tag = 'scoped memory for tpu_custom_call.1']
    #allocation19 [shape = 'u8[8192]{0}', space=vmem, size = 0x2000, scoped, tag = 'output window, operand 0, single buffered']
    %15 = vsyncpa [#allocation3], 0
    %16 = vsyncpa [#allocation6], 0
    %17 = vsyncpa [#allocation9], 0
    %18 = vsyncpa [#allocation12], 0
    %19 = vsyncpa [#allocation15], 0
    %20 = vsyncpa [#allocation18], 0
    %21 = vsyncpa [#allocation4], 0
    // Predicated region
    $region2: #{tpu_custom_call.1} parent=1 // pred_check
      _
    $region3: #{tpu_custom_call.1} parent=1 // pred_check_branch
      %23 = sbr.rel (0) target = $region5
    $region4: #{tpu_custom_call.1} parent=1 // pred_region
      %25 = vsyncadd [#allocation3], 0
      %s26 = sshll.u32 %s0, 4
      %s27 = int_to_ptr.hbm [resolvable:$true] %s26
      %s28 = sshll.u32 [#allocation2], 4
      %s29 = int_to_ptr.vmem [resolvable:$true] %s28
      %34 = dma.hbm_to_vmem [thread:$0]  %s27, 1024, %s29, [#allocation3], 512, 512, 32
    $region5: #{tpu_custom_call.1} parent=1 // pred_fallthru
      _
    // Predicated region
    $region6: #{tpu_custom_call.1} parent=1 // pred_check
      _
    $region7: #{tpu_custom_call.1} parent=1 // pred_check_branch
      %36 = sbr.rel (0) target = $region9
    $region8: #{tpu_custom_call.1} parent=1 // pred_region
      %38 = vsyncadd [#allocation6], 0
      %s39 = sshll.u32 %s1, 4
      %s40 = int_to_ptr.hbm [resolvable:$true] %s39
      %s41 = sshll.u32 [#allocation5], 4
      %s42 = int_to_ptr.vmem [resolvable:$true] %s41
      %47 = dma.hbm_to_vmem [thread:$0]  %s40, 65536, %s42, [#allocation6], 512, 512, 32
    $region9: #{tpu_custom_call.1} parent=1 // pred_fallthru
      _
    // Predicated region
    $region10: #{tpu_custom_call.1} parent=1 // pred_check
      _
    $region11: #{tpu_custom_call.1} parent=1 // pred_check_branch
      %49 = sbr.rel (0) target = $region13
    $region12: #{tpu_custom_call.1} parent=1 // pred_region
      %51 = vsyncadd [#allocation6], 0
      %s53 = sshll.u32 %s2, 4
      %s54 = int_to_ptr.hbm [resolvable:$true] %s53
      %s55 = sshll.u32 [#allocation7], 4
      %s56 = int_to_ptr.vmem [resolvable:$true] %s55
      %58 = dma.hbm_to_vmem [thread:$0]  %s54, 128, %s56, [#allocation6]
    $region13: #{tpu_custom_call.1} parent=1 // pred_fallthru
      _
    // Predicated region
    $region14: #{tpu_custom_call.1} parent=1 // pred_check
      _
    $region15: #{tpu_custom_call.1} parent=1 // pred_check_branch
      %60 = sbr.rel (0) target = $region17
    $region16: #{tpu_custom_call.1} parent=1 // pred_region
      %62 = vsyncadd [#allocation9], 0
      %s63 = sshll.u32 %s3, 4
      %s64 = int_to_ptr.hbm [resolvable:$true] %s63
      %s65 = sshll.u32 [#allocation8], 4
      %s66 = int_to_ptr.vmem [resolvable:$true] %s65
      %71 = dma.hbm_to_vmem [thread:$0]  %s64, 8192, %s66, [#allocation9], 128, 128, 8
    $region17: #{tpu_custom_call.1} parent=1 // pred_fallthru
      _
    // Predicated region
    $region18: #{tpu_custom_call.1} parent=1 // pred_check
      _
    $region19: #{tpu_custom_call.1} parent=1 // pred_check_branch
      %73 = sbr.rel (0) target = $region21
    $region20: #{tpu_custom_call.1} parent=1 // pred_region
      %75 = vsyncadd [#allocation9], 0
      %s77 = sshll.u32 %s4, 4
      %s78 = int_to_ptr.hbm [resolvable:$true] %s77
      %s79 = sshll.u32 [#allocation10], 4
      %s80 = int_to_ptr.vmem [resolvable:$true] %s79
      %82 = dma.hbm_to_vmem [thread:$0]  %s78, 32, %s80, [#allocation9]
    $region21: #{tpu_custom_call.1} parent=1 // pred_fallthru
      _
    // Predicated region
    $region22: #{tpu_custom_call.1} parent=1 // pred_check
      _
    $region23: #{tpu_custom_call.1} parent=1 // pred_check_branch
      %84 = sbr.rel (0) target = $region25
    $region24: #{tpu_custom_call.1} parent=1 // pred_region
      %86 = vsyncadd [#allocation12], 0
      %s87 = sshll.u32 %s5, 4
      %s88 = int_to_ptr.hbm [resolvable:$true] %s87
      %s89 = sshll.u32 [#allocation11], 4
      %s90 = int_to_ptr.vmem [resolvable:$true] %s89
      %95 = dma.hbm_to_vmem [thread:$0]  %s88, 8192, %s90, [#allocation12], 128, 128, 8
    $region25: #{tpu_custom_call.1} parent=1 // pred_fallthru
      _
    // Predicated region
    $region26: #{tpu_custom_call.1} parent=1 // pred_check
      _
    $region27: #{tpu_custom_call.1} parent=1 // pred_check_branch
      %97 = sbr.rel (0) target = $region29
    $region28: #{tpu_custom_call.1} parent=1 // pred_region
      %99 = vsyncadd [#allocation12], 0
      %s101 = sshll.u32 %s6, 4
      %s102 = int_to_ptr.hbm [resolvable:$true] %s101
      %s103 = sshll.u32 [#allocation13], 4
      %s104 = int_to_ptr.vmem [resolvable:$true] %s103
      %106 = dma.hbm_to_vmem [thread:$0]  %s102, 32, %s104, [#allocation12]
    $region29: #{tpu_custom_call.1} parent=1 // pred_fallthru
      _
    // Predicated region
    $region30: #{tpu_custom_call.1} parent=1 // pred_check
      _
    $region31: #{tpu_custom_call.1} parent=1 // pred_check_branch
      %108 = sbr.rel (0) target = $region33
    $region32: #{tpu_custom_call.1} parent=1 // pred_region
      %110 = vsyncadd [#allocation15], 0
      %s111 = sshll.u32 %s7, 4
      %s112 = int_to_ptr.hbm [resolvable:$true] %s111
      %s113 = sshll.u32 [#allocation14], 4
      %s114 = int_to_ptr.vmem [resolvable:$true] %s113
      %119 = dma.hbm_to_vmem [thread:$0]  %s112, 2048, %s114, [#allocation15], 64, 64, 4
    $region33: #{tpu_custom_call.1} parent=1 // pred_fallthru
      _
    // Predicated region
    $region34: #{tpu_custom_call.1} parent=1 // pred_check
      _
    $region35: #{tpu_custom_call.1} parent=1 // pred_check_branch
      %121 = sbr.rel (0) target = $region37
    $region36: #{tpu_custom_call.1} parent=1 // pred_region
      %123 = vsyncadd [#allocation15], 0
      %s124 = sshll.u32 %s8, 4
      %s125 = int_to_ptr.hbm [resolvable:$true] %s124
      %s126 = sshll.u32 [#allocation16], 4
      %s127 = int_to_ptr.vmem [resolvable:$true] %s126
      %132 = dma.hbm_to_vmem [thread:$0]  %s125, 2048, %s127, [#allocation15], 64, 64, 4
    $region37: #{tpu_custom_call.1} parent=1 // pred_fallthru
      _
    // Predicated region
    $region38: #{tpu_custom_call.1} parent=1 // pred_check
      _
    $region39: #{tpu_custom_call.1} parent=1 // pred_check_branch
      %134 = sbr.rel (0) target = $region41
    $region40: #{tpu_custom_call.1} parent=1 // pred_region
      %136 = vsyncadd [#allocation18], 0
      %s138 = sshll.u32 %s9, 4
      %s139 = int_to_ptr.hbm [resolvable:$true] %s138
      %s140 = sshll.u32 [#allocation17], 4
      %s141 = int_to_ptr.vmem [resolvable:$true] %s140
      %143 = dma.hbm_to_vmem [thread:$0]  %s139, 16, %s141, [#allocation18]
    $region41: #{tpu_custom_call.1} parent=1 // pred_fallthru
      _
    // Predicated region
    $region42: #{tpu_custom_call.1} parent=1 // pred_check
      _
    $region43: #{tpu_custom_call.1} parent=1 // pred_check_branch
      %145 = sbr.rel (0) target = $region45
    $region44: #{tpu_custom_call.1} parent=1 // pred_region
      %147 = dma.done [#allocation3], 1024
    $region45: #{tpu_custom_call.1} parent=1 // pred_fallthru
      _
    // Predicated region
    $region46: #{tpu_custom_call.1} parent=1 // pred_check
      _
    $region47: #{tpu_custom_call.1} parent=1 // pred_check_branch
      %149 = sbr.rel (0) target = $region49
    $region48: #{tpu_custom_call.1} parent=1 // pred_region
      %151 = dma.done [#allocation6], 65536
    $region49: #{tpu_custom_call.1} parent=1 // pred_fallthru
      _
    // Predicated region
    $region50: #{tpu_custom_call.1} parent=1 // pred_check
      _
    $region51: #{tpu_custom_call.1} parent=1 // pred_check_branch
      %153 = sbr.rel (0) target = $region53
    $region52: #{tpu_custom_call.1} parent=1 // pred_region
      %155 = dma.done [#allocation6], 128
    $region53: #{tpu_custom_call.1} parent=1 // pred_fallthru
      _
    // Predicated region
    $region54: #{tpu_custom_call.1} parent=1 // pred_check
      _
    $region55: #{tpu_custom_call.1} parent=1 // pred_check_branch
      %157 = sbr.rel (0) target = $region57
    $region56: #{tpu_custom_call.1} parent=1 // pred_region
      %159 = dma.done [#allocation9], 8192
    $region57: #{tpu_custom_call.1} parent=1 // pred_fallthru
      _
    // Predicated region
    $region58: #{tpu_custom_call.1} parent=1 // pred_check
      _
    $region59: #{tpu_custom_call.1} parent=1 // pred_check_branch
      %161 = sbr.rel (0) target = $region61
    $region60: #{tpu_custom_call.1} parent=1 // pred_region
      %163 = dma.done [#allocation9], 32
    $region61: #{tpu_custom_call.1} parent=1 // pred_fallthru
      _
    // Predicated region
    $region62: #{tpu_custom_call.1} parent=1 // pred_check
      _
    $region63: #{tpu_custom_call.1} parent=1 // pred_check_branch
      %165 = sbr.rel (0) target = $region65
    $region64: #{tpu_custom_call.1} parent=1 // pred_region
      %167 = dma.done [#allocation12], 8192
    $region65: #{tpu_custom_call.1} parent=1 // pred_fallthru
      _
    // Predicated region
    $region66: #{tpu_custom_call.1} parent=1 // pred_check
      _
    $region67: #{tpu_custom_call.1} parent=1 // pred_check_branch
      %169 = sbr.rel (0) target = $region69
    $region68: #{tpu_custom_call.1} parent=1 // pred_region
      %171 = dma.done [#allocation12], 32
    $region69: #{tpu_custom_call.1} parent=1 // pred_fallthru
      _
    // Predicated region
    $region70: #{tpu_custom_call.1} parent=1 // pred_check
      _
    $region71: #{tpu_custom_call.1} parent=1 // pred_check_branch
      %173 = sbr.rel (0) target = $region73
    $region72: #{tpu_custom_call.1} parent=1 // pred_region
      %175 = dma.done [#allocation15], 2048
    $region73: #{tpu_custom_call.1} parent=1 // pred_fallthru
      _
    // Predicated region
    $region74: #{tpu_custom_call.1} parent=1 // pred_check
      _
    $region75: #{tpu_custom_call.1} parent=1 // pred_check_branch
      %177 = sbr.rel (0) target = $region77
    $region76: #{tpu_custom_call.1} parent=1 // pred_region
      %179 = dma.done [#allocation15], 2048
    $region77: #{tpu_custom_call.1} parent=1 // pred_fallthru
      _
    // Predicated region
    $region78: #{tpu_custom_call.1} parent=1 // pred_check
      _
    $region79: #{tpu_custom_call.1} parent=1 // pred_check_branch
      %181 = sbr.rel (0) target = $region81
    $region80: #{tpu_custom_call.1} parent=1 // pred_region
      %183 = dma.done [#allocation18], 16
    $region81: #{tpu_custom_call.1} parent=1 // pred_fallthru
      _
    %v184 = vld [vmem:[#allocation2] sm:$0xff]
    %v185 = vld [vmem:[#allocation2 + $0x8] sm:$0xff]
    %v186 = vld [vmem:[#allocation2 + $0x10] sm:$0xff]
    %v187 = vld [vmem:[#allocation2 + $0x18] sm:$0xff]
    %v188 = vld [vmem:[#allocation2 + $0x20] sm:$0xff]
    %v189 = vld [vmem:[#allocation2 + $0x28] sm:$0xff]
    %v190 = vld [vmem:[#allocation2 + $0x30] sm:$0xff]
    %v191 = vld [vmem:[#allocation2 + $0x38] sm:$0xff]
    %v192 = vld [vmem:[#allocation5] sm:$0xff]
    %v193 = vld [vmem:[#allocation5 + $0x8] sm:$0xff]
    %v194 = vld [vmem:[#allocation5 + $0x10] sm:$0xff]
    %v195 = vld [vmem:[#allocation5 + $0x18] sm:$0xff]
    %v196 = vld [vmem:[#allocation5 + $0x20] sm:$0xff]
    %v197 = vld [vmem:[#allocation5 + $0x28] sm:$0xff]
    %v198 = vld [vmem:[#allocation5 + $0x30] sm:$0xff]
    %v199 = vld [vmem:[#allocation5 + $0x38] sm:$0xff]
    %v200 = vld [vmem:[#allocation5 + $0x40] sm:$0xff]
    %v201 = vld [vmem:[#allocation5 + $0x48] sm:$0xff]
    %v202 = vld [vmem:[#allocation5 + $0x50] sm:$0xff]
    %v203 = vld [vmem:[#allocation5 + $0x58] sm:$0xff]
    %v204 = vld [vmem:[#allocation5 + $0x60] sm:$0xff]
    %v205 = vld [vmem:[#allocation5 + $0x68] sm:$0xff]
    %v206 = vld [vmem:[#allocation5 + $0x70] sm:$0xff]
    %v207 = vld [vmem:[#allocation5 + $0x78] sm:$0xff]
    %v208 = vld [vmem:[#allocation5 + $0x80] sm:$0xff]
    %v209 = vld [vmem:[#allocation5 + $0x88] sm:$0xff]
    %v210 = vld [vmem:[#allocation5 + $0x90] sm:$0xff]
    %v211 = vld [vmem:[#allocation5 + $0x98] sm:$0xff]
    %v212 = vld [vmem:[#allocation5 + $0xa0] sm:$0xff]
    %v213 = vld [vmem:[#allocation5 + $0xa8] sm:$0xff]
    %v214 = vld [vmem:[#allocation5 + $0xb0] sm:$0xff]
    %v215 = vld [vmem:[#allocation5 + $0xb8] sm:$0xff]
    %v216 = vld [vmem:[#allocation5 + $0xc0] sm:$0xff]
    %v217 = vld [vmem:[#allocation5 + $0xc8] sm:$0xff]
    %v218 = vld [vmem:[#allocation5 + $0xd0] sm:$0xff]
    %v219 = vld [vmem:[#allocation5 + $0xd8] sm:$0xff]
    %v220 = vld [vmem:[#allocation5 + $0xe0] sm:$0xff]
    %v221 = vld [vmem:[#allocation5 + $0xe8] sm:$0xff]
    %v222 = vld [vmem:[#allocation5 + $0xf0] sm:$0xff]
    %v223 = vld [vmem:[#allocation5 + $0xf8] sm:$0xff]
    %v224 = vld [vmem:[#allocation5 + $0x100] sm:$0xff]
    %v225 = vld [vmem:[#allocation5 + $0x108] sm:$0xff]
    %v226 = vld [vmem:[#allocation5 + $0x110] sm:$0xff]
    %v227 = vld [vmem:[#allocation5 + $0x118] sm:$0xff]
    %v228 = vld [vmem:[#allocation5 + $0x120] sm:$0xff]
    %v229 = vld [vmem:[#allocation5 + $0x128] sm:$0xff]
    %v230 = vld [vmem:[#allocation5 + $0x130] sm:$0xff]
    %v231 = vld [vmem:[#allocation5 + $0x138] sm:$0xff]
    %v232 = vld [vmem:[#allocation5 + $0x140] sm:$0xff]
    %v233 = vld [vmem:[#allocation5 + $0x148] sm:$0xff]
    %v234 = vld [vmem:[#allocation5 + $0x150] sm:$0xff]
    %v235 = vld [vmem:[#allocation5 + $0x158] sm:$0xff]
    %v236 = vld [vmem:[#allocation5 + $0x160] sm:$0xff]
    %v237 = vld [vmem:[#allocation5 + $0x168] sm:$0xff]
    %v238 = vld [vmem:[#allocation5 + $0x170] sm:$0xff]
    %v239 = vld [vmem:[#allocation5 + $0x178] sm:$0xff]
    %v240 = vld [vmem:[#allocation5 + $0x180] sm:$0xff]
    %v241 = vld [vmem:[#allocation5 + $0x188] sm:$0xff]
    %v242 = vld [vmem:[#allocation5 + $0x190] sm:$0xff]
    %v243 = vld [vmem:[#allocation5 + $0x198] sm:$0xff]
    %v244 = vld [vmem:[#allocation5 + $0x1a0] sm:$0xff]
    %v245 = vld [vmem:[#allocation5 + $0x1a8] sm:$0xff]
    %v246 = vld [vmem:[#allocation5 + $0x1b0] sm:$0xff]
    %v247 = vld [vmem:[#allocation5 + $0x1b8] sm:$0xff]
    %v248 = vld [vmem:[#allocation5 + $0x1c0] sm:$0xff]
    %v249 = vld [vmem:[#allocation5 + $0x1c8] sm:$0xff]
    %v250 = vld [vmem:[#allocation5 + $0x1d0] sm:$0xff]
    %v251 = vld [vmem:[#allocation5 + $0x1d8] sm:$0xff]
    %v252 = vld [vmem:[#allocation5 + $0x1e0] sm:$0xff]
    %v253 = vld [vmem:[#allocation5 + $0x1e8] sm:$0xff]
    %v254 = vld [vmem:[#allocation5 + $0x1f0] sm:$0xff]
    %v255 = vld [vmem:[#allocation5 + $0x1f8] sm:$0xff]
    %v256 = vld [vmem:[#allocation5 + $0x200] sm:$0xff]
    %v257 = vld [vmem:[#allocation5 + $0x208] sm:$0xff]
    %v258 = vld [vmem:[#allocation5 + $0x210] sm:$0xff]
    %v259 = vld [vmem:[#allocation5 + $0x218] sm:$0xff]
    %v260 = vld [vmem:[#allocation5 + $0x220] sm:$0xff]
    %v261 = vld [vmem:[#allocation5 + $0x228] sm:$0xff]
    %v262 = vld [vmem:[#allocation5 + $0x230] sm:$0xff]
    %v263 = vld [vmem:[#allocation5 + $0x238] sm:$0xff]
    %v264 = vld [vmem:[#allocation5 + $0x240] sm:$0xff]
    %v265 = vld [vmem:[#allocation5 + $0x248] sm:$0xff]
    %v266 = vld [vmem:[#allocation5 + $0x250] sm:$0xff]
    %v267 = vld [vmem:[#allocation5 + $0x258] sm:$0xff]
    %v268 = vld [vmem:[#allocation5 + $0x260] sm:$0xff]
    %v269 = vld [vmem:[#allocation5 + $0x268] sm:$0xff]
    %v270 = vld [vmem:[#allocation5 + $0x270] sm:$0xff]
    %v271 = vld [vmem:[#allocation5 + $0x278] sm:$0xff]
    %v272 = vld [vmem:[#allocation5 + $0x280] sm:$0xff]
    %v273 = vld [vmem:[#allocation5 + $0x288] sm:$0xff]
    %v274 = vld [vmem:[#allocation5 + $0x290] sm:$0xff]
    %v275 = vld [vmem:[#allocation5 + $0x298] sm:$0xff]
    %v276 = vld [vmem:[#allocation5 + $0x2a0] sm:$0xff]
    %v277 = vld [vmem:[#allocation5 + $0x2a8] sm:$0xff]
    %v278 = vld [vmem:[#allocation5 + $0x2b0] sm:$0xff]
    %v279 = vld [vmem:[#allocation5 + $0x2b8] sm:$0xff]
    %v280 = vld [vmem:[#allocation5 + $0x2c0] sm:$0xff]
    %v281 = vld [vmem:[#allocation5 + $0x2c8] sm:$0xff]
    %v282 = vld [vmem:[#allocation5 + $0x2d0] sm:$0xff]
    %v283 = vld [vmem:[#allocation5 + $0x2d8] sm:$0xff]
    %v284 = vld [vmem:[#allocation5 + $0x2e0] sm:$0xff]
    %v285 = vld [vmem:[#allocation5 + $0x2e8] sm:$0xff]
    %v286 = vld [vmem:[#allocation5 + $0x2f0] sm:$0xff]
    %v287 = vld [vmem:[#allocation5 + $0x2f8] sm:$0xff]
    %v288 = vld [vmem:[#allocation5 + $0x300] sm:$0xff]
    %v289 = vld [vmem:[#allocation5 + $0x308] sm:$0xff]
    %v290 = vld [vmem:[#allocation5 + $0x310] sm:$0xff]
    %v291 = vld [vmem:[#allocation5 + $0x318] sm:$0xff]
    %v292 = vld [vmem:[#allocation5 + $0x320] sm:$0xff]
    %v293 = vld [vmem:[#allocation5 + $0x328] sm:$0xff]
    %v294 = vld [vmem:[#allocation5 + $0x330] sm:$0xff]
    %v295 = vld [vmem:[#allocation5 + $0x338] sm:$0xff]
    %v296 = vld [vmem:[#allocation5 + $0x340] sm:$0xff]
    %v297 = vld [vmem:[#allocation5 + $0x348] sm:$0xff]
    %v298 = vld [vmem:[#allocation5 + $0x350] sm:$0xff]
    %v299 = vld [vmem:[#allocation5 + $0x358] sm:$0xff]
    %v300 = vld [vmem:[#allocation5 + $0x360] sm:$0xff]
    %v301 = vld [vmem:[#allocation5 + $0x368] sm:$0xff]
    %v302 = vld [vmem:[#allocation5 + $0x370] sm:$0xff]
    %v303 = vld [vmem:[#allocation5 + $0x378] sm:$0xff]
    %v304 = vld [vmem:[#allocation5 + $0x380] sm:$0xff]
    %v305 = vld [vmem:[#allocation5 + $0x388] sm:$0xff]
    %v306 = vld [vmem:[#allocation5 + $0x390] sm:$0xff]
    %v307 = vld [vmem:[#allocation5 + $0x398] sm:$0xff]
    %v308 = vld [vmem:[#allocation5 + $0x3a0] sm:$0xff]
    %v309 = vld [vmem:[#allocation5 + $0x3a8] sm:$0xff]
    %v310 = vld [vmem:[#allocation5 + $0x3b0] sm:$0xff]
    %v311 = vld [vmem:[#allocation5 + $0x3b8] sm:$0xff]
    %v312 = vld [vmem:[#allocation5 + $0x3c0] sm:$0xff]
    %v313 = vld [vmem:[#allocation5 + $0x3c8] sm:$0xff]
    %v314 = vld [vmem:[#allocation5 + $0x3d0] sm:$0xff]
    %v315 = vld [vmem:[#allocation5 + $0x3d8] sm:$0xff]
    %v316 = vld [vmem:[#allocation5 + $0x3e0] sm:$0xff]
    %v317 = vld [vmem:[#allocation5 + $0x3e8] sm:$0xff]
    %v318 = vld [vmem:[#allocation5 + $0x3f0] sm:$0xff]
    %v319 = vld [vmem:[#allocation5 + $0x3f8] sm:$0xff]
    %v320 = vld [vmem:[#allocation5 + $0x400] sm:$0xff]
    %v321 = vld [vmem:[#allocation5 + $0x408] sm:$0xff]
    %v322 = vld [vmem:[#allocation5 + $0x410] sm:$0xff]
    %v323 = vld [vmem:[#allocation5 + $0x418] sm:$0xff]
    %v324 = vld [vmem:[#allocation5 + $0x420] sm:$0xff]
    %v325 = vld [vmem:[#allocation5 + $0x428] sm:$0xff]
    %v326 = vld [vmem:[#allocation5 + $0x430] sm:$0xff]
    %v327 = vld [vmem:[#allocation5 + $0x438] sm:$0xff]
    %v328 = vld [vmem:[#allocation5 + $0x440] sm:$0xff]
    %v329 = vld [vmem:[#allocation5 + $0x448] sm:$0xff]
    %v330 = vld [vmem:[#allocation5 + $0x450] sm:$0xff]
    %v331 = vld [vmem:[#allocation5 + $0x458] sm:$0xff]
    %v332 = vld [vmem:[#allocation5 + $0x460] sm:$0xff]
    %v333 = vld [vmem:[#allocation5 + $0x468] sm:$0xff]
    %v334 = vld [vmem:[#allocation5 + $0x470] sm:$0xff]
    %v335 = vld [vmem:[#allocation5 + $0x478] sm:$0xff]
    %v336 = vld [vmem:[#allocation5 + $0x480] sm:$0xff]
    %v337 = vld [vmem:[#allocation5 + $0x488] sm:$0xff]
    %v338 = vld [vmem:[#allocation5 + $0x490] sm:$0xff]
    %v339 = vld [vmem:[#allocation5 + $0x498] sm:$0xff]
    %v340 = vld [vmem:[#allocation5 + $0x4a0] sm:$0xff]
    %v341 = vld [vmem:[#allocation5 + $0x4a8] sm:$0xff]
    %v342 = vld [vmem:[#allocation5 + $0x4b0] sm:$0xff]
    %v343 = vld [vmem:[#allocation5 + $0x4b8] sm:$0xff]
    %v344 = vld [vmem:[#allocation5 + $0x4c0] sm:$0xff]
    %v345 = vld [vmem:[#allocation5 + $0x4c8] sm:$0xff]
    %v346 = vld [vmem:[#allocation5 + $0x4d0] sm:$0xff]
    %v347 = vld [vmem:[#allocation5 + $0x4d8] sm:$0xff]
    %v348 = vld [vmem:[#allocation5 + $0x4e0] sm:$0xff]
    %v349 = vld [vmem:[#allocation5 + $0x4e8] sm:$0xff]
    %v350 = vld [vmem:[#allocation5 + $0x4f0] sm:$0xff]
    %v351 = vld [vmem:[#allocation5 + $0x4f8] sm:$0xff]
    %v352 = vld [vmem:[#allocation5 + $0x500] sm:$0xff]
    %v353 = vld [vmem:[#allocation5 + $0x508] sm:$0xff]
    %v354 = vld [vmem:[#allocation5 + $0x510] sm:$0xff]
    %v355 = vld [vmem:[#allocation5 + $0x518] sm:$0xff]
    %v356 = vld [vmem:[#allocation5 + $0x520] sm:$0xff]
    %v357 = vld [vmem:[#allocation5 + $0x528] sm:$0xff]
    %v358 = vld [vmem:[#allocation5 + $0x530] sm:$0xff]
    %v359 = vld [vmem:[#allocation5 + $0x538] sm:$0xff]
    %v360 = vld [vmem:[#allocation5 + $0x540] sm:$0xff]
    %v361 = vld [vmem:[#allocation5 + $0x548] sm:$0xff]
    %v362 = vld [vmem:[#allocation5 + $0x550] sm:$0xff]
    %v363 = vld [vmem:[#allocation5 + $0x558] sm:$0xff]
    %v364 = vld [vmem:[#allocation5 + $0x560] sm:$0xff]
    %v365 = vld [vmem:[#allocation5 + $0x568] sm:$0xff]
    %v366 = vld [vmem:[#allocation5 + $0x570] sm:$0xff]
    %v367 = vld [vmem:[#allocation5 + $0x578] sm:$0xff]
    %v368 = vld [vmem:[#allocation5 + $0x580] sm:$0xff]
    %v369 = vld [vmem:[#allocation5 + $0x588] sm:$0xff]
    %v370 = vld [vmem:[#allocation5 + $0x590] sm:$0xff]
    %v371 = vld [vmem:[#allocation5 + $0x598] sm:$0xff]
    %v372 = vld [vmem:[#allocation5 + $0x5a0] sm:$0xff]
    %v373 = vld [vmem:[#allocation5 + $0x5a8] sm:$0xff]
    %v374 = vld [vmem:[#allocation5 + $0x5b0] sm:$0xff]
    %v375 = vld [vmem:[#allocation5 + $0x5b8] sm:$0xff]
    %v376 = vld [vmem:[#allocation5 + $0x5c0] sm:$0xff]
    %v377 = vld [vmem:[#allocation5 + $0x5c8] sm:$0xff]
    %v378 = vld [vmem:[#allocation5 + $0x5d0] sm:$0xff]
    %v379 = vld [vmem:[#allocation5 + $0x5d8] sm:$0xff]
    %v380 = vld [vmem:[#allocation5 + $0x5e0] sm:$0xff]
    %v381 = vld [vmem:[#allocation5 + $0x5e8] sm:$0xff]
    %v382 = vld [vmem:[#allocation5 + $0x5f0] sm:$0xff]
    %v383 = vld [vmem:[#allocation5 + $0x5f8] sm:$0xff]
    %v384 = vld [vmem:[#allocation5 + $0x600] sm:$0xff]
    %v385 = vld [vmem:[#allocation5 + $0x608] sm:$0xff]
    %v386 = vld [vmem:[#allocation5 + $0x610] sm:$0xff]
    %v387 = vld [vmem:[#allocation5 + $0x618] sm:$0xff]
    %v388 = vld [vmem:[#allocation5 + $0x620] sm:$0xff]
    %v389 = vld [vmem:[#allocation5 + $0x628] sm:$0xff]
    %v390 = vld [vmem:[#allocation5 + $0x630] sm:$0xff]
    %v391 = vld [vmem:[#allocation5 + $0x638] sm:$0xff]
    %v392 = vld [vmem:[#allocation5 + $0x640] sm:$0xff]
    %v393 = vld [vmem:[#allocation5 + $0x648] sm:$0xff]
    %v394 = vld [vmem:[#allocation5 + $0x650] sm:$0xff]
    %v395 = vld [vmem:[#allocation5 + $0x658] sm:$0xff]
    %v396 = vld [vmem:[#allocation5 + $0x660] sm:$0xff]
    %v397 = vld [vmem:[#allocation5 + $0x668] sm:$0xff]
    %v398 = vld [vmem:[#allocation5 + $0x670] sm:$0xff]
    %v399 = vld [vmem:[#allocation5 + $0x678] sm:$0xff]
    %v400 = vld [vmem:[#allocation5 + $0x680] sm:$0xff]
    %v401 = vld [vmem:[#allocation5 + $0x688] sm:$0xff]
    %v402 = vld [vmem:[#allocation5 + $0x690] sm:$0xff]
    %v403 = vld [vmem:[#allocation5 + $0x698] sm:$0xff]
    %v404 = vld [vmem:[#allocation5 + $0x6a0] sm:$0xff]
    %v405 = vld [vmem:[#allocation5 + $0x6a8] sm:$0xff]
    %v406 = vld [vmem:[#allocation5 + $0x6b0] sm:$0xff]
    %v407 = vld [vmem:[#allocation5 + $0x6b8] sm:$0xff]
    %v408 = vld [vmem:[#allocation5 + $0x6c0] sm:$0xff]
    %v409 = vld [vmem:[#allocation5 + $0x6c8] sm:$0xff]
    %v410 = vld [vmem:[#allocation5 + $0x6d0] sm:$0xff]
    %v411 = vld [vmem:[#allocation5 + $0x6d8] sm:$0xff]
    %v412 = vld [vmem:[#allocation5 + $0x6e0] sm:$0xff]
    %v413 = vld [vmem:[#allocation5 + $0x6e8] sm:$0xff]
    %v414 = vld [vmem:[#allocation5 + $0x6f0] sm:$0xff]
    %v415 = vld [vmem:[#allocation5 + $0x6f8] sm:$0xff]
    %v416 = vld [vmem:[#allocation5 + $0x700] sm:$0xff]
    %v417 = vld [vmem:[#allocation5 + $0x708] sm:$0xff]
    %v418 = vld [vmem:[#allocation5 + $0x710] sm:$0xff]
    %v419 = vld [vmem:[#allocation5 + $0x718] sm:$0xff]
    %v420 = vld [vmem:[#allocation5 + $0x720] sm:$0xff]
    %v421 = vld [vmem:[#allocation5 + $0x728] sm:$0xff]
    %v422 = vld [vmem:[#allocation5 + $0x730] sm:$0xff]
    %v423 = vld [vmem:[#allocation5 + $0x738] sm:$0xff]
    %v424 = vld [vmem:[#allocation5 + $0x740] sm:$0xff]
    %v425 = vld [vmem:[#allocation5 + $0x748] sm:$0xff]
    %v426 = vld [vmem:[#allocation5 + $0x750] sm:$0xff]
    %v427 = vld [vmem:[#allocation5 + $0x758] sm:$0xff]
    %v428 = vld [vmem:[#allocation5 + $0x760] sm:$0xff]
    %v429 = vld [vmem:[#allocation5 + $0x768] sm:$0xff]
    %v430 = vld [vmem:[#allocation5 + $0x770] sm:$0xff]
    %v431 = vld [vmem:[#allocation5 + $0x778] sm:$0xff]
    %v432 = vld [vmem:[#allocation5 + $0x780] sm:$0xff]
    %v433 = vld [vmem:[#allocation5 + $0x788] sm:$0xff]
    %v434 = vld [vmem:[#allocation5 + $0x790] sm:$0xff]
    %v435 = vld [vmem:[#allocation5 + $0x798] sm:$0xff]
    %v436 = vld [vmem:[#allocation5 + $0x7a0] sm:$0xff]
    %v437 = vld [vmem:[#allocation5 + $0x7a8] sm:$0xff]
    %v438 = vld [vmem:[#allocation5 + $0x7b0] sm:$0xff]
    %v439 = vld [vmem:[#allocation5 + $0x7b8] sm:$0xff]
    %v440 = vld [vmem:[#allocation5 + $0x7c0] sm:$0xff]
    %v441 = vld [vmem:[#allocation5 + $0x7c8] sm:$0xff]
    %v442 = vld [vmem:[#allocation5 + $0x7d0] sm:$0xff]
    %v443 = vld [vmem:[#allocation5 + $0x7d8] sm:$0xff]
    %v444 = vld [vmem:[#allocation5 + $0x7e0] sm:$0xff]
    %v445 = vld [vmem:[#allocation5 + $0x7e8] sm:$0xff]
    %v446 = vld [vmem:[#allocation5 + $0x7f0] sm:$0xff]
    %v447 = vld [vmem:[#allocation5 + $0x7f8] sm:$0xff]
    %v448 = vld [vmem:[#allocation5 + $0x800] sm:$0xff]
    %v449 = vld [vmem:[#allocation5 + $0x808] sm:$0xff]
    %v450 = vld [vmem:[#allocation5 + $0x810] sm:$0xff]
    %v451 = vld [vmem:[#allocation5 + $0x818] sm:$0xff]
    %v452 = vld [vmem:[#allocation5 + $0x820] sm:$0xff]
    %v453 = vld [vmem:[#allocation5 + $0x828] sm:$0xff]
    %v454 = vld [vmem:[#allocation5 + $0x830] sm:$0xff]
    %v455 = vld [vmem:[#allocation5 + $0x838] sm:$0xff]
    %v456 = vld [vmem:[#allocation5 + $0x840] sm:$0xff]
    %v457 = vld [vmem:[#allocation5 + $0x848] sm:$0xff]
    %v458 = vld [vmem:[#allocation5 + $0x850] sm:$0xff]
    %v459 = vld [vmem:[#allocation5 + $0x858] sm:$0xff]
    %v460 = vld [vmem:[#allocation5 + $0x860] sm:$0xff]
    %v461 = vld [vmem:[#allocation5 + $0x868] sm:$0xff]
    %v462 = vld [vmem:[#allocation5 + $0x870] sm:$0xff]
    %v463 = vld [vmem:[#allocation5 + $0x878] sm:$0xff]
    %v464 = vld [vmem:[#allocation5 + $0x880] sm:$0xff]
    %v465 = vld [vmem:[#allocation5 + $0x888] sm:$0xff]
    %v466 = vld [vmem:[#allocation5 + $0x890] sm:$0xff]
    %v467 = vld [vmem:[#allocation5 + $0x898] sm:$0xff]
    %v468 = vld [vmem:[#allocation5 + $0x8a0] sm:$0xff]
    %v469 = vld [vmem:[#allocation5 + $0x8a8] sm:$0xff]
    %v470 = vld [vmem:[#allocation5 + $0x8b0] sm:$0xff]
    %v471 = vld [vmem:[#allocation5 + $0x8b8] sm:$0xff]
    %v472 = vld [vmem:[#allocation5 + $0x8c0] sm:$0xff]
    %v473 = vld [vmem:[#allocation5 + $0x8c8] sm:$0xff]
    %v474 = vld [vmem:[#allocation5 + $0x8d0] sm:$0xff]
    %v475 = vld [vmem:[#allocation5 + $0x8d8] sm:$0xff]
    %v476 = vld [vmem:[#allocation5 + $0x8e0] sm:$0xff]
    %v477 = vld [vmem:[#allocation5 + $0x8e8] sm:$0xff]
    %v478 = vld [vmem:[#allocation5 + $0x8f0] sm:$0xff]
    %v479 = vld [vmem:[#allocation5 + $0x8f8] sm:$0xff]
    %v480 = vld [vmem:[#allocation5 + $0x900] sm:$0xff]
    %v481 = vld [vmem:[#allocation5 + $0x908] sm:$0xff]
    %v482 = vld [vmem:[#allocation5 + $0x910] sm:$0xff]
    %v483 = vld [vmem:[#allocation5 + $0x918] sm:$0xff]
    %v484 = vld [vmem:[#allocation5 + $0x920] sm:$0xff]
    %v485 = vld [vmem:[#allocation5 + $0x928] sm:$0xff]
    %v486 = vld [vmem:[#allocation5 + $0x930] sm:$0xff]
    %v487 = vld [vmem:[#allocation5 + $0x938] sm:$0xff]
    %v488 = vld [vmem:[#allocation5 + $0x940] sm:$0xff]
    %v489 = vld [vmem:[#allocation5 + $0x948] sm:$0xff]
    %v490 = vld [vmem:[#allocation5 + $0x950] sm:$0xff]
    %v491 = vld [vmem:[#allocation5 + $0x958] sm:$0xff]
    %v492 = vld [vmem:[#allocation5 + $0x960] sm:$0xff]
    %v493 = vld [vmem:[#allocation5 + $0x968] sm:$0xff]
    %v494 = vld [vmem:[#allocation5 + $0x970] sm:$0xff]
    %v495 = vld [vmem:[#allocation5 + $0x978] sm:$0xff]
    %v496 = vld [vmem:[#allocation5 + $0x980] sm:$0xff]
    %v497 = vld [vmem:[#allocation5 + $0x988] sm:$0xff]
    %v498 = vld [vmem:[#allocation5 + $0x990] sm:$0xff]
    %v499 = vld [vmem:[#allocation5 + $0x998] sm:$0xff]
    %v500 = vld [vmem:[#allocation5 + $0x9a0] sm:$0xff]
    %v501 = vld [vmem:[#allocation5 + $0x9a8] sm:$0xff]
    %v502 = vld [vmem:[#allocation5 + $0x9b0] sm:$0xff]
    %v503 = vld [vmem:[#allocation5 + $0x9b8] sm:$0xff]
    %v504 = vld [vmem:[#allocation5 + $0x9c0] sm:$0xff]
    %v505 = vld [vmem:[#allocation5 + $0x9c8] sm:$0xff]
    %v506 = vld [vmem:[#allocation5 + $0x9d0] sm:$0xff]
    %v507 = vld [vmem:[#allocation5 + $0x9d8] sm:$0xff]
    %v508 = vld [vmem:[#allocation5 + $0x9e0] sm:$0xff]
    %v509 = vld [vmem:[#allocation5 + $0x9e8] sm:$0xff]
    %v510 = vld [vmem:[#allocation5 + $0x9f0] sm:$0xff]
    %v511 = vld [vmem:[#allocation5 + $0x9f8] sm:$0xff]
    %v512 = vld [vmem:[#allocation5 + $0xa00] sm:$0xff]
    %v513 = vld [vmem:[#allocation5 + $0xa08] sm:$0xff]
    %v514 = vld [vmem:[#allocation5 + $0xa10] sm:$0xff]
    %v515 = vld [vmem:[#allocation5 + $0xa18] sm:$0xff]
    %v516 = vld [vmem:[#allocation5 + $0xa20] sm:$0xff]
    %v517 = vld [vmem:[#allocation5 + $0xa28] sm:$0xff]
    %v518 = vld [vmem:[#allocation5 + $0xa30] sm:$0xff]
    %v519 = vld [vmem:[#allocation5 + $0xa38] sm:$0xff]
    %v520 = vld [vmem:[#allocation5 + $0xa40] sm:$0xff]
    %v521 = vld [vmem:[#allocation5 + $0xa48] sm:$0xff]
    %v522 = vld [vmem:[#allocation5 + $0xa50] sm:$0xff]
    %v523 = vld [vmem:[#allocation5 + $0xa58] sm:$0xff]
    %v524 = vld [vmem:[#allocation5 + $0xa60] sm:$0xff]
    %v525 = vld [vmem:[#allocation5 + $0xa68] sm:$0xff]
    %v526 = vld [vmem:[#allocation5 + $0xa70] sm:$0xff]
    %v527 = vld [vmem:[#allocation5 + $0xa78] sm:$0xff]
    %v528 = vld [vmem:[#allocation5 + $0xa80] sm:$0xff]
    %v529 = vld [vmem:[#allocation5 + $0xa88] sm:$0xff]
    %v530 = vld [vmem:[#allocation5 + $0xa90] sm:$0xff]
    %v531 = vld [vmem:[#allocation5 + $0xa98] sm:$0xff]
    %v532 = vld [vmem:[#allocation5 + $0xaa0] sm:$0xff]
    %v533 = vld [vmem:[#allocation5 + $0xaa8] sm:$0xff]
    %v534 = vld [vmem:[#allocation5 + $0xab0] sm:$0xff]
    %v535 = vld [vmem:[#allocation5 + $0xab8] sm:$0xff]
    %v536 = vld [vmem:[#allocation5 + $0xac0] sm:$0xff]
    %v537 = vld [vmem:[#allocation5 + $0xac8] sm:$0xff]
    %v538 = vld [vmem:[#allocation5 + $0xad0] sm:$0xff]
    %v539 = vld [vmem:[#allocation5 + $0xad8] sm:$0xff]
    %v540 = vld [vmem:[#allocation5 + $0xae0] sm:$0xff]
    %v541 = vld [vmem:[#allocation5 + $0xae8] sm:$0xff]
    %v542 = vld [vmem:[#allocation5 + $0xaf0] sm:$0xff]
    %v543 = vld [vmem:[#allocation5 + $0xaf8] sm:$0xff]
    %v544 = vld [vmem:[#allocation5 + $0xb00] sm:$0xff]
    %v545 = vld [vmem:[#allocation5 + $0xb08] sm:$0xff]
    %v546 = vld [vmem:[#allocation5 + $0xb10] sm:$0xff]
    %v547 = vld [vmem:[#allocation5 + $0xb18] sm:$0xff]
    %v548 = vld [vmem:[#allocation5 + $0xb20] sm:$0xff]
    %v549 = vld [vmem:[#allocation5 + $0xb28] sm:$0xff]
    %v550 = vld [vmem:[#allocation5 + $0xb30] sm:$0xff]
    %v551 = vld [vmem:[#allocation5 + $0xb38] sm:$0xff]
    %v552 = vld [vmem:[#allocation5 + $0xb40] sm:$0xff]
    %v553 = vld [vmem:[#allocation5 + $0xb48] sm:$0xff]
    %v554 = vld [vmem:[#allocation5 + $0xb50] sm:$0xff]
    %v555 = vld [vmem:[#allocation5 + $0xb58] sm:$0xff]
    %v556 = vld [vmem:[#allocation5 + $0xb60] sm:$0xff]
    %v557 = vld [vmem:[#allocation5 + $0xb68] sm:$0xff]
    %v558 = vld [vmem:[#allocation5 + $0xb70] sm:$0xff]
    %v559 = vld [vmem:[#allocation5 + $0xb78] sm:$0xff]
    %v560 = vld [vmem:[#allocation5 + $0xb80] sm:$0xff]
    %v561 = vld [vmem:[#allocation5 + $0xb88] sm:$0xff]
    %v562 = vld [vmem:[#allocation5 + $0xb90] sm:$0xff]
    %v563 = vld [vmem:[#allocation5 + $0xb98] sm:$0xff]
    %v564 = vld [vmem:[#allocation5 + $0xba0] sm:$0xff]
    %v565 = vld [vmem:[#allocation5 + $0xba8] sm:$0xff]
    %v566 = vld [vmem:[#allocation5 + $0xbb0] sm:$0xff]
    %v567 = vld [vmem:[#allocation5 + $0xbb8] sm:$0xff]
    %v568 = vld [vmem:[#allocation5 + $0xbc0] sm:$0xff]
    %v569 = vld [vmem:[#allocation5 + $0xbc8] sm:$0xff]
    %v570 = vld [vmem:[#allocation5 + $0xbd0] sm:$0xff]
    %v571 = vld [vmem:[#allocation5 + $0xbd8] sm:$0xff]
    %v572 = vld [vmem:[#allocation5 + $0xbe0] sm:$0xff]
    %v573 = vld [vmem:[#allocation5 + $0xbe8] sm:$0xff]
    %v574 = vld [vmem:[#allocation5 + $0xbf0] sm:$0xff]
    %v575 = vld [vmem:[#allocation5 + $0xbf8] sm:$0xff]
    %v576 = vld [vmem:[#allocation5 + $0xc00] sm:$0xff]
    %v577 = vld [vmem:[#allocation5 + $0xc08] sm:$0xff]
    %v578 = vld [vmem:[#allocation5 + $0xc10] sm:$0xff]
    %v579 = vld [vmem:[#allocation5 + $0xc18] sm:$0xff]
    %v580 = vld [vmem:[#allocation5 + $0xc20] sm:$0xff]
    %v581 = vld [vmem:[#allocation5 + $0xc28] sm:$0xff]
    %v582 = vld [vmem:[#allocation5 + $0xc30] sm:$0xff]
    %v583 = vld [vmem:[#allocation5 + $0xc38] sm:$0xff]
    %v584 = vld [vmem:[#allocation5 + $0xc40] sm:$0xff]
    %v585 = vld [vmem:[#allocation5 + $0xc48] sm:$0xff]
    %v586 = vld [vmem:[#allocation5 + $0xc50] sm:$0xff]
    %v587 = vld [vmem:[#allocation5 + $0xc58] sm:$0xff]
    %v588 = vld [vmem:[#allocation5 + $0xc60] sm:$0xff]
    %v589 = vld [vmem:[#allocation5 + $0xc68] sm:$0xff]
    %v590 = vld [vmem:[#allocation5 + $0xc70] sm:$0xff]
    %v591 = vld [vmem:[#allocation5 + $0xc78] sm:$0xff]
    %v592 = vld [vmem:[#allocation5 + $0xc80] sm:$0xff]
    %v593 = vld [vmem:[#allocation5 + $0xc88] sm:$0xff]
    %v594 = vld [vmem:[#allocation5 + $0xc90] sm:$0xff]
    %v595 = vld [vmem:[#allocation5 + $0xc98] sm:$0xff]
    %v596 = vld [vmem:[#allocation5 + $0xca0] sm:$0xff]
    %v597 = vld [vmem:[#allocation5 + $0xca8] sm:$0xff]
    %v598 = vld [vmem:[#allocation5 + $0xcb0] sm:$0xff]
    %v599 = vld [vmem:[#allocation5 + $0xcb8] sm:$0xff]
    %v600 = vld [vmem:[#allocation5 + $0xcc0] sm:$0xff]
    %v601 = vld [vmem:[#allocation5 + $0xcc8] sm:$0xff]
    %v602 = vld [vmem:[#allocation5 + $0xcd0] sm:$0xff]
    %v603 = vld [vmem:[#allocation5 + $0xcd8] sm:$0xff]
    %v604 = vld [vmem:[#allocation5 + $0xce0] sm:$0xff]
    %v605 = vld [vmem:[#allocation5 + $0xce8] sm:$0xff]
    %v606 = vld [vmem:[#allocation5 + $0xcf0] sm:$0xff]
    %v607 = vld [vmem:[#allocation5 + $0xcf8] sm:$0xff]
    %v608 = vld [vmem:[#allocation5 + $0xd00] sm:$0xff]
    %v609 = vld [vmem:[#allocation5 + $0xd08] sm:$0xff]
    %v610 = vld [vmem:[#allocation5 + $0xd10] sm:$0xff]
    %v611 = vld [vmem:[#allocation5 + $0xd18] sm:$0xff]
    %v612 = vld [vmem:[#allocation5 + $0xd20] sm:$0xff]
    %v613 = vld [vmem:[#allocation5 + $0xd28] sm:$0xff]
    %v614 = vld [vmem:[#allocation5 + $0xd30] sm:$0xff]
    %v615 = vld [vmem:[#allocation5 + $0xd38] sm:$0xff]
    %v616 = vld [vmem:[#allocation5 + $0xd40] sm:$0xff]
    %v617 = vld [vmem:[#allocation5 + $0xd48] sm:$0xff]
    %v618 = vld [vmem:[#allocation5 + $0xd50] sm:$0xff]
    %v619 = vld [vmem:[#allocation5 + $0xd58] sm:$0xff]
    %v620 = vld [vmem:[#allocation5 + $0xd60] sm:$0xff]
    %v621 = vld [vmem:[#allocation5 + $0xd68] sm:$0xff]
    %v622 = vld [vmem:[#allocation5 + $0xd70] sm:$0xff]
    %v623 = vld [vmem:[#allocation5 + $0xd78] sm:$0xff]
    %v624 = vld [vmem:[#allocation5 + $0xd80] sm:$0xff]
    %v625 = vld [vmem:[#allocation5 + $0xd88] sm:$0xff]
    %v626 = vld [vmem:[#allocation5 + $0xd90] sm:$0xff]
    %v627 = vld [vmem:[#allocation5 + $0xd98] sm:$0xff]
    %v628 = vld [vmem:[#allocation5 + $0xda0] sm:$0xff]
    %v629 = vld [vmem:[#allocation5 + $0xda8] sm:$0xff]
    %v630 = vld [vmem:[#allocation5 + $0xdb0] sm:$0xff]
    %v631 = vld [vmem:[#allocation5 + $0xdb8] sm:$0xff]
    %v632 = vld [vmem:[#allocation5 + $0xdc0] sm:$0xff]
    %v633 = vld [vmem:[#allocation5 + $0xdc8] sm:$0xff]
    %v634 = vld [vmem:[#allocation5 + $0xdd0] sm:$0xff]
    %v635 = vld [vmem:[#allocation5 + $0xdd8] sm:$0xff]
    %v636 = vld [vmem:[#allocation5 + $0xde0] sm:$0xff]
    %v637 = vld [vmem:[#allocation5 + $0xde8] sm:$0xff]
    %v638 = vld [vmem:[#allocation5 + $0xdf0] sm:$0xff]
    %v639 = vld [vmem:[#allocation5 + $0xdf8] sm:$0xff]
    %v640 = vld [vmem:[#allocation5 + $0xe00] sm:$0xff]
    %v641 = vld [vmem:[#allocation5 + $0xe08] sm:$0xff]
    %v642 = vld [vmem:[#allocation5 + $0xe10] sm:$0xff]
    %v643 = vld [vmem:[#allocation5 + $0xe18] sm:$0xff]
    %v644 = vld [vmem:[#allocation5 + $0xe20] sm:$0xff]
    %v645 = vld [vmem:[#allocation5 + $0xe28] sm:$0xff]
    %v646 = vld [vmem:[#allocation5 + $0xe30] sm:$0xff]
    %v647 = vld [vmem:[#allocation5 + $0xe38] sm:$0xff]
    %v648 = vld [vmem:[#allocation5 + $0xe40] sm:$0xff]
    %v649 = vld [vmem:[#allocation5 + $0xe48] sm:$0xff]
    %v650 = vld [vmem:[#allocation5 + $0xe50] sm:$0xff]
    %v651 = vld [vmem:[#allocation5 + $0xe58] sm:$0xff]
    %v652 = vld [vmem:[#allocation5 + $0xe60] sm:$0xff]
    %v653 = vld [vmem:[#allocation5 + $0xe68] sm:$0xff]
    %v654 = vld [vmem:[#allocation5 + $0xe70] sm:$0xff]
    %v655 = vld [vmem:[#allocation5 + $0xe78] sm:$0xff]
    %v656 = vld [vmem:[#allocation5 + $0xe80] sm:$0xff]
    %v657 = vld [vmem:[#allocation5 + $0xe88] sm:$0xff]
    %v658 = vld [vmem:[#allocation5 + $0xe90] sm:$0xff]
    %v659 = vld [vmem:[#allocation5 + $0xe98] sm:$0xff]
    %v660 = vld [vmem:[#allocation5 + $0xea0] sm:$0xff]
    %v661 = vld [vmem:[#allocation5 + $0xea8] sm:$0xff]
    %v662 = vld [vmem:[#allocation5 + $0xeb0] sm:$0xff]
    %v663 = vld [vmem:[#allocation5 + $0xeb8] sm:$0xff]
    %v664 = vld [vmem:[#allocation5 + $0xec0] sm:$0xff]
    %v665 = vld [vmem:[#allocation5 + $0xec8] sm:$0xff]
    %v666 = vld [vmem:[#allocation5 + $0xed0] sm:$0xff]
    %v667 = vld [vmem:[#allocation5 + $0xed8] sm:$0xff]
    %v668 = vld [vmem:[#allocation5 + $0xee0] sm:$0xff]
    %v669 = vld [vmem:[#allocation5 + $0xee8] sm:$0xff]
    %v670 = vld [vmem:[#allocation5 + $0xef0] sm:$0xff]
    %v671 = vld [vmem:[#allocation5 + $0xef8] sm:$0xff]
    %v672 = vld [vmem:[#allocation5 + $0xf00] sm:$0xff]
    %v673 = vld [vmem:[#allocation5 + $0xf08] sm:$0xff]
    %v674 = vld [vmem:[#allocation5 + $0xf10] sm:$0xff]
    %v675 = vld [vmem:[#allocation5 + $0xf18] sm:$0xff]
    %v676 = vld [vmem:[#allocation5 + $0xf20] sm:$0xff]
    %v677 = vld [vmem:[#allocation5 + $0xf28] sm:$0xff]
    %v678 = vld [vmem:[#allocation5 + $0xf30] sm:$0xff]
    %v679 = vld [vmem:[#allocation5 + $0xf38] sm:$0xff]
    %v680 = vld [vmem:[#allocation5 + $0xf40] sm:$0xff]
    %v681 = vld [vmem:[#allocation5 + $0xf48] sm:$0xff]
    %v682 = vld [vmem:[#allocation5 + $0xf50] sm:$0xff]
    %v683 = vld [vmem:[#allocation5 + $0xf58] sm:$0xff]
    %v684 = vld [vmem:[#allocation5 + $0xf60] sm:$0xff]
    %v685 = vld [vmem:[#allocation5 + $0xf68] sm:$0xff]
    %v686 = vld [vmem:[#allocation5 + $0xf70] sm:$0xff]
    %v687 = vld [vmem:[#allocation5 + $0xf78] sm:$0xff]
    %v688 = vld [vmem:[#allocation5 + $0xf80] sm:$0xff]
    %v689 = vld [vmem:[#allocation5 + $0xf88] sm:$0xff]
    %v690 = vld [vmem:[#allocation5 + $0xf90] sm:$0xff]
    %v691 = vld [vmem:[#allocation5 + $0xf98] sm:$0xff]
    %v692 = vld [vmem:[#allocation5 + $0xfa0] sm:$0xff]
    %v693 = vld [vmem:[#allocation5 + $0xfa8] sm:$0xff]
    %v694 = vld [vmem:[#allocation5 + $0xfb0] sm:$0xff]
    %v695 = vld [vmem:[#allocation5 + $0xfb8] sm:$0xff]
    %v696 = vld [vmem:[#allocation5 + $0xfc0] sm:$0xff]
    %v697 = vld [vmem:[#allocation5 + $0xfc8] sm:$0xff]
    %v698 = vld [vmem:[#allocation5 + $0xfd0] sm:$0xff]
    %v699 = vld [vmem:[#allocation5 + $0xfd8] sm:$0xff]
    %v700 = vld [vmem:[#allocation5 + $0xfe0] sm:$0xff]
    %v701 = vld [vmem:[#allocation5 + $0xfe8] sm:$0xff]
    %v702 = vld [vmem:[#allocation5 + $0xff0] sm:$0xff]
    %v703 = vld [vmem:[#allocation5 + $0xff8] sm:$0xff]
    %v704 = vld [vmem:[#allocation7] sm:$0xff]
    %v706 = vperm.slane %v704, 0
    %v707 = vperm.slane %v704, 1
    %v708 = vperm.slane %v704, 2
    %v709 = vperm.slane %v704, 3
    %v710 = vperm.slane %v704, 4
    %v711 = vperm.slane %v704, 5
    %v712 = vperm.slane %v704, 6
    %v713 = vperm.slane %v704, 7
    %v730 = vunpack.c.l.b16 %v184
    %v731 = vunpack.c.h.b16 %v184
    %v732 = vunpack.c.l.b16 %v185
    %v733 = vunpack.c.h.b16 %v185
    %v734 = vunpack.c.l.b16 %v186
    %v735 = vunpack.c.h.b16 %v186
    %v736 = vunpack.c.l.b16 %v187
    %v737 = vunpack.c.h.b16 %v187
    %v738 = vunpack.c.l.b16 %v188
    %v739 = vunpack.c.h.b16 %v188
    %v740 = vunpack.c.l.b16 %v189
    %v741 = vunpack.c.h.b16 %v189
    %v742 = vunpack.c.l.b16 %v190
    %v743 = vunpack.c.h.b16 %v190
    %v744 = vunpack.c.l.b16 %v191
    %v745 = vunpack.c.h.b16 %v191
    %v746 = vpack.c.b16 %v738, %v730
    %v747 = vpack.c.b16 %v739, %v731
    %v748 = vpack.c.b16 %v740, %v732
    %v749 = vpack.c.b16 %v741, %v733
    %v750 = vpack.c.b16 %v742, %v734
    %v751 = vpack.c.b16 %v743, %v735
    %v752 = vpack.c.b16 %v744, %v736
    %v753 = vpack.c.b16 %v745, %v737
    %v1274 = vunpack.c.l.b16 %v192
    %v1275 = vunpack.c.h.b16 %v192
    %v1276 = vunpack.c.l.b16 %v193
    %v1277 = vunpack.c.h.b16 %v193
    %v1278 = vunpack.c.l.b16 %v194
    %v1279 = vunpack.c.h.b16 %v194
    %v1280 = vunpack.c.l.b16 %v195
    %v1281 = vunpack.c.h.b16 %v195
    %v1282 = vunpack.c.l.b16 %v196
    %v1283 = vunpack.c.h.b16 %v196
    %v1284 = vunpack.c.l.b16 %v197
    %v1285 = vunpack.c.h.b16 %v197
    %v1286 = vunpack.c.l.b16 %v198
    %v1287 = vunpack.c.h.b16 %v198
    %v1288 = vunpack.c.l.b16 %v199
    %v1289 = vunpack.c.h.b16 %v199
    %v1290 = vunpack.c.l.b16 %v200
    %v1291 = vunpack.c.h.b16 %v200
    %v1292 = vunpack.c.l.b16 %v201
    %v1293 = vunpack.c.h.b16 %v201
    %v1294 = vunpack.c.l.b16 %v202
    %v1295 = vunpack.c.h.b16 %v202
    %v1296 = vunpack.c.l.b16 %v203
    %v1297 = vunpack.c.h.b16 %v203
    %v1298 = vunpack.c.l.b16 %v204
    %v1299 = vunpack.c.h.b16 %v204
    %v1300 = vunpack.c.l.b16 %v205
    %v1301 = vunpack.c.h.b16 %v205
    %v1302 = vunpack.c.l.b16 %v206
    %v1303 = vunpack.c.h.b16 %v206
    %v1304 = vunpack.c.l.b16 %v207
    %v1305 = vunpack.c.h.b16 %v207
    %v1306 = vunpack.c.l.b16 %v208
    %v1307 = vunpack.c.h.b16 %v208
    %v1308 = vunpack.c.l.b16 %v209
    %v1309 = vunpack.c.h.b16 %v209
    %v1310 = vunpack.c.l.b16 %v210
    %v1311 = vunpack.c.h.b16 %v210
    %v1312 = vunpack.c.l.b16 %v211
    %v1313 = vunpack.c.h.b16 %v211
    %v1314 = vunpack.c.l.b16 %v212
    %v1315 = vunpack.c.h.b16 %v212
    %v1316 = vunpack.c.l.b16 %v213
    %v1317 = vunpack.c.h.b16 %v213
    %v1318 = vunpack.c.l.b16 %v214
    %v1319 = vunpack.c.h.b16 %v214
    %v1320 = vunpack.c.l.b16 %v215
    %v1321 = vunpack.c.h.b16 %v215
    %v1322 = vunpack.c.l.b16 %v216
    %v1323 = vunpack.c.h.b16 %v216
    %v1324 = vunpack.c.l.b16 %v217
    %v1325 = vunpack.c.h.b16 %v217
    %v1326 = vunpack.c.l.b16 %v218
    %v1327 = vunpack.c.h.b16 %v218
    %v1328 = vunpack.c.l.b16 %v219
    %v1329 = vunpack.c.h.b16 %v219
    %v1330 = vunpack.c.l.b16 %v220
    %v1331 = vunpack.c.h.b16 %v220
    %v1332 = vunpack.c.l.b16 %v221
    %v1333 = vunpack.c.h.b16 %v221
    %v1334 = vunpack.c.l.b16 %v222
    %v1335 = vunpack.c.h.b16 %v222
    %v1336 = vunpack.c.l.b16 %v223
    %v1337 = vunpack.c.h.b16 %v223
    %v1338 = vunpack.c.l.b16 %v224
    %v1339 = vunpack.c.h.b16 %v224
    %v1340 = vunpack.c.l.b16 %v225
    %v1341 = vunpack.c.h.b16 %v225
    %v1342 = vunpack.c.l.b16 %v226
    %v1343 = vunpack.c.h.b16 %v226
    %v1344 = vunpack.c.l.b16 %v227
    %v1345 = vunpack.c.h.b16 %v227
    %v1346 = vunpack.c.l.b16 %v228
    %v1347 = vunpack.c.h.b16 %v228
    %v1348 = vunpack.c.l.b16 %v229
    %v1349 = vunpack.c.h.b16 %v229
    %v1350 = vunpack.c.l.b16 %v230
    %v1351 = vunpack.c.h.b16 %v230
    %v1352 = vunpack.c.l.b16 %v231
    %v1353 = vunpack.c.h.b16 %v231
    %v1354 = vunpack.c.l.b16 %v232
    %v1355 = vunpack.c.h.b16 %v232
    %v1356 = vunpack.c.l.b16 %v233
    %v1357 = vunpack.c.h.b16 %v233
    %v1358 = vunpack.c.l.b16 %v234
    %v1359 = vunpack.c.h.b16 %v234
    %v1360 = vunpack.c.l.b16 %v235
    %v1361 = vunpack.c.h.b16 %v235
    %v1362 = vunpack.c.l.b16 %v236
    %v1363 = vunpack.c.h.b16 %v236
    %v1364 = vunpack.c.l.b16 %v237
    %v1365 = vunpack.c.h.b16 %v237
    %v1366 = vunpack.c.l.b16 %v238
    %v1367 = vunpack.c.h.b16 %v238
    %v1368 = vunpack.c.l.b16 %v239
    %v1369 = vunpack.c.h.b16 %v239
    %v1370 = vunpack.c.l.b16 %v240
    %v1371 = vunpack.c.h.b16 %v240
    %v1372 = vunpack.c.l.b16 %v241
    %v1373 = vunpack.c.h.b16 %v241
    %v1374 = vunpack.c.l.b16 %v242
    %v1375 = vunpack.c.h.b16 %v242
    %v1376 = vunpack.c.l.b16 %v243
    %v1377 = vunpack.c.h.b16 %v243
    %v1378 = vunpack.c.l.b16 %v244
    %v1379 = vunpack.c.h.b16 %v244
    %v1380 = vunpack.c.l.b16 %v245
    %v1381 = vunpack.c.h.b16 %v245
    %v1382 = vunpack.c.l.b16 %v246
    %v1383 = vunpack.c.h.b16 %v246
    %v1384 = vunpack.c.l.b16 %v247
    %v1385 = vunpack.c.h.b16 %v247
    %v1386 = vunpack.c.l.b16 %v248
    %v1387 = vunpack.c.h.b16 %v248
    %v1388 = vunpack.c.l.b16 %v249
    %v1389 = vunpack.c.h.b16 %v249
    %v1390 = vunpack.c.l.b16 %v250
    %v1391 = vunpack.c.h.b16 %v250
    %v1392 = vunpack.c.l.b16 %v251
    %v1393 = vunpack.c.h.b16 %v251
    %v1394 = vunpack.c.l.b16 %v252
    %v1395 = vunpack.c.h.b16 %v252
    %v1396 = vunpack.c.l.b16 %v253
    %v1397 = vunpack.c.h.b16 %v253
    %v1398 = vunpack.c.l.b16 %v254
    %v1399 = vunpack.c.h.b16 %v254
    %v1400 = vunpack.c.l.b16 %v255
    %v1401 = vunpack.c.h.b16 %v255
    %v1402 = vunpack.c.l.b16 %v256
    %v1403 = vunpack.c.h.b16 %v256
    %v1404 = vunpack.c.l.b16 %v257
    %v1405 = vunpack.c.h.b16 %v257
    %v1406 = vunpack.c.l.b16 %v258
    %v1407 = vunpack.c.h.b16 %v258
    %v1408 = vunpack.c.l.b16 %v259
    %v1409 = vunpack.c.h.b16 %v259
    %v1410 = vunpack.c.l.b16 %v260
    %v1411 = vunpack.c.h.b16 %v260
    %v1412 = vunpack.c.l.b16 %v261
    %v1413 = vunpack.c.h.b16 %v261
    %v1414 = vunpack.c.l.b16 %v262
    %v1415 = vunpack.c.h.b16 %v262
    %v1416 = vunpack.c.l.b16 %v263
    %v1417 = vunpack.c.h.b16 %v263
    %v1418 = vunpack.c.l.b16 %v264
    %v1419 = vunpack.c.h.b16 %v264
    %v1420 = vunpack.c.l.b16 %v265
    %v1421 = vunpack.c.h.b16 %v265
    %v1422 = vunpack.c.l.b16 %v266
    %v1423 = vunpack.c.h.b16 %v266
    %v1424 = vunpack.c.l.b16 %v267
    %v1425 = vunpack.c.h.b16 %v267
    %v1426 = vunpack.c.l.b16 %v268
    %v1427 = vunpack.c.h.b16 %v268
    %v1428 = vunpack.c.l.b16 %v269
    %v1429 = vunpack.c.h.b16 %v269
    %v1430 = vunpack.c.l.b16 %v270
    %v1431 = vunpack.c.h.b16 %v270
    %v1432 = vunpack.c.l.b16 %v271
    %v1433 = vunpack.c.h.b16 %v271
    %v1434 = vunpack.c.l.b16 %v272
    %v1435 = vunpack.c.h.b16 %v272
    %v1436 = vunpack.c.l.b16 %v273
    %v1437 = vunpack.c.h.b16 %v273
    %v1438 = vunpack.c.l.b16 %v274
    %v1439 = vunpack.c.h.b16 %v274
    %v1440 = vunpack.c.l.b16 %v275
    %v1441 = vunpack.c.h.b16 %v275
    %v1442 = vunpack.c.l.b16 %v276
    %v1443 = vunpack.c.h.b16 %v276
    %v1444 = vunpack.c.l.b16 %v277
    %v1445 = vunpack.c.h.b16 %v277
    %v1446 = vunpack.c.l.b16 %v278
    %v1447 = vunpack.c.h.b16 %v278
    %v1448 = vunpack.c.l.b16 %v279
    %v1449 = vunpack.c.h.b16 %v279
    %v1450 = vunpack.c.l.b16 %v280
    %v1451 = vunpack.c.h.b16 %v280
    %v1452 = vunpack.c.l.b16 %v281
    %v1453 = vunpack.c.h.b16 %v281
    %v1454 = vunpack.c.l.b16 %v282
    %v1455 = vunpack.c.h.b16 %v282
    %v1456 = vunpack.c.l.b16 %v283
    %v1457 = vunpack.c.h.b16 %v283
    %v1458 = vunpack.c.l.b16 %v284
    %v1459 = vunpack.c.h.b16 %v284
    %v1460 = vunpack.c.l.b16 %v285
    %v1461 = vunpack.c.h.b16 %v285
    %v1462 = vunpack.c.l.b16 %v286
    %v1463 = vunpack.c.h.b16 %v286
    %v1464 = vunpack.c.l.b16 %v287
    %v1465 = vunpack.c.h.b16 %v287
    %v1466 = vunpack.c.l.b16 %v288
    %v1467 = vunpack.c.h.b16 %v288
    %v1468 = vunpack.c.l.b16 %v289
    %v1469 = vunpack.c.h.b16 %v289
    %v1470 = vunpack.c.l.b16 %v290
    %v1471 = vunpack.c.h.b16 %v290
    %v1472 = vunpack.c.l.b16 %v291
    %v1473 = vunpack.c.h.b16 %v291
    %v1474 = vunpack.c.l.b16 %v292
    %v1475 = vunpack.c.h.b16 %v292
    %v1476 = vunpack.c.l.b16 %v293
    %v1477 = vunpack.c.h.b16 %v293
    %v1478 = vunpack.c.l.b16 %v294
    %v1479 = vunpack.c.h.b16 %v294
    %v1480 = vunpack.c.l.b16 %v295
    %v1481 = vunpack.c.h.b16 %v295
    %v1482 = vunpack.c.l.b16 %v296
    %v1483 = vunpack.c.h.b16 %v296
    %v1484 = vunpack.c.l.b16 %v297
    %v1485 = vunpack.c.h.b16 %v297
    %v1486 = vunpack.c.l.b16 %v298
    %v1487 = vunpack.c.h.b16 %v298
    %v1488 = vunpack.c.l.b16 %v299
    %v1489 = vunpack.c.h.b16 %v299
    %v1490 = vunpack.c.l.b16 %v300
    %v1491 = vunpack.c.h.b16 %v300
    %v1492 = vunpack.c.l.b16 %v301
    %v1493 = vunpack.c.h.b16 %v301
    %v1494 = vunpack.c.l.b16 %v302
    %v1495 = vunpack.c.h.b16 %v302
    %v1496 = vunpack.c.l.b16 %v303
    %v1497 = vunpack.c.h.b16 %v303
    %v1498 = vunpack.c.l.b16 %v304
    %v1499 = vunpack.c.h.b16 %v304
    %v1500 = vunpack.c.l.b16 %v305
    %v1501 = vunpack.c.h.b16 %v305
    %v1502 = vunpack.c.l.b16 %v306
    %v1503 = vunpack.c.h.b16 %v306
    %v1504 = vunpack.c.l.b16 %v307
    %v1505 = vunpack.c.h.b16 %v307
    %v1506 = vunpack.c.l.b16 %v308
    %v1507 = vunpack.c.h.b16 %v308
    %v1508 = vunpack.c.l.b16 %v309
    %v1509 = vunpack.c.h.b16 %v309
    %v1510 = vunpack.c.l.b16 %v310
    %v1511 = vunpack.c.h.b16 %v310
    %v1512 = vunpack.c.l.b16 %v311
    %v1513 = vunpack.c.h.b16 %v311
    %v1514 = vunpack.c.l.b16 %v312
    %v1515 = vunpack.c.h.b16 %v312
    %v1516 = vunpack.c.l.b16 %v313
    %v1517 = vunpack.c.h.b16 %v313
    %v1518 = vunpack.c.l.b16 %v314
    %v1519 = vunpack.c.h.b16 %v314
    %v1520 = vunpack.c.l.b16 %v315
    %v1521 = vunpack.c.h.b16 %v315
    %v1522 = vunpack.c.l.b16 %v316
    %v1523 = vunpack.c.h.b16 %v316
    %v1524 = vunpack.c.l.b16 %v317
    %v1525 = vunpack.c.h.b16 %v317
    %v1526 = vunpack.c.l.b16 %v318
    %v1527 = vunpack.c.h.b16 %v318
    %v1528 = vunpack.c.l.b16 %v319
    %v1529 = vunpack.c.h.b16 %v319
    %v1530 = vunpack.c.l.b16 %v320
    %v1531 = vunpack.c.h.b16 %v320
    %v1532 = vunpack.c.l.b16 %v321
    %v1533 = vunpack.c.h.b16 %v321
    %v1534 = vunpack.c.l.b16 %v322
    %v1535 = vunpack.c.h.b16 %v322
    %v1536 = vunpack.c.l.b16 %v323
    %v1537 = vunpack.c.h.b16 %v323
    %v1538 = vunpack.c.l.b16 %v324
    %v1539 = vunpack.c.h.b16 %v324
    %v1540 = vunpack.c.l.b16 %v325
    %v1541 = vunpack.c.h.b16 %v325
    %v1542 = vunpack.c.l.b16 %v326
    %v1543 = vunpack.c.h.b16 %v326
    %v1544 = vunpack.c.l.b16 %v327
    %v1545 = vunpack.c.h.b16 %v327
    %v1546 = vunpack.c.l.b16 %v328
    %v1547 = vunpack.c.h.b16 %v328
    %v1548 = vunpack.c.l.b16 %v329
    %v1549 = vunpack.c.h.b16 %v329
    %v1550 = vunpack.c.l.b16 %v330
    %v1551 = vunpack.c.h.b16 %v330
    %v1552 = vunpack.c.l.b16 %v331
    %v1553 = vunpack.c.h.b16 %v331
    %v1554 = vunpack.c.l.b16 %v332
    %v1555 = vunpack.c.h.b16 %v332
    %v1556 = vunpack.c.l.b16 %v333
    %v1557 = vunpack.c.h.b16 %v333
    %v1558 = vunpack.c.l.b16 %v334
    %v1559 = vunpack.c.h.b16 %v334
    %v1560 = vunpack.c.l.b16 %v335
    %v1561 = vunpack.c.h.b16 %v335
    %v1562 = vunpack.c.l.b16 %v336
    %v1563 = vunpack.c.h.b16 %v336
    %v1564 = vunpack.c.l.b16 %v337
    %v1565 = vunpack.c.h.b16 %v337
    %v1566 = vunpack.c.l.b16 %v338
    %v1567 = vunpack.c.h.b16 %v338
    %v1568 = vunpack.c.l.b16 %v339
    %v1569 = vunpack.c.h.b16 %v339
    %v1570 = vunpack.c.l.b16 %v340
    %v1571 = vunpack.c.h.b16 %v340
    %v1572 = vunpack.c.l.b16 %v341
    %v1573 = vunpack.c.h.b16 %v341
    %v1574 = vunpack.c.l.b16 %v342
    %v1575 = vunpack.c.h.b16 %v342
    %v1576 = vunpack.c.l.b16 %v343
    %v1577 = vunpack.c.h.b16 %v343
    %v1578 = vunpack.c.l.b16 %v344
    %v1579 = vunpack.c.h.b16 %v344
    %v1580 = vunpack.c.l.b16 %v345
    %v1581 = vunpack.c.h.b16 %v345
    %v1582 = vunpack.c.l.b16 %v346
    %v1583 = vunpack.c.h.b16 %v346
    %v1584 = vunpack.c.l.b16 %v347
    %v1585 = vunpack.c.h.b16 %v347
    %v1586 = vunpack.c.l.b16 %v348
    %v1587 = vunpack.c.h.b16 %v348
    %v1588 = vunpack.c.l.b16 %v349
    %v1589 = vunpack.c.h.b16 %v349
    %v1590 = vunpack.c.l.b16 %v350
    %v1591 = vunpack.c.h.b16 %v350
    %v1592 = vunpack.c.l.b16 %v351
    %v1593 = vunpack.c.h.b16 %v351
    %v1594 = vunpack.c.l.b16 %v352
    %v1595 = vunpack.c.h.b16 %v352
    %v1596 = vunpack.c.l.b16 %v353
    %v1597 = vunpack.c.h.b16 %v353
    %v1598 = vunpack.c.l.b16 %v354
    %v1599 = vunpack.c.h.b16 %v354
    %v1600 = vunpack.c.l.b16 %v355
    %v1601 = vunpack.c.h.b16 %v355
    %v1602 = vunpack.c.l.b16 %v356
    %v1603 = vunpack.c.h.b16 %v356
    %v1604 = vunpack.c.l.b16 %v357
    %v1605 = vunpack.c.h.b16 %v357
    %v1606 = vunpack.c.l.b16 %v358
    %v1607 = vunpack.c.h.b16 %v358
    %v1608 = vunpack.c.l.b16 %v359
    %v1609 = vunpack.c.h.b16 %v359
    %v1610 = vunpack.c.l.b16 %v360
    %v1611 = vunpack.c.h.b16 %v360
    %v1612 = vunpack.c.l.b16 %v361
    %v1613 = vunpack.c.h.b16 %v361
    %v1614 = vunpack.c.l.b16 %v362
    %v1615 = vunpack.c.h.b16 %v362
    %v1616 = vunpack.c.l.b16 %v363
    %v1617 = vunpack.c.h.b16 %v363
    %v1618 = vunpack.c.l.b16 %v364
    %v1619 = vunpack.c.h.b16 %v364
    %v1620 = vunpack.c.l.b16 %v365
    %v1621 = vunpack.c.h.b16 %v365
    %v1622 = vunpack.c.l.b16 %v366
    %v1623 = vunpack.c.h.b16 %v366
    %v1624 = vunpack.c.l.b16 %v367
    %v1625 = vunpack.c.h.b16 %v367
    %v1626 = vunpack.c.l.b16 %v368
    %v1627 = vunpack.c.h.b16 %v368
    %v1628 = vunpack.c.l.b16 %v369
    %v1629 = vunpack.c.h.b16 %v369
    %v1630 = vunpack.c.l.b16 %v370
    %v1631 = vunpack.c.h.b16 %v370
    %v1632 = vunpack.c.l.b16 %v371
    %v1633 = vunpack.c.h.b16 %v371
    %v1634 = vunpack.c.l.b16 %v372
    %v1635 = vunpack.c.h.b16 %v372
    %v1636 = vunpack.c.l.b16 %v373
    %v1637 = vunpack.c.h.b16 %v373
    %v1638 = vunpack.c.l.b16 %v374
    %v1639 = vunpack.c.h.b16 %v374
    %v1640 = vunpack.c.l.b16 %v375
    %v1641 = vunpack.c.h.b16 %v375
    %v1642 = vunpack.c.l.b16 %v376
    %v1643 = vunpack.c.h.b16 %v376
    %v1644 = vunpack.c.l.b16 %v377
    %v1645 = vunpack.c.h.b16 %v377
    %v1646 = vunpack.c.l.b16 %v378
    %v1647 = vunpack.c.h.b16 %v378
    %v1648 = vunpack.c.l.b16 %v379
    %v1649 = vunpack.c.h.b16 %v379
    %v1650 = vunpack.c.l.b16 %v380
    %v1651 = vunpack.c.h.b16 %v380
    %v1652 = vunpack.c.l.b16 %v381
    %v1653 = vunpack.c.h.b16 %v381
    %v1654 = vunpack.c.l.b16 %v382
    %v1655 = vunpack.c.h.b16 %v382
    %v1656 = vunpack.c.l.b16 %v383
    %v1657 = vunpack.c.h.b16 %v383
    %v1658 = vunpack.c.l.b16 %v384
    %v1659 = vunpack.c.h.b16 %v384
    %v1660 = vunpack.c.l.b16 %v385
    %v1661 = vunpack.c.h.b16 %v385
    %v1662 = vunpack.c.l.b16 %v386
    %v1663 = vunpack.c.h.b16 %v386
    %v1664 = vunpack.c.l.b16 %v387
    %v1665 = vunpack.c.h.b16 %v387
    %v1666 = vunpack.c.l.b16 %v388
    %v1667 = vunpack.c.h.b16 %v388
    %v1668 = vunpack.c.l.b16 %v389
    %v1669 = vunpack.c.h.b16 %v389
    %v1670 = vunpack.c.l.b16 %v390
    %v1671 = vunpack.c.h.b16 %v390
    %v1672 = vunpack.c.l.b16 %v391
    %v1673 = vunpack.c.h.b16 %v391
    %v1674 = vunpack.c.l.b16 %v392
    %v1675 = vunpack.c.h.b16 %v392
    %v1676 = vunpack.c.l.b16 %v393
    %v1677 = vunpack.c.h.b16 %v393
    %v1678 = vunpack.c.l.b16 %v394
    %v1679 = vunpack.c.h.b16 %v394
    %v1680 = vunpack.c.l.b16 %v395
    %v1681 = vunpack.c.h.b16 %v395
    %v1682 = vunpack.c.l.b16 %v396
    %v1683 = vunpack.c.h.b16 %v396
    %v1684 = vunpack.c.l.b16 %v397
    %v1685 = vunpack.c.h.b16 %v397
    %v1686 = vunpack.c.l.b16 %v398
    %v1687 = vunpack.c.h.b16 %v398
    %v1688 = vunpack.c.l.b16 %v399
    %v1689 = vunpack.c.h.b16 %v399
    %v1690 = vunpack.c.l.b16 %v400
    %v1691 = vunpack.c.h.b16 %v400
    %v1692 = vunpack.c.l.b16 %v401
    %v1693 = vunpack.c.h.b16 %v401
    %v1694 = vunpack.c.l.b16 %v402
    %v1695 = vunpack.c.h.b16 %v402
    %v1696 = vunpack.c.l.b16 %v403
    %v1697 = vunpack.c.h.b16 %v403
    %v1698 = vunpack.c.l.b16 %v404
    %v1699 = vunpack.c.h.b16 %v404
    %v1700 = vunpack.c.l.b16 %v405
    %v1701 = vunpack.c.h.b16 %v405
    %v1702 = vunpack.c.l.b16 %v406
    %v1703 = vunpack.c.h.b16 %v406
    %v1704 = vunpack.c.l.b16 %v407
    %v1705 = vunpack.c.h.b16 %v407
    %v1706 = vunpack.c.l.b16 %v408
    %v1707 = vunpack.c.h.b16 %v408
    %v1708 = vunpack.c.l.b16 %v409
    %v1709 = vunpack.c.h.b16 %v409
    %v1710 = vunpack.c.l.b16 %v410
    %v1711 = vunpack.c.h.b16 %v410
    %v1712 = vunpack.c.l.b16 %v411
    %v1713 = vunpack.c.h.b16 %v411
    %v1714 = vunpack.c.l.b16 %v412
    %v1715 = vunpack.c.h.b16 %v412
    %v1716 = vunpack.c.l.b16 %v413
    %v1717 = vunpack.c.h.b16 %v413
    %v1718 = vunpack.c.l.b16 %v414
    %v1719 = vunpack.c.h.b16 %v414
    %v1720 = vunpack.c.l.b16 %v415
    %v1721 = vunpack.c.h.b16 %v415
    %v1722 = vunpack.c.l.b16 %v416
    %v1723 = vunpack.c.h.b16 %v416
    %v1724 = vunpack.c.l.b16 %v417
    %v1725 = vunpack.c.h.b16 %v417
    %v1726 = vunpack.c.l.b16 %v418
    %v1727 = vunpack.c.h.b16 %v418
    %v1728 = vunpack.c.l.b16 %v419
    %v1729 = vunpack.c.h.b16 %v419
    %v1730 = vunpack.c.l.b16 %v420
    %v1731 = vunpack.c.h.b16 %v420
    %v1732 = vunpack.c.l.b16 %v421
    %v1733 = vunpack.c.h.b16 %v421
    %v1734 = vunpack.c.l.b16 %v422
    %v1735 = vunpack.c.h.b16 %v422
    %v1736 = vunpack.c.l.b16 %v423
    %v1737 = vunpack.c.h.b16 %v423
    %v1738 = vunpack.c.l.b16 %v424
    %v1739 = vunpack.c.h.b16 %v424
    %v1740 = vunpack.c.l.b16 %v425
    %v1741 = vunpack.c.h.b16 %v425
    %v1742 = vunpack.c.l.b16 %v426
    %v1743 = vunpack.c.h.b16 %v426
    %v1744 = vunpack.c.l.b16 %v427
    %v1745 = vunpack.c.h.b16 %v427
    %v1746 = vunpack.c.l.b16 %v428
    %v1747 = vunpack.c.h.b16 %v428
    %v1748 = vunpack.c.l.b16 %v429
    %v1749 = vunpack.c.h.b16 %v429
    %v1750 = vunpack.c.l.b16 %v430
    %v1751 = vunpack.c.h.b16 %v430
    %v1752 = vunpack.c.l.b16 %v431
    %v1753 = vunpack.c.h.b16 %v431
    %v1754 = vunpack.c.l.b16 %v432
    %v1755 = vunpack.c.h.b16 %v432
    %v1756 = vunpack.c.l.b16 %v433
    %v1757 = vunpack.c.h.b16 %v433
    %v1758 = vunpack.c.l.b16 %v434
    %v1759 = vunpack.c.h.b16 %v434
    %v1760 = vunpack.c.l.b16 %v435
    %v1761 = vunpack.c.h.b16 %v435
    %v1762 = vunpack.c.l.b16 %v436
    %v1763 = vunpack.c.h.b16 %v436
    %v1764 = vunpack.c.l.b16 %v437
    %v1765 = vunpack.c.h.b16 %v437
    %v1766 = vunpack.c.l.b16 %v438
    %v1767 = vunpack.c.h.b16 %v438
    %v1768 = vunpack.c.l.b16 %v439
    %v1769 = vunpack.c.h.b16 %v439
    %v1770 = vunpack.c.l.b16 %v440
    %v1771 = vunpack.c.h.b16 %v440
    %v1772 = vunpack.c.l.b16 %v441
    %v1773 = vunpack.c.h.b16 %v441
    %v1774 = vunpack.c.l.b16 %v442
    %v1775 = vunpack.c.h.b16 %v442
    %v1776 = vunpack.c.l.b16 %v443
    %v1777 = vunpack.c.h.b16 %v443
    %v1778 = vunpack.c.l.b16 %v444
    %v1779 = vunpack.c.h.b16 %v444
    %v1780 = vunpack.c.l.b16 %v445
    %v1781 = vunpack.c.h.b16 %v445
    %v1782 = vunpack.c.l.b16 %v446
    %v1783 = vunpack.c.h.b16 %v446
    %v1784 = vunpack.c.l.b16 %v447
    %v1785 = vunpack.c.h.b16 %v447
    %v1786 = vunpack.c.l.b16 %v448
    %v1787 = vunpack.c.h.b16 %v448
    %v1788 = vunpack.c.l.b16 %v449
    %v1789 = vunpack.c.h.b16 %v449
    %v1790 = vunpack.c.l.b16 %v450
    %v1791 = vunpack.c.h.b16 %v450
    %v1792 = vunpack.c.l.b16 %v451
    %v1793 = vunpack.c.h.b16 %v451
    %v1794 = vunpack.c.l.b16 %v452
    %v1795 = vunpack.c.h.b16 %v452
    %v1796 = vunpack.c.l.b16 %v453
    %v1797 = vunpack.c.h.b16 %v453
    %v1798 = vunpack.c.l.b16 %v454
    %v1799 = vunpack.c.h.b16 %v454
    %v1800 = vunpack.c.l.b16 %v455
    %v1801 = vunpack.c.h.b16 %v455
    %v1802 = vunpack.c.l.b16 %v456
    %v1803 = vunpack.c.h.b16 %v456
    %v1804 = vunpack.c.l.b16 %v457
    %v1805 = vunpack.c.h.b16 %v457
    %v1806 = vunpack.c.l.b16 %v458
    %v1807 = vunpack.c.h.b16 %v458
    %v1808 = vunpack.c.l.b16 %v459
    %v1809 = vunpack.c.h.b16 %v459
    %v1810 = vunpack.c.l.b16 %v460
    %v1811 = vunpack.c.h.b16 %v460
    %v1812 = vunpack.c.l.b16 %v461
    %v1813 = vunpack.c.h.b16 %v461
    %v1814 = vunpack.c.l.b16 %v462
    %v1815 = vunpack.c.h.b16 %v462
    %v1816 = vunpack.c.l.b16 %v463
    %v1817 = vunpack.c.h.b16 %v463
    %v1818 = vunpack.c.l.b16 %v464
    %v1819 = vunpack.c.h.b16 %v464
    %v1820 = vunpack.c.l.b16 %v465
    %v1821 = vunpack.c.h.b16 %v465
    %v1822 = vunpack.c.l.b16 %v466
    %v1823 = vunpack.c.h.b16 %v466
    %v1824 = vunpack.c.l.b16 %v467
    %v1825 = vunpack.c.h.b16 %v467
    %v1826 = vunpack.c.l.b16 %v468
    %v1827 = vunpack.c.h.b16 %v468
    %v1828 = vunpack.c.l.b16 %v469
    %v1829 = vunpack.c.h.b16 %v469
    %v1830 = vunpack.c.l.b16 %v470
    %v1831 = vunpack.c.h.b16 %v470
    %v1832 = vunpack.c.l.b16 %v471
    %v1833 = vunpack.c.h.b16 %v471
    %v1834 = vunpack.c.l.b16 %v472
    %v1835 = vunpack.c.h.b16 %v472
    %v1836 = vunpack.c.l.b16 %v473
    %v1837 = vunpack.c.h.b16 %v473
    %v1838 = vunpack.c.l.b16 %v474
    %v1839 = vunpack.c.h.b16 %v474
    %v1840 = vunpack.c.l.b16 %v475
    %v1841 = vunpack.c.h.b16 %v475
    %v1842 = vunpack.c.l.b16 %v476
    %v1843 = vunpack.c.h.b16 %v476
    %v1844 = vunpack.c.l.b16 %v477
    %v1845 = vunpack.c.h.b16 %v477
    %v1846 = vunpack.c.l.b16 %v478
    %v1847 = vunpack.c.h.b16 %v478
    %v1848 = vunpack.c.l.b16 %v479
    %v1849 = vunpack.c.h.b16 %v479
    %v1850 = vunpack.c.l.b16 %v480
    %v1851 = vunpack.c.h.b16 %v480
    %v1852 = vunpack.c.l.b16 %v481
    %v1853 = vunpack.c.h.b16 %v481
    %v1854 = vunpack.c.l.b16 %v482
    %v1855 = vunpack.c.h.b16 %v482
    %v1856 = vunpack.c.l.b16 %v483
    %v1857 = vunpack.c.h.b16 %v483
    %v1858 = vunpack.c.l.b16 %v484
    %v1859 = vunpack.c.h.b16 %v484
    %v1860 = vunpack.c.l.b16 %v485
    %v1861 = vunpack.c.h.b16 %v485
    %v1862 = vunpack.c.l.b16 %v486
    %v1863 = vunpack.c.h.b16 %v486
    %v1864 = vunpack.c.l.b16 %v487
    %v1865 = vunpack.c.h.b16 %v487
    %v1866 = vunpack.c.l.b16 %v488
    %v1867 = vunpack.c.h.b16 %v488
    %v1868 = vunpack.c.l.b16 %v489
    %v1869 = vunpack.c.h.b16 %v489
    %v1870 = vunpack.c.l.b16 %v490
    %v1871 = vunpack.c.h.b16 %v490
    %v1872 = vunpack.c.l.b16 %v491
    %v1873 = vunpack.c.h.b16 %v491
    %v1874 = vunpack.c.l.b16 %v492
    %v1875 = vunpack.c.h.b16 %v492
    %v1876 = vunpack.c.l.b16 %v493
    %v1877 = vunpack.c.h.b16 %v493
    %v1878 = vunpack.c.l.b16 %v494
    %v1879 = vunpack.c.h.b16 %v494
    %v1880 = vunpack.c.l.b16 %v495
    %v1881 = vunpack.c.h.b16 %v495
    %v1882 = vunpack.c.l.b16 %v496
    %v1883 = vunpack.c.h.b16 %v496
    %v1884 = vunpack.c.l.b16 %v497
    %v1885 = vunpack.c.h.b16 %v497
    %v1886 = vunpack.c.l.b16 %v498
    %v1887 = vunpack.c.h.b16 %v498
    %v1888 = vunpack.c.l.b16 %v499
    %v1889 = vunpack.c.h.b16 %v499
    %v1890 = vunpack.c.l.b16 %v500
    %v1891 = vunpack.c.h.b16 %v500
    %v1892 = vunpack.c.l.b16 %v501
    %v1893 = vunpack.c.h.b16 %v501
    %v1894 = vunpack.c.l.b16 %v502
    %v1895 = vunpack.c.h.b16 %v502
    %v1896 = vunpack.c.l.b16 %v503
    %v1897 = vunpack.c.h.b16 %v503
    %v1898 = vunpack.c.l.b16 %v504
    %v1899 = vunpack.c.h.b16 %v504
    %v1900 = vunpack.c.l.b16 %v505
    %v1901 = vunpack.c.h.b16 %v505
    %v1902 = vunpack.c.l.b16 %v506
    %v1903 = vunpack.c.h.b16 %v506
    %v1904 = vunpack.c.l.b16 %v507
    %v1905 = vunpack.c.h.b16 %v507
    %v1906 = vunpack.c.l.b16 %v508
    %v1907 = vunpack.c.h.b16 %v508
    %v1908 = vunpack.c.l.b16 %v509
    %v1909 = vunpack.c.h.b16 %v509
    %v1910 = vunpack.c.l.b16 %v510
    %v1911 = vunpack.c.h.b16 %v510
    %v1912 = vunpack.c.l.b16 %v511
    %v1913 = vunpack.c.h.b16 %v511
    %v1914 = vunpack.c.l.b16 %v512
    %v1915 = vunpack.c.h.b16 %v512
    %v1916 = vunpack.c.l.b16 %v513
    %v1917 = vunpack.c.h.b16 %v513
    %v1918 = vunpack.c.l.b16 %v514
    %v1919 = vunpack.c.h.b16 %v514
    %v1920 = vunpack.c.l.b16 %v515
    %v1921 = vunpack.c.h.b16 %v515
    %v1922 = vunpack.c.l.b16 %v516
    %v1923 = vunpack.c.h.b16 %v516
    %v1924 = vunpack.c.l.b16 %v517
    %v1925 = vunpack.c.h.b16 %v517
    %v1926 = vunpack.c.l.b16 %v518
    %v1927 = vunpack.c.h.b16 %v518
    %v1928 = vunpack.c.l.b16 %v519
    %v1929 = vunpack.c.h.b16 %v519
    %v1930 = vunpack.c.l.b16 %v520
    %v1931 = vunpack.c.h.b16 %v520
    %v1932 = vunpack.c.l.b16 %v521
    %v1933 = vunpack.c.h.b16 %v521
    %v1934 = vunpack.c.l.b16 %v522
    %v1935 = vunpack.c.h.b16 %v522
    %v1936 = vunpack.c.l.b16 %v523
    %v1937 = vunpack.c.h.b16 %v523
    %v1938 = vunpack.c.l.b16 %v524
    %v1939 = vunpack.c.h.b16 %v524
    %v1940 = vunpack.c.l.b16 %v525
    %v1941 = vunpack.c.h.b16 %v525
    %v1942 = vunpack.c.l.b16 %v526
    %v1943 = vunpack.c.h.b16 %v526
    %v1944 = vunpack.c.l.b16 %v527
    %v1945 = vunpack.c.h.b16 %v527
    %v1946 = vunpack.c.l.b16 %v528
    %v1947 = vunpack.c.h.b16 %v528
    %v1948 = vunpack.c.l.b16 %v529
    %v1949 = vunpack.c.h.b16 %v529
    %v1950 = vunpack.c.l.b16 %v530
    %v1951 = vunpack.c.h.b16 %v530
    %v1952 = vunpack.c.l.b16 %v531
    %v1953 = vunpack.c.h.b16 %v531
    %v1954 = vunpack.c.l.b16 %v532
    %v1955 = vunpack.c.h.b16 %v532
    %v1956 = vunpack.c.l.b16 %v533
    %v1957 = vunpack.c.h.b16 %v533
    %v1958 = vunpack.c.l.b16 %v534
    %v1959 = vunpack.c.h.b16 %v534
    %v1960 = vunpack.c.l.b16 %v535
    %v1961 = vunpack.c.h.b16 %v535
    %v1962 = vunpack.c.l.b16 %v536
    %v1963 = vunpack.c.h.b16 %v536
    %v1964 = vunpack.c.l.b16 %v537
    %v1965 = vunpack.c.h.b16 %v537
    %v1966 = vunpack.c.l.b16 %v538
    %v1967 = vunpack.c.h.b16 %v538
    %v1968 = vunpack.c.l.b16 %v539
    %v1969 = vunpack.c.h.b16 %v539
    %v1970 = vunpack.c.l.b16 %v540
    %v1971 = vunpack.c.h.b16 %v540
    %v1972 = vunpack.c.l.b16 %v541
    %v1973 = vunpack.c.h.b16 %v541
    %v1974 = vunpack.c.l.b16 %v542
    %v1975 = vunpack.c.h.b16 %v542
    %v1976 = vunpack.c.l.b16 %v543
    %v1977 = vunpack.c.h.b16 %v543
    %v1978 = vunpack.c.l.b16 %v544
    %v1979 = vunpack.c.h.b16 %v544
    %v1980 = vunpack.c.l.b16 %v545
    %v1981 = vunpack.c.h.b16 %v545
    %v1982 = vunpack.c.l.b16 %v546
    %v1983 = vunpack.c.h.b16 %v546
    %v1984 = vunpack.c.l.b16 %v547
    %v1985 = vunpack.c.h.b16 %v547
    %v1986 = vunpack.c.l.b16 %v548
    %v1987 = vunpack.c.h.b16 %v548
    %v1988 = vunpack.c.l.b16 %v549
    %v1989 = vunpack.c.h.b16 %v549
    %v1990 = vunpack.c.l.b16 %v550
    %v1991 = vunpack.c.h.b16 %v550
    %v1992 = vunpack.c.l.b16 %v551
    %v1993 = vunpack.c.h.b16 %v551
    %v1994 = vunpack.c.l.b16 %v552
    %v1995 = vunpack.c.h.b16 %v552
    %v1996 = vunpack.c.l.b16 %v553
    %v1997 = vunpack.c.h.b16 %v553
    %v1998 = vunpack.c.l.b16 %v554
    %v1999 = vunpack.c.h.b16 %v554
    %v2000 = vunpack.c.l.b16 %v555
    %v2001 = vunpack.c.h.b16 %v555
    %v2002 = vunpack.c.l.b16 %v556
    %v2003 = vunpack.c.h.b16 %v556
    %v2004 = vunpack.c.l.b16 %v557
    %v2005 = vunpack.c.h.b16 %v557
    %v2006 = vunpack.c.l.b16 %v558
    %v2007 = vunpack.c.h.b16 %v558
    %v2008 = vunpack.c.l.b16 %v559
    %v2009 = vunpack.c.h.b16 %v559
    %v2010 = vunpack.c.l.b16 %v560
    %v2011 = vunpack.c.h.b16 %v560
    %v2012 = vunpack.c.l.b16 %v561
    %v2013 = vunpack.c.h.b16 %v561
    %v2014 = vunpack.c.l.b16 %v562
    %v2015 = vunpack.c.h.b16 %v562
    %v2016 = vunpack.c.l.b16 %v563
    %v2017 = vunpack.c.h.b16 %v563
    %v2018 = vunpack.c.l.b16 %v564
    %v2019 = vunpack.c.h.b16 %v564
    %v2020 = vunpack.c.l.b16 %v565
    %v2021 = vunpack.c.h.b16 %v565
    %v2022 = vunpack.c.l.b16 %v566
    %v2023 = vunpack.c.h.b16 %v566
    %v2024 = vunpack.c.l.b16 %v567
    %v2025 = vunpack.c.h.b16 %v567
    %v2026 = vunpack.c.l.b16 %v568
    %v2027 = vunpack.c.h.b16 %v568
    %v2028 = vunpack.c.l.b16 %v569
    %v2029 = vunpack.c.h.b16 %v569
    %v2030 = vunpack.c.l.b16 %v570
    %v2031 = vunpack.c.h.b16 %v570
    %v2032 = vunpack.c.l.b16 %v571
    %v2033 = vunpack.c.h.b16 %v571
    %v2034 = vunpack.c.l.b16 %v572
    %v2035 = vunpack.c.h.b16 %v572
    %v2036 = vunpack.c.l.b16 %v573
    %v2037 = vunpack.c.h.b16 %v573
    %v2038 = vunpack.c.l.b16 %v574
    %v2039 = vunpack.c.h.b16 %v574
    %v2040 = vunpack.c.l.b16 %v575
    %v2041 = vunpack.c.h.b16 %v575
    %v2042 = vunpack.c.l.b16 %v576
    %v2043 = vunpack.c.h.b16 %v576
    %v2044 = vunpack.c.l.b16 %v577
    %v2045 = vunpack.c.h.b16 %v577
    %v2046 = vunpack.c.l.b16 %v578
    %v2047 = vunpack.c.h.b16 %v578
    %v2048 = vunpack.c.l.b16 %v579
    %v2049 = vunpack.c.h.b16 %v579
    %v2050 = vunpack.c.l.b16 %v580
    %v2051 = vunpack.c.h.b16 %v580
    %v2052 = vunpack.c.l.b16 %v581
    %v2053 = vunpack.c.h.b16 %v581
    %v2054 = vunpack.c.l.b16 %v582
    %v2055 = vunpack.c.h.b16 %v582
    %v2056 = vunpack.c.l.b16 %v583
    %v2057 = vunpack.c.h.b16 %v583
    %v2058 = vunpack.c.l.b16 %v584
    %v2059 = vunpack.c.h.b16 %v584
    %v2060 = vunpack.c.l.b16 %v585
    %v2061 = vunpack.c.h.b16 %v585
    %v2062 = vunpack.c.l.b16 %v586
    %v2063 = vunpack.c.h.b16 %v586
    %v2064 = vunpack.c.l.b16 %v587
    %v2065 = vunpack.c.h.b16 %v587
    %v2066 = vunpack.c.l.b16 %v588
    %v2067 = vunpack.c.h.b16 %v588
    %v2068 = vunpack.c.l.b16 %v589
    %v2069 = vunpack.c.h.b16 %v589
    %v2070 = vunpack.c.l.b16 %v590
    %v2071 = vunpack.c.h.b16 %v590
    %v2072 = vunpack.c.l.b16 %v591
    %v2073 = vunpack.c.h.b16 %v591
    %v2074 = vunpack.c.l.b16 %v592
    %v2075 = vunpack.c.h.b16 %v592
    %v2076 = vunpack.c.l.b16 %v593
    %v2077 = vunpack.c.h.b16 %v593
    %v2078 = vunpack.c.l.b16 %v594
    %v2079 = vunpack.c.h.b16 %v594
    %v2080 = vunpack.c.l.b16 %v595
    %v2081 = vunpack.c.h.b16 %v595
    %v2082 = vunpack.c.l.b16 %v596
    %v2083 = vunpack.c.h.b16 %v596
    %v2084 = vunpack.c.l.b16 %v597
    %v2085 = vunpack.c.h.b16 %v597
    %v2086 = vunpack.c.l.b16 %v598
    %v2087 = vunpack.c.h.b16 %v598
    %v2088 = vunpack.c.l.b16 %v599
    %v2089 = vunpack.c.h.b16 %v599
    %v2090 = vunpack.c.l.b16 %v600
    %v2091 = vunpack.c.h.b16 %v600
    %v2092 = vunpack.c.l.b16 %v601
    %v2093 = vunpack.c.h.b16 %v601
    %v2094 = vunpack.c.l.b16 %v602
    %v2095 = vunpack.c.h.b16 %v602
    %v2096 = vunpack.c.l.b16 %v603
    %v2097 = vunpack.c.h.b16 %v603
    %v2098 = vunpack.c.l.b16 %v604
    %v2099 = vunpack.c.h.b16 %v604
    %v2100 = vunpack.c.l.b16 %v605
    %v2101 = vunpack.c.h.b16 %v605
    %v2102 = vunpack.c.l.b16 %v606
    %v2103 = vunpack.c.h.b16 %v606
    %v2104 = vunpack.c.l.b16 %v607
    %v2105 = vunpack.c.h.b16 %v607
    %v2106 = vunpack.c.l.b16 %v608
    %v2107 = vunpack.c.h.b16 %v608
    %v2108 = vunpack.c.l.b16 %v609
    %v2109 = vunpack.c.h.b16 %v609
    %v2110 = vunpack.c.l.b16 %v610
    %v2111 = vunpack.c.h.b16 %v610
    %v2112 = vunpack.c.l.b16 %v611
    %v2113 = vunpack.c.h.b16 %v611
    %v2114 = vunpack.c.l.b16 %v612
    %v2115 = vunpack.c.h.b16 %v612
    %v2116 = vunpack.c.l.b16 %v613
    %v2117 = vunpack.c.h.b16 %v613
    %v2118 = vunpack.c.l.b16 %v614
    %v2119 = vunpack.c.h.b16 %v614
    %v2120 = vunpack.c.l.b16 %v615
    %v2121 = vunpack.c.h.b16 %v615
    %v2122 = vunpack.c.l.b16 %v616
    %v2123 = vunpack.c.h.b16 %v616
    %v2124 = vunpack.c.l.b16 %v617
    %v2125 = vunpack.c.h.b16 %v617
    %v2126 = vunpack.c.l.b16 %v618
    %v2127 = vunpack.c.h.b16 %v618
    %v2128 = vunpack.c.l.b16 %v619
    %v2129 = vunpack.c.h.b16 %v619
    %v2130 = vunpack.c.l.b16 %v620
    %v2131 = vunpack.c.h.b16 %v620
    %v2132 = vunpack.c.l.b16 %v621
    %v2133 = vunpack.c.h.b16 %v621
    %v2134 = vunpack.c.l.b16 %v622
    %v2135 = vunpack.c.h.b16 %v622
    %v2136 = vunpack.c.l.b16 %v623
    %v2137 = vunpack.c.h.b16 %v623
    %v2138 = vunpack.c.l.b16 %v624
    %v2139 = vunpack.c.h.b16 %v624
    %v2140 = vunpack.c.l.b16 %v625
    %v2141 = vunpack.c.h.b16 %v625
    %v2142 = vunpack.c.l.b16 %v626
    %v2143 = vunpack.c.h.b16 %v626
    %v2144 = vunpack.c.l.b16 %v627
    %v2145 = vunpack.c.h.b16 %v627
    %v2146 = vunpack.c.l.b16 %v628
    %v2147 = vunpack.c.h.b16 %v628
    %v2148 = vunpack.c.l.b16 %v629
    %v2149 = vunpack.c.h.b16 %v629
    %v2150 = vunpack.c.l.b16 %v630
    %v2151 = vunpack.c.h.b16 %v630
    %v2152 = vunpack.c.l.b16 %v631
    %v2153 = vunpack.c.h.b16 %v631
    %v2154 = vunpack.c.l.b16 %v632
    %v2155 = vunpack.c.h.b16 %v632
    %v2156 = vunpack.c.l.b16 %v633
    %v2157 = vunpack.c.h.b16 %v633
    %v2158 = vunpack.c.l.b16 %v634
    %v2159 = vunpack.c.h.b16 %v634
    %v2160 = vunpack.c.l.b16 %v635
    %v2161 = vunpack.c.h.b16 %v635
    %v2162 = vunpack.c.l.b16 %v636
    %v2163 = vunpack.c.h.b16 %v636
    %v2164 = vunpack.c.l.b16 %v637
    %v2165 = vunpack.c.h.b16 %v637
    %v2166 = vunpack.c.l.b16 %v638
    %v2167 = vunpack.c.h.b16 %v638
    %v2168 = vunpack.c.l.b16 %v639
    %v2169 = vunpack.c.h.b16 %v639
    %v2170 = vunpack.c.l.b16 %v640
    %v2171 = vunpack.c.h.b16 %v640
    %v2172 = vunpack.c.l.b16 %v641
    %v2173 = vunpack.c.h.b16 %v641
    %v2174 = vunpack.c.l.b16 %v642
    %v2175 = vunpack.c.h.b16 %v642
    %v2176 = vunpack.c.l.b16 %v643
    %v2177 = vunpack.c.h.b16 %v643
    %v2178 = vunpack.c.l.b16 %v644
    %v2179 = vunpack.c.h.b16 %v644
    %v2180 = vunpack.c.l.b16 %v645
    %v2181 = vunpack.c.h.b16 %v645
    %v2182 = vunpack.c.l.b16 %v646
    %v2183 = vunpack.c.h.b16 %v646
    %v2184 = vunpack.c.l.b16 %v647
    %v2185 = vunpack.c.h.b16 %v647
    %v2186 = vunpack.c.l.b16 %v648
    %v2187 = vunpack.c.h.b16 %v648
    %v2188 = vunpack.c.l.b16 %v649
    %v2189 = vunpack.c.h.b16 %v649
    %v2190 = vunpack.c.l.b16 %v650
    %v2191 = vunpack.c.h.b16 %v650
    %v2192 = vunpack.c.l.b16 %v651
    %v2193 = vunpack.c.h.b16 %v651
    %v2194 = vunpack.c.l.b16 %v652
    %v2195 = vunpack.c.h.b16 %v652
    %v2196 = vunpack.c.l.b16 %v653
    %v2197 = vunpack.c.h.b16 %v653
    %v2198 = vunpack.c.l.b16 %v654
    %v2199 = vunpack.c.h.b16 %v654
    %v2200 = vunpack.c.l.b16 %v655
    %v2201 = vunpack.c.h.b16 %v655
    %v2202 = vunpack.c.l.b16 %v656
    %v2203 = vunpack.c.h.b16 %v656
    %v2204 = vunpack.c.l.b16 %v657
    %v2205 = vunpack.c.h.b16 %v657
    %v2206 = vunpack.c.l.b16 %v658
    %v2207 = vunpack.c.h.b16 %v658
    %v2208 = vunpack.c.l.b16 %v659
    %v2209 = vunpack.c.h.b16 %v659
    %v2210 = vunpack.c.l.b16 %v660
    %v2211 = vunpack.c.h.b16 %v660
    %v2212 = vunpack.c.l.b16 %v661
    %v2213 = vunpack.c.h.b16 %v661
    %v2214 = vunpack.c.l.b16 %v662
    %v2215 = vunpack.c.h.b16 %v662
    %v2216 = vunpack.c.l.b16 %v663
    %v2217 = vunpack.c.h.b16 %v663
    %v2218 = vunpack.c.l.b16 %v664
    %v2219 = vunpack.c.h.b16 %v664
    %v2220 = vunpack.c.l.b16 %v665
    %v2221 = vunpack.c.h.b16 %v665
    %v2222 = vunpack.c.l.b16 %v666
    %v2223 = vunpack.c.h.b16 %v666
    %v2224 = vunpack.c.l.b16 %v667
    %v2225 = vunpack.c.h.b16 %v667
    %v2226 = vunpack.c.l.b16 %v668
    %v2227 = vunpack.c.h.b16 %v668
    %v2228 = vunpack.c.l.b16 %v669
    %v2229 = vunpack.c.h.b16 %v669
    %v2230 = vunpack.c.l.b16 %v670
    %v2231 = vunpack.c.h.b16 %v670
    %v2232 = vunpack.c.l.b16 %v671
    %v2233 = vunpack.c.h.b16 %v671
    %v2234 = vunpack.c.l.b16 %v672
    %v2235 = vunpack.c.h.b16 %v672
    %v2236 = vunpack.c.l.b16 %v673
    %v2237 = vunpack.c.h.b16 %v673
    %v2238 = vunpack.c.l.b16 %v674
    %v2239 = vunpack.c.h.b16 %v674
    %v2240 = vunpack.c.l.b16 %v675
    %v2241 = vunpack.c.h.b16 %v675
    %v2242 = vunpack.c.l.b16 %v676
    %v2243 = vunpack.c.h.b16 %v676
    %v2244 = vunpack.c.l.b16 %v677
    %v2245 = vunpack.c.h.b16 %v677
    %v2246 = vunpack.c.l.b16 %v678
    %v2247 = vunpack.c.h.b16 %v678
    %v2248 = vunpack.c.l.b16 %v679
    %v2249 = vunpack.c.h.b16 %v679
    %v2250 = vunpack.c.l.b16 %v680
    %v2251 = vunpack.c.h.b16 %v680
    %v2252 = vunpack.c.l.b16 %v681
    %v2253 = vunpack.c.h.b16 %v681
    %v2254 = vunpack.c.l.b16 %v682
    %v2255 = vunpack.c.h.b16 %v682
    %v2256 = vunpack.c.l.b16 %v683
    %v2257 = vunpack.c.h.b16 %v683
    %v2258 = vunpack.c.l.b16 %v684
    %v2259 = vunpack.c.h.b16 %v684
    %v2260 = vunpack.c.l.b16 %v685
    %v2261 = vunpack.c.h.b16 %v685
    %v2262 = vunpack.c.l.b16 %v686
    %v2263 = vunpack.c.h.b16 %v686
    %v2264 = vunpack.c.l.b16 %v687
    %v2265 = vunpack.c.h.b16 %v687
    %v2266 = vunpack.c.l.b16 %v688
    %v2267 = vunpack.c.h.b16 %v688
    %v2268 = vunpack.c.l.b16 %v689
    %v2269 = vunpack.c.h.b16 %v689
    %v2270 = vunpack.c.l.b16 %v690
    %v2271 = vunpack.c.h.b16 %v690
    %v2272 = vunpack.c.l.b16 %v691
    %v2273 = vunpack.c.h.b16 %v691
    %v2274 = vunpack.c.l.b16 %v692
    %v2275 = vunpack.c.h.b16 %v692
    %v2276 = vunpack.c.l.b16 %v693
    %v2277 = vunpack.c.h.b16 %v693
    %v2278 = vunpack.c.l.b16 %v694
    %v2279 = vunpack.c.h.b16 %v694
    %v2280 = vunpack.c.l.b16 %v695
    %v2281 = vunpack.c.h.b16 %v695
    %v2282 = vunpack.c.l.b16 %v696
    %v2283 = vunpack.c.h.b16 %v696
    %v2284 = vunpack.c.l.b16 %v697
    %v2285 = vunpack.c.h.b16 %v697
    %v2286 = vunpack.c.l.b16 %v698
    %v2287 = vunpack.c.h.b16 %v698
    %v2288 = vunpack.c.l.b16 %v699
    %v2289 = vunpack.c.h.b16 %v699
    %v2290 = vunpack.c.l.b16 %v700
    %v2291 = vunpack.c.h.b16 %v700
    %v2292 = vunpack.c.l.b16 %v701
    %v2293 = vunpack.c.h.b16 %v701
    %v2294 = vunpack.c.l.b16 %v702
    %v2295 = vunpack.c.h.b16 %v702
    %v2296 = vunpack.c.l.b16 %v703
    %v2297 = vunpack.c.h.b16 %v703
    %v2298 = vpack.c.b16 %v1282, %v1274
    %v2299 = vpack.c.b16 %v1283, %v1275
    %v2300 = vpack.c.b16 %v1284, %v1276
    %v2301 = vpack.c.b16 %v1285, %v1277
    %v2302 = vpack.c.b16 %v1286, %v1278
    %v2303 = vpack.c.b16 %v1287, %v1279
    %v2304 = vpack.c.b16 %v1288, %v1280
    %v2305 = vpack.c.b16 %v1289, %v1281
    %v2306 = vpack.c.b16 %v1298, %v1290
    %v2307 = vpack.c.b16 %v1299, %v1291
    %v2308 = vpack.c.b16 %v1300, %v1292
    %v2309 = vpack.c.b16 %v1301, %v1293
    %v2310 = vpack.c.b16 %v1302, %v1294
    %v2311 = vpack.c.b16 %v1303, %v1295
    %v2312 = vpack.c.b16 %v1304, %v1296
    %v2313 = vpack.c.b16 %v1305, %v1297
    %v2314 = vpack.c.b16 %v1314, %v1306
    %v2315 = vpack.c.b16 %v1315, %v1307
    %v2316 = vpack.c.b16 %v1316, %v1308
    %v2317 = vpack.c.b16 %v1317, %v1309
    %v2318 = vpack.c.b16 %v1318, %v1310
    %v2319 = vpack.c.b16 %v1319, %v1311
    %v2320 = vpack.c.b16 %v1320, %v1312
    %v2321 = vpack.c.b16 %v1321, %v1313
    %v2322 = vpack.c.b16 %v1330, %v1322
    %v2323 = vpack.c.b16 %v1331, %v1323
    %v2324 = vpack.c.b16 %v1332, %v1324
    %v2325 = vpack.c.b16 %v1333, %v1325
    %v2326 = vpack.c.b16 %v1334, %v1326
    %v2327 = vpack.c.b16 %v1335, %v1327
    %v2328 = vpack.c.b16 %v1336, %v1328
    %v2329 = vpack.c.b16 %v1337, %v1329
    %v2330 = vpack.c.b16 %v1346, %v1338
    %v2331 = vpack.c.b16 %v1347, %v1339
    %v2332 = vpack.c.b16 %v1348, %v1340
    %v2333 = vpack.c.b16 %v1349, %v1341
    %v2334 = vpack.c.b16 %v1350, %v1342
    %v2335 = vpack.c.b16 %v1351, %v1343
    %v2336 = vpack.c.b16 %v1352, %v1344
    %v2337 = vpack.c.b16 %v1353, %v1345
    %v2338 = vpack.c.b16 %v1362, %v1354
    %v2339 = vpack.c.b16 %v1363, %v1355
    %v2340 = vpack.c.b16 %v1364, %v1356
    %v2341 = vpack.c.b16 %v1365, %v1357
    %v2342 = vpack.c.b16 %v1366, %v1358
    %v2343 = vpack.c.b16 %v1367, %v1359
    %v2344 = vpack.c.b16 %v1368, %v1360
    %v2345 = vpack.c.b16 %v1369, %v1361
    %v2346 = vpack.c.b16 %v1378, %v1370
    %v2347 = vpack.c.b16 %v1379, %v1371
    %v2348 = vpack.c.b16 %v1380, %v1372
    %v2349 = vpack.c.b16 %v1381, %v1373
    %v2350 = vpack.c.b16 %v1382, %v1374
    %v2351 = vpack.c.b16 %v1383, %v1375
    %v2352 = vpack.c.b16 %v1384, %v1376
    %v2353 = vpack.c.b16 %v1385, %v1377
    %v2354 = vpack.c.b16 %v1394, %v1386
    %v2355 = vpack.c.b16 %v1395, %v1387
    %v2356 = vpack.c.b16 %v1396, %v1388
    %v2357 = vpack.c.b16 %v1397, %v1389
    %v2358 = vpack.c.b16 %v1398, %v1390
    %v2359 = vpack.c.b16 %v1399, %v1391
    %v2360 = vpack.c.b16 %v1400, %v1392
    %v2361 = vpack.c.b16 %v1401, %v1393
    %v2362 = vpack.c.b16 %v1410, %v1402
    %v2363 = vpack.c.b16 %v1411, %v1403
    %v2364 = vpack.c.b16 %v1412, %v1404
    %v2365 = vpack.c.b16 %v1413, %v1405
    %v2366 = vpack.c.b16 %v1414, %v1406
    %v2367 = vpack.c.b16 %v1415, %v1407
    %v2368 = vpack.c.b16 %v1416, %v1408
    %v2369 = vpack.c.b16 %v1417, %v1409
    %v2370 = vpack.c.b16 %v1426, %v1418
    %v2371 = vpack.c.b16 %v1427, %v1419
    %v2372 = vpack.c.b16 %v1428, %v1420
    %v2373 = vpack.c.b16 %v1429, %v1421
    %v2374 = vpack.c.b16 %v1430, %v1422
    %v2375 = vpack.c.b16 %v1431, %v1423
    %v2376 = vpack.c.b16 %v1432, %v1424
    %v2377 = vpack.c.b16 %v1433, %v1425
    %v2378 = vpack.c.b16 %v1442, %v1434
    %v2379 = vpack.c.b16 %v1443, %v1435
    %v2380 = vpack.c.b16 %v1444, %v1436
    %v2381 = vpack.c.b16 %v1445, %v1437
    %v2382 = vpack.c.b16 %v1446, %v1438
    %v2383 = vpack.c.b16 %v1447, %v1439
    %v2384 = vpack.c.b16 %v1448, %v1440
    %v2385 = vpack.c.b16 %v1449, %v1441
    %v2386 = vpack.c.b16 %v1458, %v1450
    %v2387 = vpack.c.b16 %v1459, %v1451
    %v2388 = vpack.c.b16 %v1460, %v1452
    %v2389 = vpack.c.b16 %v1461, %v1453
    %v2390 = vpack.c.b16 %v1462, %v1454
    %v2391 = vpack.c.b16 %v1463, %v1455
    %v2392 = vpack.c.b16 %v1464, %v1456
    %v2393 = vpack.c.b16 %v1465, %v1457
    %v2394 = vpack.c.b16 %v1474, %v1466
    %v2395 = vpack.c.b16 %v1475, %v1467
    %v2396 = vpack.c.b16 %v1476, %v1468
    %v2397 = vpack.c.b16 %v1477, %v1469
    %v2398 = vpack.c.b16 %v1478, %v1470
    %v2399 = vpack.c.b16 %v1479, %v1471
    %v2400 = vpack.c.b16 %v1480, %v1472
    %v2401 = vpack.c.b16 %v1481, %v1473
    %v2402 = vpack.c.b16 %v1490, %v1482
    %v2403 = vpack.c.b16 %v1491, %v1483
    %v2404 = vpack.c.b16 %v1492, %v1484
    %v2405 = vpack.c.b16 %v1493, %v1485
    %v2406 = vpack.c.b16 %v1494, %v1486
    %v2407 = vpack.c.b16 %v1495, %v1487
    %v2408 = vpack.c.b16 %v1496, %v1488
    %v2409 = vpack.c.b16 %v1497, %v1489
    %v2410 = vpack.c.b16 %v1506, %v1498
    %v2411 = vpack.c.b16 %v1507, %v1499
    %v2412 = vpack.c.b16 %v1508, %v1500
    %v2413 = vpack.c.b16 %v1509, %v1501
    %v2414 = vpack.c.b16 %v1510, %v1502
    %v2415 = vpack.c.b16 %v1511, %v1503
    %v2416 = vpack.c.b16 %v1512, %v1504
    %v2417 = vpack.c.b16 %v1513, %v1505
    %v2418 = vpack.c.b16 %v1522, %v1514
    %v2419 = vpack.c.b16 %v1523, %v1515
    %v2420 = vpack.c.b16 %v1524, %v1516
    %v2421 = vpack.c.b16 %v1525, %v1517
    %v2422 = vpack.c.b16 %v1526, %v1518
    %v2423 = vpack.c.b16 %v1527, %v1519
    %v2424 = vpack.c.b16 %v1528, %v1520
    %v2425 = vpack.c.b16 %v1529, %v1521
    %v2426 = vpack.c.b16 %v1538, %v1530
    %v2427 = vpack.c.b16 %v1539, %v1531
    %v2428 = vpack.c.b16 %v1540, %v1532
    %v2429 = vpack.c.b16 %v1541, %v1533
    %v2430 = vpack.c.b16 %v1542, %v1534
    %v2431 = vpack.c.b16 %v1543, %v1535
    %v2432 = vpack.c.b16 %v1544, %v1536
    %v2433 = vpack.c.b16 %v1545, %v1537
    %v2434 = vpack.c.b16 %v1554, %v1546
    %v2435 = vpack.c.b16 %v1555, %v1547
    %v2436 = vpack.c.b16 %v1556, %v1548
    %v2437 = vpack.c.b16 %v1557, %v1549
    %v2438 = vpack.c.b16 %v1558, %v1550
    %v2439 = vpack.c.b16 %v1559, %v1551
    %v2440 = vpack.c.b16 %v1560, %v1552
    %v2441 = vpack.c.b16 %v1561, %v1553
    %v2442 = vpack.c.b16 %v1570, %v1562
    %v2443 = vpack.c.b16 %v1571, %v1563
    %v2444 = vpack.c.b16 %v1572, %v1564
    %v2445 = vpack.c.b16 %v1573, %v1565
    %v2446 = vpack.c.b16 %v1574, %v1566
    %v2447 = vpack.c.b16 %v1575, %v1567
    %v2448 = vpack.c.b16 %v1576, %v1568
    %v2449 = vpack.c.b16 %v1577, %v1569
    %v2450 = vpack.c.b16 %v1586, %v1578
    %v2451 = vpack.c.b16 %v1587, %v1579
    %v2452 = vpack.c.b16 %v1588, %v1580
    %v2453 = vpack.c.b16 %v1589, %v1581
    %v2454 = vpack.c.b16 %v1590, %v1582
    %v2455 = vpack.c.b16 %v1591, %v1583
    %v2456 = vpack.c.b16 %v1592, %v1584
    %v2457 = vpack.c.b16 %v1593, %v1585
    %v2458 = vpack.c.b16 %v1602, %v1594
    %v2459 = vpack.c.b16 %v1603, %v1595
    %v2460 = vpack.c.b16 %v1604, %v1596
    %v2461 = vpack.c.b16 %v1605, %v1597
    %v2462 = vpack.c.b16 %v1606, %v1598
    %v2463 = vpack.c.b16 %v1607, %v1599
    %v2464 = vpack.c.b16 %v1608, %v1600
    %v2465 = vpack.c.b16 %v1609, %v1601
    %v2466 = vpack.c.b16 %v1618, %v1610
    %v2467 = vpack.c.b16 %v1619, %v1611
    %v2468 = vpack.c.b16 %v1620, %v1612
    %v2469 = vpack.c.b16 %v1621, %v1613
    %v2470 = vpack.c.b16 %v1622, %v1614
    %v2471 = vpack.c.b16 %v1623, %v1615
    %v2472 = vpack.c.b16 %v1624, %v1616
    %v2473 = vpack.c.b16 %v1625, %v1617
    %v2474 = vpack.c.b16 %v1634, %v1626
    %v2475 = vpack.c.b16 %v1635, %v1627
    %v2476 = vpack.c.b16 %v1636, %v1628
    %v2477 = vpack.c.b16 %v1637, %v1629
    %v2478 = vpack.c.b16 %v1638, %v1630
    %v2479 = vpack.c.b16 %v1639, %v1631
    %v2480 = vpack.c.b16 %v1640, %v1632
    %v2481 = vpack.c.b16 %v1641, %v1633
    %v2482 = vpack.c.b16 %v1650, %v1642
    %v2483 = vpack.c.b16 %v1651, %v1643
    %v2484 = vpack.c.b16 %v1652, %v1644
    %v2485 = vpack.c.b16 %v1653, %v1645
    %v2486 = vpack.c.b16 %v1654, %v1646
    %v2487 = vpack.c.b16 %v1655, %v1647
    %v2488 = vpack.c.b16 %v1656, %v1648
    %v2489 = vpack.c.b16 %v1657, %v1649
    %v2490 = vpack.c.b16 %v1666, %v1658
    %v2491 = vpack.c.b16 %v1667, %v1659
    %v2492 = vpack.c.b16 %v1668, %v1660
    %v2493 = vpack.c.b16 %v1669, %v1661
    %v2494 = vpack.c.b16 %v1670, %v1662
    %v2495 = vpack.c.b16 %v1671, %v1663
    %v2496 = vpack.c.b16 %v1672, %v1664
    %v2497 = vpack.c.b16 %v1673, %v1665
    %v2498 = vpack.c.b16 %v1682, %v1674
    %v2499 = vpack.c.b16 %v1683, %v1675
    %v2500 = vpack.c.b16 %v1684, %v1676
    %v2501 = vpack.c.b16 %v1685, %v1677
    %v2502 = vpack.c.b16 %v1686, %v1678
    %v2503 = vpack.c.b16 %v1687, %v1679
    %v2504 = vpack.c.b16 %v1688, %v1680
    %v2505 = vpack.c.b16 %v1689, %v1681
    %v2506 = vpack.c.b16 %v1698, %v1690
    %v2507 = vpack.c.b16 %v1699, %v1691
    %v2508 = vpack.c.b16 %v1700, %v1692
    %v2509 = vpack.c.b16 %v1701, %v1693
    %v2510 = vpack.c.b16 %v1702, %v1694
    %v2511 = vpack.c.b16 %v1703, %v1695
    %v2512 = vpack.c.b16 %v1704, %v1696
    %v2513 = vpack.c.b16 %v1705, %v1697
    %v2514 = vpack.c.b16 %v1714, %v1706
    %v2515 = vpack.c.b16 %v1715, %v1707
    %v2516 = vpack.c.b16 %v1716, %v1708
    %v2517 = vpack.c.b16 %v1717, %v1709
    %v2518 = vpack.c.b16 %v1718, %v1710
    %v2519 = vpack.c.b16 %v1719, %v1711
    %v2520 = vpack.c.b16 %v1720, %v1712
    %v2521 = vpack.c.b16 %v1721, %v1713
    %v2522 = vpack.c.b16 %v1730, %v1722
    %v2523 = vpack.c.b16 %v1731, %v1723
    %v2524 = vpack.c.b16 %v1732, %v1724
    %v2525 = vpack.c.b16 %v1733, %v1725
    %v2526 = vpack.c.b16 %v1734, %v1726
    %v2527 = vpack.c.b16 %v1735, %v1727
    %v2528 = vpack.c.b16 %v1736, %v1728
    %v2529 = vpack.c.b16 %v1737, %v1729
    %v2530 = vpack.c.b16 %v1746, %v1738
    %v2531 = vpack.c.b16 %v1747, %v1739
    %v2532 = vpack.c.b16 %v1748, %v1740
    %v2533 = vpack.c.b16 %v1749, %v1741
    %v2534 = vpack.c.b16 %v1750, %v1742
    %v2535 = vpack.c.b16 %v1751, %v1743
    %v2536 = vpack.c.b16 %v1752, %v1744
    %v2537 = vpack.c.b16 %v1753, %v1745
    %v2538 = vpack.c.b16 %v1762, %v1754
    %v2539 = vpack.c.b16 %v1763, %v1755
    %v2540 = vpack.c.b16 %v1764, %v1756
    %v2541 = vpack.c.b16 %v1765, %v1757
    %v2542 = vpack.c.b16 %v1766, %v1758
    %v2543 = vpack.c.b16 %v1767, %v1759
    %v2544 = vpack.c.b16 %v1768, %v1760
    %v2545 = vpack.c.b16 %v1769, %v1761
    %v2546 = vpack.c.b16 %v1778, %v1770
    %v2547 = vpack.c.b16 %v1779, %v1771
    %v2548 = vpack.c.b16 %v1780, %v1772
    %v2549 = vpack.c.b16 %v1781, %v1773
    %v2550 = vpack.c.b16 %v1782, %v1774
    %v2551 = vpack.c.b16 %v1783, %v1775
    %v2552 = vpack.c.b16 %v1784, %v1776
    %v2553 = vpack.c.b16 %v1785, %v1777
    %v2554 = vpack.c.b16 %v1794, %v1786
    %v2555 = vpack.c.b16 %v1795, %v1787
    %v2556 = vpack.c.b16 %v1796, %v1788
    %v2557 = vpack.c.b16 %v1797, %v1789
    %v2558 = vpack.c.b16 %v1798, %v1790
    %v2559 = vpack.c.b16 %v1799, %v1791
    %v2560 = vpack.c.b16 %v1800, %v1792
    %v2561 = vpack.c.b16 %v1801, %v1793
    %v2562 = vpack.c.b16 %v1810, %v1802
    %v2563 = vpack.c.b16 %v1811, %v1803
    %v2564 = vpack.c.b16 %v1812, %v1804
    %v2565 = vpack.c.b16 %v1813, %v1805
    %v2566 = vpack.c.b16 %v1814, %v1806
    %v2567 = vpack.c.b16 %v1815, %v1807
    %v2568 = vpack.c.b16 %v1816, %v1808
    %v2569 = vpack.c.b16 %v1817, %v1809
    %v2570 = vpack.c.b16 %v1826, %v1818
    %v2571 = vpack.c.b16 %v1827, %v1819
    %v2572 = vpack.c.b16 %v1828, %v1820
    %v2573 = vpack.c.b16 %v1829, %v1821
    %v2574 = vpack.c.b16 %v1830, %v1822
    %v2575 = vpack.c.b16 %v1831, %v1823
    %v2576 = vpack.c.b16 %v1832, %v1824
    %v2577 = vpack.c.b16 %v1833, %v1825
    %v2578 = vpack.c.b16 %v1842, %v1834
    %v2579 = vpack.c.b16 %v1843, %v1835
    %v2580 = vpack.c.b16 %v1844, %v1836
    %v2581 = vpack.c.b16 %v1845, %v1837
    %v2582 = vpack.c.b16 %v1846, %v1838
    %v2583 = vpack.c.b16 %v1847, %v1839
    %v2584 = vpack.c.b16 %v1848, %v1840
    %v2585 = vpack.c.b16 %v1849, %v1841
    %v2586 = vpack.c.b16 %v1858, %v1850
    %v2587 = vpack.c.b16 %v1859, %v1851
    %v2588 = vpack.c.b16 %v1860, %v1852
    %v2589 = vpack.c.b16 %v1861, %v1853
    %v2590 = vpack.c.b16 %v1862, %v1854
    %v2591 = vpack.c.b16 %v1863, %v1855
    %v2592 = vpack.c.b16 %v1864, %v1856
    %v2593 = vpack.c.b16 %v1865, %v1857
    %v2594 = vpack.c.b16 %v1874, %v1866
    %v2595 = vpack.c.b16 %v1875, %v1867
    %v2596 = vpack.c.b16 %v1876, %v1868
    %v2597 = vpack.c.b16 %v1877, %v1869
    %v2598 = vpack.c.b16 %v1878, %v1870
    %v2599 = vpack.c.b16 %v1879, %v1871
    %v2600 = vpack.c.b16 %v1880, %v1872
    %v2601 = vpack.c.b16 %v1881, %v1873
    %v2602 = vpack.c.b16 %v1890, %v1882
    %v2603 = vpack.c.b16 %v1891, %v1883
    %v2604 = vpack.c.b16 %v1892, %v1884
    %v2605 = vpack.c.b16 %v1893, %v1885
    %v2606 = vpack.c.b16 %v1894, %v1886
    %v2607 = vpack.c.b16 %v1895, %v1887
    %v2608 = vpack.c.b16 %v1896, %v1888
    %v2609 = vpack.c.b16 %v1897, %v1889
    %v2610 = vpack.c.b16 %v1906, %v1898
    %v2611 = vpack.c.b16 %v1907, %v1899
    %v2612 = vpack.c.b16 %v1908, %v1900
    %v2613 = vpack.c.b16 %v1909, %v1901
    %v2614 = vpack.c.b16 %v1910, %v1902
    %v2615 = vpack.c.b16 %v1911, %v1903
    %v2616 = vpack.c.b16 %v1912, %v1904
    %v2617 = vpack.c.b16 %v1913, %v1905
    %v2618 = vpack.c.b16 %v1922, %v1914
    %v2619 = vpack.c.b16 %v1923, %v1915
    %v2620 = vpack.c.b16 %v1924, %v1916
    %v2621 = vpack.c.b16 %v1925, %v1917
    %v2622 = vpack.c.b16 %v1926, %v1918
    %v2623 = vpack.c.b16 %v1927, %v1919
    %v2624 = vpack.c.b16 %v1928, %v1920
    %v2625 = vpack.c.b16 %v1929, %v1921
    %v2626 = vpack.c.b16 %v1938, %v1930
    %v2627 = vpack.c.b16 %v1939, %v1931
    %v2628 = vpack.c.b16 %v1940, %v1932
    %v2629 = vpack.c.b16 %v1941, %v1933
    %v2630 = vpack.c.b16 %v1942, %v1934
    %v2631 = vpack.c.b16 %v1943, %v1935
    %v2632 = vpack.c.b16 %v1944, %v1936
    %v2633 = vpack.c.b16 %v1945, %v1937
    %v2634 = vpack.c.b16 %v1954, %v1946
    %v2635 = vpack.c.b16 %v1955, %v1947
    %v2636 = vpack.c.b16 %v1956, %v1948
    %v2637 = vpack.c.b16 %v1957, %v1949
    %v2638 = vpack.c.b16 %v1958, %v1950
    %v2639 = vpack.c.b16 %v1959, %v1951
    %v2640 = vpack.c.b16 %v1960, %v1952
    %v2641 = vpack.c.b16 %v1961, %v1953
    %v2642 = vpack.c.b16 %v1970, %v1962
    %v2643 = vpack.c.b16 %v1971, %v1963
    %v2644 = vpack.c.b16 %v1972, %v1964
    %v2645 = vpack.c.b16 %v1973, %v1965
    %v2646 = vpack.c.b16 %v1974, %v1966
    %v2647 = vpack.c.b16 %v1975, %v1967
    %v2648 = vpack.c.b16 %v1976, %v1968
    %v2649 = vpack.c.b16 %v1977, %v1969
    %v2650 = vpack.c.b16 %v1986, %v1978
    %v2651 = vpack.c.b16 %v1987, %v1979
    %v2652 = vpack.c.b16 %v1988, %v1980
    %v2653 = vpack.c.b16 %v1989, %v1981
    %v2654 = vpack.c.b16 %v1990, %v1982
    %v2655 = vpack.c.b16 %v1991, %v1983
    %v2656 = vpack.c.b16 %v1992, %v1984
    %v2657 = vpack.c.b16 %v1993, %v1985
    %v2658 = vpack.c.b16 %v2002, %v1994
    %v2659 = vpack.c.b16 %v2003, %v1995
    %v2660 = vpack.c.b16 %v2004, %v1996
    %v2661 = vpack.c.b16 %v2005, %v1997
    %v2662 = vpack.c.b16 %v2006, %v1998
    %v2663 = vpack.c.b16 %v2007, %v1999
    %v2664 = vpack.c.b16 %v2008, %v2000
    %v2665 = vpack.c.b16 %v2009, %v2001
    %v2666 = vpack.c.b16 %v2018, %v2010
    %v2667 = vpack.c.b16 %v2019, %v2011
    %v2668 = vpack.c.b16 %v2020, %v2012
    %v2669 = vpack.c.b16 %v2021, %v2013
    %v2670 = vpack.c.b16 %v2022, %v2014
    %v2671 = vpack.c.b16 %v2023, %v2015
    %v2672 = vpack.c.b16 %v2024, %v2016
    %v2673 = vpack.c.b16 %v2025, %v2017
    %v2674 = vpack.c.b16 %v2034, %v2026
    %v2675 = vpack.c.b16 %v2035, %v2027
    %v2676 = vpack.c.b16 %v2036, %v2028
    %v2677 = vpack.c.b16 %v2037, %v2029
    %v2678 = vpack.c.b16 %v2038, %v2030
    %v2679 = vpack.c.b16 %v2039, %v2031
    %v2680 = vpack.c.b16 %v2040, %v2032
    %v2681 = vpack.c.b16 %v2041, %v2033
    %v2682 = vpack.c.b16 %v2050, %v2042
    %v2683 = vpack.c.b16 %v2051, %v2043
    %v2684 = vpack.c.b16 %v2052, %v2044
    %v2685 = vpack.c.b16 %v2053, %v2045
    %v2686 = vpack.c.b16 %v2054, %v2046
    %v2687 = vpack.c.b16 %v2055, %v2047
    %v2688 = vpack.c.b16 %v2056, %v2048
    %v2689 = vpack.c.b16 %v2057, %v2049
    %v2690 = vpack.c.b16 %v2066, %v2058
    %v2691 = vpack.c.b16 %v2067, %v2059
    %v2692 = vpack.c.b16 %v2068, %v2060
    %v2693 = vpack.c.b16 %v2069, %v2061
    %v2694 = vpack.c.b16 %v2070, %v2062
    %v2695 = vpack.c.b16 %v2071, %v2063
    %v2696 = vpack.c.b16 %v2072, %v2064
    %v2697 = vpack.c.b16 %v2073, %v2065
    %v2698 = vpack.c.b16 %v2082, %v2074
    %v2699 = vpack.c.b16 %v2083, %v2075
    %v2700 = vpack.c.b16 %v2084, %v2076
    %v2701 = vpack.c.b16 %v2085, %v2077
    %v2702 = vpack.c.b16 %v2086, %v2078
    %v2703 = vpack.c.b16 %v2087, %v2079
    %v2704 = vpack.c.b16 %v2088, %v2080
    %v2705 = vpack.c.b16 %v2089, %v2081
    %v2706 = vpack.c.b16 %v2098, %v2090
    %v2707 = vpack.c.b16 %v2099, %v2091
    %v2708 = vpack.c.b16 %v2100, %v2092
    %v2709 = vpack.c.b16 %v2101, %v2093
    %v2710 = vpack.c.b16 %v2102, %v2094
    %v2711 = vpack.c.b16 %v2103, %v2095
    %v2712 = vpack.c.b16 %v2104, %v2096
    %v2713 = vpack.c.b16 %v2105, %v2097
    %v2714 = vpack.c.b16 %v2114, %v2106
    %v2715 = vpack.c.b16 %v2115, %v2107
    %v2716 = vpack.c.b16 %v2116, %v2108
    %v2717 = vpack.c.b16 %v2117, %v2109
    %v2718 = vpack.c.b16 %v2118, %v2110
    %v2719 = vpack.c.b16 %v2119, %v2111
    %v2720 = vpack.c.b16 %v2120, %v2112
    %v2721 = vpack.c.b16 %v2121, %v2113
    %v2722 = vpack.c.b16 %v2130, %v2122
    %v2723 = vpack.c.b16 %v2131, %v2123
    %v2724 = vpack.c.b16 %v2132, %v2124
    %v2725 = vpack.c.b16 %v2133, %v2125
    %v2726 = vpack.c.b16 %v2134, %v2126
    %v2727 = vpack.c.b16 %v2135, %v2127
    %v2728 = vpack.c.b16 %v2136, %v2128
    %v2729 = vpack.c.b16 %v2137, %v2129
    %v2730 = vpack.c.b16 %v2146, %v2138
    %v2731 = vpack.c.b16 %v2147, %v2139
    %v2732 = vpack.c.b16 %v2148, %v2140
    %v2733 = vpack.c.b16 %v2149, %v2141
    %v2734 = vpack.c.b16 %v2150, %v2142
    %v2735 = vpack.c.b16 %v2151, %v2143
    %v2736 = vpack.c.b16 %v2152, %v2144
    %v2737 = vpack.c.b16 %v2153, %v2145
    %v2738 = vpack.c.b16 %v2162, %v2154
    %v2739 = vpack.c.b16 %v2163, %v2155
    %v2740 = vpack.c.b16 %v2164, %v2156
    %v2741 = vpack.c.b16 %v2165, %v2157
    %v2742 = vpack.c.b16 %v2166, %v2158
    %v2743 = vpack.c.b16 %v2167, %v2159
    %v2744 = vpack.c.b16 %v2168, %v2160
    %v2745 = vpack.c.b16 %v2169, %v2161
    %v2746 = vpack.c.b16 %v2178, %v2170
    %v2747 = vpack.c.b16 %v2179, %v2171
    %v2748 = vpack.c.b16 %v2180, %v2172
    %v2749 = vpack.c.b16 %v2181, %v2173
    %v2750 = vpack.c.b16 %v2182, %v2174
    %v2751 = vpack.c.b16 %v2183, %v2175
    %v2752 = vpack.c.b16 %v2184, %v2176
    %v2753 = vpack.c.b16 %v2185, %v2177
    %v2754 = vpack.c.b16 %v2194, %v2186
    %v2755 = vpack.c.b16 %v2195, %v2187
    %v2756 = vpack.c.b16 %v2196, %v2188
    %v2757 = vpack.c.b16 %v2197, %v2189
    %v2758 = vpack.c.b16 %v2198, %v2190
    %v2759 = vpack.c.b16 %v2199, %v2191
    %v2760 = vpack.c.b16 %v2200, %v2192
    %v2761 = vpack.c.b16 %v2201, %v2193
    %v2762 = vpack.c.b16 %v2210, %v2202
    %v2763 = vpack.c.b16 %v2211, %v2203
    %v2764 = vpack.c.b16 %v2212, %v2204
    %v2765 = vpack.c.b16 %v2213, %v2205
    %v2766 = vpack.c.b16 %v2214, %v2206
    %v2767 = vpack.c.b16 %v2215, %v2207
    %v2768 = vpack.c.b16 %v2216, %v2208
    %v2769 = vpack.c.b16 %v2217, %v2209
    %v2770 = vpack.c.b16 %v2226, %v2218
    %v2771 = vpack.c.b16 %v2227, %v2219
    %v2772 = vpack.c.b16 %v2228, %v2220
    %v2773 = vpack.c.b16 %v2229, %v2221
    %v2774 = vpack.c.b16 %v2230, %v2222
    %v2775 = vpack.c.b16 %v2231, %v2223
    %v2776 = vpack.c.b16 %v2232, %v2224
    %v2777 = vpack.c.b16 %v2233, %v2225
    %v2778 = vpack.c.b16 %v2242, %v2234
    %v2779 = vpack.c.b16 %v2243, %v2235
    %v2780 = vpack.c.b16 %v2244, %v2236
    %v2781 = vpack.c.b16 %v2245, %v2237
    %v2782 = vpack.c.b16 %v2246, %v2238
    %v2783 = vpack.c.b16 %v2247, %v2239
    %v2784 = vpack.c.b16 %v2248, %v2240
    %v2785 = vpack.c.b16 %v2249, %v2241
    %v2786 = vpack.c.b16 %v2258, %v2250
    %v2787 = vpack.c.b16 %v2259, %v2251
    %v2788 = vpack.c.b16 %v2260, %v2252
    %v2789 = vpack.c.b16 %v2261, %v2253
    %v2790 = vpack.c.b16 %v2262, %v2254
    %v2791 = vpack.c.b16 %v2263, %v2255
    %v2792 = vpack.c.b16 %v2264, %v2256
    %v2793 = vpack.c.b16 %v2265, %v2257
    %v2794 = vpack.c.b16 %v2274, %v2266
    %v2795 = vpack.c.b16 %v2275, %v2267
    %v2796 = vpack.c.b16 %v2276, %v2268
    %v2797 = vpack.c.b16 %v2277, %v2269
    %v2798 = vpack.c.b16 %v2278, %v2270
    %v2799 = vpack.c.b16 %v2279, %v2271
    %v2800 = vpack.c.b16 %v2280, %v2272
    %v2801 = vpack.c.b16 %v2281, %v2273
    %v2802 = vpack.c.b16 %v2290, %v2282
    %v2803 = vpack.c.b16 %v2291, %v2283
    %v2804 = vpack.c.b16 %v2292, %v2284
    %v2805 = vpack.c.b16 %v2293, %v2285
    %v2806 = vpack.c.b16 %v2294, %v2286
    %v2807 = vpack.c.b16 %v2295, %v2287
    %v2808 = vpack.c.b16 %v2296, %v2288
    %v2809 = vpack.c.b16 %v2297, %v2289
    %3322 = vmatpush.bf16.msra.mxu0 %v2354
    %3323 = vmatpush.bf16.msra.mxu0 %v2346
    %3324 = vmatpush.bf16.msra.mxu0 %v2338
    %3325 = vmatpush.bf16.msra.mxu0 %v2330
    %3326 = vmatpush.bf16.msra.mxu0 %v2322
    %3327 = vmatpush.bf16.msra.mxu0 %v2314
    %3328 = vmatpush.bf16.msra.mxu0 %v2306
    %3329 = vmatpush.bf16.msra.mxu0 %v2298
    %3330 = vmatmul.bf16.gmra.mxu0 %v746
    %v3331 = vpop.f32.mrf.mxu0
    %v3332 = vadd.f32 %v706, %v3331
    %v3333 = vpop.f32.mrf.mxu0
    %v3334 = vadd.f32 %v706, %v3333
    %3335 = vdwg.mxu0
    %3336 = vmatpush.bf16.msra.mxu0 %v2418
    %3337 = vmatpush.bf16.msra.mxu0 %v2410
    %3338 = vmatpush.bf16.msra.mxu0 %v2402
    %3339 = vmatpush.bf16.msra.mxu0 %v2394
    %3340 = vmatpush.bf16.msra.mxu0 %v2386
    %3341 = vmatpush.bf16.msra.mxu0 %v2378
    %3342 = vmatpush.bf16.msra.mxu0 %v2370
    %3343 = vmatpush.bf16.msra.mxu0 %v2362
    %3344 = vmatmul.bf16.gmra.mxu0 %v747
    %v3345 = vpop.f32.mrf.mxu0
    %v3346 = vadd.f32 %v3332, %v3345
    %v3347 = vpop.f32.mrf.mxu0
    %v3348 = vadd.f32 %v3334, %v3347
    %3349 = vdwg.mxu0
    %3350 = vmatpush.bf16.msra.mxu0 %v2482
    %3351 = vmatpush.bf16.msra.mxu0 %v2474
    %3352 = vmatpush.bf16.msra.mxu0 %v2466
    %3353 = vmatpush.bf16.msra.mxu0 %v2458
    %3354 = vmatpush.bf16.msra.mxu0 %v2450
    %3355 = vmatpush.bf16.msra.mxu0 %v2442
    %3356 = vmatpush.bf16.msra.mxu0 %v2434
    %3357 = vmatpush.bf16.msra.mxu0 %v2426
    %3358 = vmatmul.bf16.gmra.mxu0 %v748
    %v3359 = vpop.f32.mrf.mxu0
    %v3360 = vadd.f32 %v3346, %v3359
    %v3361 = vpop.f32.mrf.mxu0
    %v3362 = vadd.f32 %v3348, %v3361
    %3363 = vdwg.mxu0
    %3364 = vmatpush.bf16.msra.mxu0 %v2546
    %3365 = vmatpush.bf16.msra.mxu0 %v2538
    %3366 = vmatpush.bf16.msra.mxu0 %v2530
    %3367 = vmatpush.bf16.msra.mxu0 %v2522
    %3368 = vmatpush.bf16.msra.mxu0 %v2514
    %3369 = vmatpush.bf16.msra.mxu0 %v2506
    %3370 = vmatpush.bf16.msra.mxu0 %v2498
    %3371 = vmatpush.bf16.msra.mxu0 %v2490
    %3372 = vmatmul.bf16.gmra.mxu0 %v749
    %v3373 = vpop.f32.mrf.mxu0
    %v3374 = vadd.f32 %v3360, %v3373
    %v3375 = vpop.f32.mrf.mxu0
    %v3376 = vadd.f32 %v3362, %v3375
    %3377 = vdwg.mxu0
    %3378 = vmatpush.bf16.msra.mxu0 %v2610
    %3379 = vmatpush.bf16.msra.mxu0 %v2602
    %3380 = vmatpush.bf16.msra.mxu0 %v2594
    %3381 = vmatpush.bf16.msra.mxu0 %v2586
    %3382 = vmatpush.bf16.msra.mxu0 %v2578
    %3383 = vmatpush.bf16.msra.mxu0 %v2570
    %3384 = vmatpush.bf16.msra.mxu0 %v2562
    %3385 = vmatpush.bf16.msra.mxu0 %v2554
    %3386 = vmatmul.bf16.gmra.mxu0 %v750
    %v3387 = vpop.f32.mrf.mxu0
    %v3388 = vadd.f32 %v3374, %v3387
    %v3389 = vpop.f32.mrf.mxu0
    %v3390 = vadd.f32 %v3376, %v3389
    %3391 = vdwg.mxu0
    %3392 = vmatpush.bf16.msra.mxu0 %v2674
    %3393 = vmatpush.bf16.msra.mxu0 %v2666
    %3394 = vmatpush.bf16.msra.mxu0 %v2658
    %3395 = vmatpush.bf16.msra.mxu0 %v2650
    %3396 = vmatpush.bf16.msra.mxu0 %v2642
    %3397 = vmatpush.bf16.msra.mxu0 %v2634
    %3398 = vmatpush.bf16.msra.mxu0 %v2626
    %3399 = vmatpush.bf16.msra.mxu0 %v2618
    %3400 = vmatmul.bf16.gmra.mxu0 %v751
    %v3401 = vpop.f32.mrf.mxu0
    %v3402 = vadd.f32 %v3388, %v3401
    %v3403 = vpop.f32.mrf.mxu0
    %v3404 = vadd.f32 %v3390, %v3403
    %3405 = vdwg.mxu0
    %3406 = vmatpush.bf16.msra.mxu0 %v2738
    %3407 = vmatpush.bf16.msra.mxu0 %v2730
    %3408 = vmatpush.bf16.msra.mxu0 %v2722
    %3409 = vmatpush.bf16.msra.mxu0 %v2714
    %3410 = vmatpush.bf16.msra.mxu0 %v2706
    %3411 = vmatpush.bf16.msra.mxu0 %v2698
    %3412 = vmatpush.bf16.msra.mxu0 %v2690
    %3413 = vmatpush.bf16.msra.mxu0 %v2682
    %3414 = vmatmul.bf16.gmra.mxu0 %v752
    %v3415 = vpop.f32.mrf.mxu0
    %v3416 = vadd.f32 %v3402, %v3415
    %v3417 = vpop.f32.mrf.mxu0
    %v3418 = vadd.f32 %v3404, %v3417
    %3419 = vdwg.mxu0
    %3420 = vmatpush.bf16.msra.mxu0 %v2802
    %3421 = vmatpush.bf16.msra.mxu0 %v2794
    %3422 = vmatpush.bf16.msra.mxu0 %v2786
    %3423 = vmatpush.bf16.msra.mxu0 %v2778
    %3424 = vmatpush.bf16.msra.mxu0 %v2770
    %3425 = vmatpush.bf16.msra.mxu0 %v2762
    %3426 = vmatpush.bf16.msra.mxu0 %v2754
    %3427 = vmatpush.bf16.msra.mxu0 %v2746
    %3428 = vmatmul.bf16.gmra.mxu0 %v753
    %v3429 = vpop.f32.mrf.mxu0
    %v3430 = vadd.f32 %v3416, %v3429
    %v3431 = vpop.f32.mrf.mxu0
    %v3432 = vadd.f32 %v3418, %v3431
    %3433 = vdwg.mxu0
    %3434 = vmatpush.bf16.msra.mxu0 %v2355
    %3435 = vmatpush.bf16.msra.mxu0 %v2347
    %3436 = vmatpush.bf16.msra.mxu0 %v2339
    %3437 = vmatpush.bf16.msra.mxu0 %v2331
    %3438 = vmatpush.bf16.msra.mxu0 %v2323
    %3439 = vmatpush.bf16.msra.mxu0 %v2315
    %3440 = vmatpush.bf16.msra.mxu0 %v2307
    %3441 = vmatpush.bf16.msra.mxu0 %v2299
    %3442 = vmatmul.bf16.gmra.mxu0 %v746
    %v3443 = vpop.f32.mrf.mxu0
    %v3444 = vadd.f32 %v707, %v3443
    %v3445 = vpop.f32.mrf.mxu0
    %v3446 = vadd.f32 %v707, %v3445
    %3447 = vdwg.mxu0
    %3448 = vmatpush.bf16.msra.mxu0 %v2419
    %3449 = vmatpush.bf16.msra.mxu0 %v2411
    %3450 = vmatpush.bf16.msra.mxu0 %v2403
    %3451 = vmatpush.bf16.msra.mxu0 %v2395
    %3452 = vmatpush.bf16.msra.mxu0 %v2387
    %3453 = vmatpush.bf16.msra.mxu0 %v2379
    %3454 = vmatpush.bf16.msra.mxu0 %v2371
    %3455 = vmatpush.bf16.msra.mxu0 %v2363
    %3456 = vmatmul.bf16.gmra.mxu0 %v747
    %v3457 = vpop.f32.mrf.mxu0
    %v3458 = vadd.f32 %v3444, %v3457
    %v3459 = vpop.f32.mrf.mxu0
    %v3460 = vadd.f32 %v3446, %v3459
    %3461 = vdwg.mxu0
    %3462 = vmatpush.bf16.msra.mxu0 %v2483
    %3463 = vmatpush.bf16.msra.mxu0 %v2475
    %3464 = vmatpush.bf16.msra.mxu0 %v2467
    %3465 = vmatpush.bf16.msra.mxu0 %v2459
    %3466 = vmatpush.bf16.msra.mxu0 %v2451
    %3467 = vmatpush.bf16.msra.mxu0 %v2443
    %3468 = vmatpush.bf16.msra.mxu0 %v2435
    %3469 = vmatpush.bf16.msra.mxu0 %v2427
    %3470 = vmatmul.bf16.gmra.mxu0 %v748
    %v3471 = vpop.f32.mrf.mxu0
    %v3472 = vadd.f32 %v3458, %v3471
    %v3473 = vpop.f32.mrf.mxu0
    %v3474 = vadd.f32 %v3460, %v3473
    %3475 = vdwg.mxu0
    %3476 = vmatpush.bf16.msra.mxu0 %v2547
    %3477 = vmatpush.bf16.msra.mxu0 %v2539
    %3478 = vmatpush.bf16.msra.mxu0 %v2531
    %3479 = vmatpush.bf16.msra.mxu0 %v2523
    %3480 = vmatpush.bf16.msra.mxu0 %v2515
    %3481 = vmatpush.bf16.msra.mxu0 %v2507
    %3482 = vmatpush.bf16.msra.mxu0 %v2499
    %3483 = vmatpush.bf16.msra.mxu0 %v2491
    %3484 = vmatmul.bf16.gmra.mxu0 %v749
    %v3485 = vpop.f32.mrf.mxu0
    %v3486 = vadd.f32 %v3472, %v3485
    %v3487 = vpop.f32.mrf.mxu0
    %v3488 = vadd.f32 %v3474, %v3487
    %3489 = vdwg.mxu0
    %3490 = vmatpush.bf16.msra.mxu0 %v2611
    %3491 = vmatpush.bf16.msra.mxu0 %v2603
    %3492 = vmatpush.bf16.msra.mxu0 %v2595
    %3493 = vmatpush.bf16.msra.mxu0 %v2587
    %3494 = vmatpush.bf16.msra.mxu0 %v2579
    %3495 = vmatpush.bf16.msra.mxu0 %v2571
    %3496 = vmatpush.bf16.msra.mxu0 %v2563
    %3497 = vmatpush.bf16.msra.mxu0 %v2555
    %3498 = vmatmul.bf16.gmra.mxu0 %v750
    %v3499 = vpop.f32.mrf.mxu0
    %v3500 = vadd.f32 %v3486, %v3499
    %v3501 = vpop.f32.mrf.mxu0
    %v3502 = vadd.f32 %v3488, %v3501
    %3503 = vdwg.mxu0
    %3504 = vmatpush.bf16.msra.mxu0 %v2675
    %3505 = vmatpush.bf16.msra.mxu0 %v2667
    %3506 = vmatpush.bf16.msra.mxu0 %v2659
    %3507 = vmatpush.bf16.msra.mxu0 %v2651
    %3508 = vmatpush.bf16.msra.mxu0 %v2643
    %3509 = vmatpush.bf16.msra.mxu0 %v2635
    %3510 = vmatpush.bf16.msra.mxu0 %v2627
    %3511 = vmatpush.bf16.msra.mxu0 %v2619
    %3512 = vmatmul.bf16.gmra.mxu0 %v751
    %v3513 = vpop.f32.mrf.mxu0
    %v3514 = vadd.f32 %v3500, %v3513
    %v3515 = vpop.f32.mrf.mxu0
    %v3516 = vadd.f32 %v3502, %v3515
    %3517 = vdwg.mxu0
    %3518 = vmatpush.bf16.msra.mxu0 %v2739
    %3519 = vmatpush.bf16.msra.mxu0 %v2731
    %3520 = vmatpush.bf16.msra.mxu0 %v2723
    %3521 = vmatpush.bf16.msra.mxu0 %v2715
    %3522 = vmatpush.bf16.msra.mxu0 %v2707
    %3523 = vmatpush.bf16.msra.mxu0 %v2699
    %3524 = vmatpush.bf16.msra.mxu0 %v2691
    %3525 = vmatpush.bf16.msra.mxu0 %v2683
    %3526 = vmatmul.bf16.gmra.mxu0 %v752
    %v3527 = vpop.f32.mrf.mxu0
    %v3528 = vadd.f32 %v3514, %v3527
    %v3529 = vpop.f32.mrf.mxu0
    %v3530 = vadd.f32 %v3516, %v3529
    %3531 = vdwg.mxu0
    %3532 = vmatpush.bf16.msra.mxu0 %v2803
    %3533 = vmatpush.bf16.msra.mxu0 %v2795
    %3534 = vmatpush.bf16.msra.mxu0 %v2787
    %3535 = vmatpush.bf16.msra.mxu0 %v2779
    %3536 = vmatpush.bf16.msra.mxu0 %v2771
    %3537 = vmatpush.bf16.msra.mxu0 %v2763
    %3538 = vmatpush.bf16.msra.mxu0 %v2755
    %3539 = vmatpush.bf16.msra.mxu0 %v2747
    %3540 = vmatmul.bf16.gmra.mxu0 %v753
    %v3541 = vpop.f32.mrf.mxu0
    %v3542 = vadd.f32 %v3528, %v3541
    %v3543 = vpop.f32.mrf.mxu0
    %v3544 = vadd.f32 %v3530, %v3543
    %3545 = vdwg.mxu0
    %3546 = vmatpush.bf16.msra.mxu0 %v2356
    %3547 = vmatpush.bf16.msra.mxu0 %v2348
    %3548 = vmatpush.bf16.msra.mxu0 %v2340
    %3549 = vmatpush.bf16.msra.mxu0 %v2332
    %3550 = vmatpush.bf16.msra.mxu0 %v2324
    %3551 = vmatpush.bf16.msra.mxu0 %v2316
    %3552 = vmatpush.bf16.msra.mxu0 %v2308
    %3553 = vmatpush.bf16.msra.mxu0 %v2300
    %3554 = vmatmul.bf16.gmra.mxu0 %v746
    %v3555 = vpop.f32.mrf.mxu0
    %v3556 = vadd.f32 %v708, %v3555
    %v3557 = vpop.f32.mrf.mxu0
    %v3558 = vadd.f32 %v708, %v3557
    %3559 = vdwg.mxu0
    %3560 = vmatpush.bf16.msra.mxu0 %v2420
    %3561 = vmatpush.bf16.msra.mxu0 %v2412
    %3562 = vmatpush.bf16.msra.mxu0 %v2404
    %3563 = vmatpush.bf16.msra.mxu0 %v2396
    %3564 = vmatpush.bf16.msra.mxu0 %v2388
    %3565 = vmatpush.bf16.msra.mxu0 %v2380
    %3566 = vmatpush.bf16.msra.mxu0 %v2372
    %3567 = vmatpush.bf16.msra.mxu0 %v2364
    %3568 = vmatmul.bf16.gmra.mxu0 %v747
    %v3569 = vpop.f32.mrf.mxu0
    %v3570 = vadd.f32 %v3556, %v3569
    %v3571 = vpop.f32.mrf.mxu0
    %v3572 = vadd.f32 %v3558, %v3571
    %3573 = vdwg.mxu0
    %3574 = vmatpush.bf16.msra.mxu0 %v2484
    %3575 = vmatpush.bf16.msra.mxu0 %v2476
    %3576 = vmatpush.bf16.msra.mxu0 %v2468
    %3577 = vmatpush.bf16.msra.mxu0 %v2460
    %3578 = vmatpush.bf16.msra.mxu0 %v2452
    %3579 = vmatpush.bf16.msra.mxu0 %v2444
    %3580 = vmatpush.bf16.msra.mxu0 %v2436
    %3581 = vmatpush.bf16.msra.mxu0 %v2428
    %3582 = vmatmul.bf16.gmra.mxu0 %v748
    %v3583 = vpop.f32.mrf.mxu0
    %v3584 = vadd.f32 %v3570, %v3583
    %v3585 = vpop.f32.mrf.mxu0
    %v3586 = vadd.f32 %v3572, %v3585
    %3587 = vdwg.mxu0
    %3588 = vmatpush.bf16.msra.mxu0 %v2548
    %3589 = vmatpush.bf16.msra.mxu0 %v2540
    %3590 = vmatpush.bf16.msra.mxu0 %v2532
    %3591 = vmatpush.bf16.msra.mxu0 %v2524
    %3592 = vmatpush.bf16.msra.mxu0 %v2516
    %3593 = vmatpush.bf16.msra.mxu0 %v2508
    %3594 = vmatpush.bf16.msra.mxu0 %v2500
    %3595 = vmatpush.bf16.msra.mxu0 %v2492
    %3596 = vmatmul.bf16.gmra.mxu0 %v749
    %v3597 = vpop.f32.mrf.mxu0
    %v3598 = vadd.f32 %v3584, %v3597
    %v3599 = vpop.f32.mrf.mxu0
    %v3600 = vadd.f32 %v3586, %v3599
    %3601 = vdwg.mxu0
    %3602 = vmatpush.bf16.msra.mxu0 %v2612
    %3603 = vmatpush.bf16.msra.mxu0 %v2604
    %3604 = vmatpush.bf16.msra.mxu0 %v2596
    %3605 = vmatpush.bf16.msra.mxu0 %v2588
    %3606 = vmatpush.bf16.msra.mxu0 %v2580
    %3607 = vmatpush.bf16.msra.mxu0 %v2572
    %3608 = vmatpush.bf16.msra.mxu0 %v2564
    %3609 = vmatpush.bf16.msra.mxu0 %v2556
    %3610 = vmatmul.bf16.gmra.mxu0 %v750
    %v3611 = vpop.f32.mrf.mxu0
    %v3612 = vadd.f32 %v3598, %v3611
    %v3613 = vpop.f32.mrf.mxu0
    %v3614 = vadd.f32 %v3600, %v3613
    %3615 = vdwg.mxu0
    %3616 = vmatpush.bf16.msra.mxu0 %v2676
    %3617 = vmatpush.bf16.msra.mxu0 %v2668
    %3618 = vmatpush.bf16.msra.mxu0 %v2660
    %3619 = vmatpush.bf16.msra.mxu0 %v2652
    %3620 = vmatpush.bf16.msra.mxu0 %v2644
    %3621 = vmatpush.bf16.msra.mxu0 %v2636
    %3622 = vmatpush.bf16.msra.mxu0 %v2628
    %3623 = vmatpush.bf16.msra.mxu0 %v2620
    %3624 = vmatmul.bf16.gmra.mxu0 %v751
    %v3625 = vpop.f32.mrf.mxu0
    %v3626 = vadd.f32 %v3612, %v3625
    %v3627 = vpop.f32.mrf.mxu0
    %v3628 = vadd.f32 %v3614, %v3627
    %3629 = vdwg.mxu0
    %3630 = vmatpush.bf16.msra.mxu0 %v2740
    %3631 = vmatpush.bf16.msra.mxu0 %v2732
    %3632 = vmatpush.bf16.msra.mxu0 %v2724
    %3633 = vmatpush.bf16.msra.mxu0 %v2716
    %3634 = vmatpush.bf16.msra.mxu0 %v2708
    %3635 = vmatpush.bf16.msra.mxu0 %v2700
    %3636 = vmatpush.bf16.msra.mxu0 %v2692
    %3637 = vmatpush.bf16.msra.mxu0 %v2684
    %3638 = vmatmul.bf16.gmra.mxu0 %v752
    %v3639 = vpop.f32.mrf.mxu0
    %v3640 = vadd.f32 %v3626, %v3639
    %v3641 = vpop.f32.mrf.mxu0
    %v3642 = vadd.f32 %v3628, %v3641
    %3643 = vdwg.mxu0
    %3644 = vmatpush.bf16.msra.mxu0 %v2804
    %3645 = vmatpush.bf16.msra.mxu0 %v2796
    %3646 = vmatpush.bf16.msra.mxu0 %v2788
    %3647 = vmatpush.bf16.msra.mxu0 %v2780
    %3648 = vmatpush.bf16.msra.mxu0 %v2772
    %3649 = vmatpush.bf16.msra.mxu0 %v2764
    %3650 = vmatpush.bf16.msra.mxu0 %v2756
    %3651 = vmatpush.bf16.msra.mxu0 %v2748
    %3652 = vmatmul.bf16.gmra.mxu0 %v753
    %v3653 = vpop.f32.mrf.mxu0
    %v3654 = vadd.f32 %v3640, %v3653
    %v3655 = vpop.f32.mrf.mxu0
    %v3656 = vadd.f32 %v3642, %v3655
    %3657 = vdwg.mxu0
    %3658 = vmatpush.bf16.msra.mxu0 %v2357
    %3659 = vmatpush.bf16.msra.mxu0 %v2349
    %3660 = vmatpush.bf16.msra.mxu0 %v2341
    %3661 = vmatpush.bf16.msra.mxu0 %v2333
    %3662 = vmatpush.bf16.msra.mxu0 %v2325
    %3663 = vmatpush.bf16.msra.mxu0 %v2317
    %3664 = vmatpush.bf16.msra.mxu0 %v2309
    %3665 = vmatpush.bf16.msra.mxu0 %v2301
    %3666 = vmatmul.bf16.gmra.mxu0 %v746
    %v3667 = vpop.f32.mrf.mxu0
    %v3668 = vadd.f32 %v709, %v3667
    %v3669 = vpop.f32.mrf.mxu0
    %v3670 = vadd.f32 %v709, %v3669
    %3671 = vdwg.mxu0
    %3672 = vmatpush.bf16.msra.mxu0 %v2421
    %3673 = vmatpush.bf16.msra.mxu0 %v2413
    %3674 = vmatpush.bf16.msra.mxu0 %v2405
    %3675 = vmatpush.bf16.msra.mxu0 %v2397
    %3676 = vmatpush.bf16.msra.mxu0 %v2389
    %3677 = vmatpush.bf16.msra.mxu0 %v2381
    %3678 = vmatpush.bf16.msra.mxu0 %v2373
    %3679 = vmatpush.bf16.msra.mxu0 %v2365
    %3680 = vmatmul.bf16.gmra.mxu0 %v747
    %v3681 = vpop.f32.mrf.mxu0
    %v3682 = vadd.f32 %v3668, %v3681
    %v3683 = vpop.f32.mrf.mxu0
    %v3684 = vadd.f32 %v3670, %v3683
    %3685 = vdwg.mxu0
    %3686 = vmatpush.bf16.msra.mxu0 %v2485
    %3687 = vmatpush.bf16.msra.mxu0 %v2477
    %3688 = vmatpush.bf16.msra.mxu0 %v2469
    %3689 = vmatpush.bf16.msra.mxu0 %v2461
    %3690 = vmatpush.bf16.msra.mxu0 %v2453
    %3691 = vmatpush.bf16.msra.mxu0 %v2445
    %3692 = vmatpush.bf16.msra.mxu0 %v2437
    %3693 = vmatpush.bf16.msra.mxu0 %v2429
    %3694 = vmatmul.bf16.gmra.mxu0 %v748
    %v3695 = vpop.f32.mrf.mxu0
    %v3696 = vadd.f32 %v3682, %v3695
    %v3697 = vpop.f32.mrf.mxu0
    %v3698 = vadd.f32 %v3684, %v3697
    %3699 = vdwg.mxu0
    %3700 = vmatpush.bf16.msra.mxu0 %v2549
    %3701 = vmatpush.bf16.msra.mxu0 %v2541
    %3702 = vmatpush.bf16.msra.mxu0 %v2533
    %3703 = vmatpush.bf16.msra.mxu0 %v2525
    %3704 = vmatpush.bf16.msra.mxu0 %v2517
    %3705 = vmatpush.bf16.msra.mxu0 %v2509
    %3706 = vmatpush.bf16.msra.mxu0 %v2501
    %3707 = vmatpush.bf16.msra.mxu0 %v2493
    %3708 = vmatmul.bf16.gmra.mxu0 %v749
    %v3709 = vpop.f32.mrf.mxu0
    %v3710 = vadd.f32 %v3696, %v3709
    %v3711 = vpop.f32.mrf.mxu0
    %v3712 = vadd.f32 %v3698, %v3711
    %3713 = vdwg.mxu0
    %3714 = vmatpush.bf16.msra.mxu0 %v2613
    %3715 = vmatpush.bf16.msra.mxu0 %v2605
    %3716 = vmatpush.bf16.msra.mxu0 %v2597
    %3717 = vmatpush.bf16.msra.mxu0 %v2589
    %3718 = vmatpush.bf16.msra.mxu0 %v2581
    %3719 = vmatpush.bf16.msra.mxu0 %v2573
    %3720 = vmatpush.bf16.msra.mxu0 %v2565
    %3721 = vmatpush.bf16.msra.mxu0 %v2557
    %3722 = vmatmul.bf16.gmra.mxu0 %v750
    %v3723 = vpop.f32.mrf.mxu0
    %v3724 = vadd.f32 %v3710, %v3723
    %v3725 = vpop.f32.mrf.mxu0
    %v3726 = vadd.f32 %v3712, %v3725
    %3727 = vdwg.mxu0
    %3728 = vmatpush.bf16.msra.mxu0 %v2677
    %3729 = vmatpush.bf16.msra.mxu0 %v2669
    %3730 = vmatpush.bf16.msra.mxu0 %v2661
    %3731 = vmatpush.bf16.msra.mxu0 %v2653
    %3732 = vmatpush.bf16.msra.mxu0 %v2645
    %3733 = vmatpush.bf16.msra.mxu0 %v2637
    %3734 = vmatpush.bf16.msra.mxu0 %v2629
    %3735 = vmatpush.bf16.msra.mxu0 %v2621
    %3736 = vmatmul.bf16.gmra.mxu0 %v751
    %v3737 = vpop.f32.mrf.mxu0
    %v3738 = vadd.f32 %v3724, %v3737
    %v3739 = vpop.f32.mrf.mxu0
    %v3740 = vadd.f32 %v3726, %v3739
    %3741 = vdwg.mxu0
    %3742 = vmatpush.bf16.msra.mxu0 %v2741
    %3743 = vmatpush.bf16.msra.mxu0 %v2733
    %3744 = vmatpush.bf16.msra.mxu0 %v2725
    %3745 = vmatpush.bf16.msra.mxu0 %v2717
    %3746 = vmatpush.bf16.msra.mxu0 %v2709
    %3747 = vmatpush.bf16.msra.mxu0 %v2701
    %3748 = vmatpush.bf16.msra.mxu0 %v2693
    %3749 = vmatpush.bf16.msra.mxu0 %v2685
    %3750 = vmatmul.bf16.gmra.mxu0 %v752
    %v3751 = vpop.f32.mrf.mxu0
    %v3752 = vadd.f32 %v3738, %v3751
    %v3753 = vpop.f32.mrf.mxu0
    %v3754 = vadd.f32 %v3740, %v3753
    %3755 = vdwg.mxu0
    %3756 = vmatpush.bf16.msra.mxu0 %v2805
    %3757 = vmatpush.bf16.msra.mxu0 %v2797
    %3758 = vmatpush.bf16.msra.mxu0 %v2789
    %3759 = vmatpush.bf16.msra.mxu0 %v2781
    %3760 = vmatpush.bf16.msra.mxu0 %v2773
    %3761 = vmatpush.bf16.msra.mxu0 %v2765
    %3762 = vmatpush.bf16.msra.mxu0 %v2757
    %3763 = vmatpush.bf16.msra.mxu0 %v2749
    %3764 = vmatmul.bf16.gmra.mxu0 %v753
    %v3765 = vpop.f32.mrf.mxu0
    %v3766 = vadd.f32 %v3752, %v3765
    %v3767 = vpop.f32.mrf.mxu0
    %v3768 = vadd.f32 %v3754, %v3767
    %3769 = vdwg.mxu0
    %3770 = vmatpush.bf16.msra.mxu0 %v2358
    %3771 = vmatpush.bf16.msra.mxu0 %v2350
    %3772 = vmatpush.bf16.msra.mxu0 %v2342
    %3773 = vmatpush.bf16.msra.mxu0 %v2334
    %3774 = vmatpush.bf16.msra.mxu0 %v2326
    %3775 = vmatpush.bf16.msra.mxu0 %v2318
    %3776 = vmatpush.bf16.msra.mxu0 %v2310
    %3777 = vmatpush.bf16.msra.mxu0 %v2302
    %3778 = vmatmul.bf16.gmra.mxu0 %v746
    %v3779 = vpop.f32.mrf.mxu0
    %v3780 = vadd.f32 %v710, %v3779
    %v3781 = vpop.f32.mrf.mxu0
    %v3782 = vadd.f32 %v710, %v3781
    %3783 = vdwg.mxu0
    %3784 = vmatpush.bf16.msra.mxu0 %v2422
    %3785 = vmatpush.bf16.msra.mxu0 %v2414
    %3786 = vmatpush.bf16.msra.mxu0 %v2406
    %3787 = vmatpush.bf16.msra.mxu0 %v2398
    %3788 = vmatpush.bf16.msra.mxu0 %v2390
    %3789 = vmatpush.bf16.msra.mxu0 %v2382
    %3790 = vmatpush.bf16.msra.mxu0 %v2374
    %3791 = vmatpush.bf16.msra.mxu0 %v2366
    %3792 = vmatmul.bf16.gmra.mxu0 %v747
    %v3793 = vpop.f32.mrf.mxu0
    %v3794 = vadd.f32 %v3780, %v3793
    %v3795 = vpop.f32.mrf.mxu0
    %v3796 = vadd.f32 %v3782, %v3795
    %3797 = vdwg.mxu0
    %3798 = vmatpush.bf16.msra.mxu0 %v2486
    %3799 = vmatpush.bf16.msra.mxu0 %v2478
    %3800 = vmatpush.bf16.msra.mxu0 %v2470
    %3801 = vmatpush.bf16.msra.mxu0 %v2462
    %3802 = vmatpush.bf16.msra.mxu0 %v2454
    %3803 = vmatpush.bf16.msra.mxu0 %v2446
    %3804 = vmatpush.bf16.msra.mxu0 %v2438
    %3805 = vmatpush.bf16.msra.mxu0 %v2430
    %3806 = vmatmul.bf16.gmra.mxu0 %v748
    %v3807 = vpop.f32.mrf.mxu0
    %v3808 = vadd.f32 %v3794, %v3807
    %v3809 = vpop.f32.mrf.mxu0
    %v3810 = vadd.f32 %v3796, %v3809
    %3811 = vdwg.mxu0
    %3812 = vmatpush.bf16.msra.mxu0 %v2550
    %3813 = vmatpush.bf16.msra.mxu0 %v2542
    %3814 = vmatpush.bf16.msra.mxu0 %v2534
    %3815 = vmatpush.bf16.msra.mxu0 %v2526
    %3816 = vmatpush.bf16.msra.mxu0 %v2518
    %3817 = vmatpush.bf16.msra.mxu0 %v2510
    %3818 = vmatpush.bf16.msra.mxu0 %v2502
    %3819 = vmatpush.bf16.msra.mxu0 %v2494
    %3820 = vmatmul.bf16.gmra.mxu0 %v749
    %v3821 = vpop.f32.mrf.mxu0
    %v3822 = vadd.f32 %v3808, %v3821
    %v3823 = vpop.f32.mrf.mxu0
    %v3824 = vadd.f32 %v3810, %v3823
    %3825 = vdwg.mxu0
    %3826 = vmatpush.bf16.msra.mxu0 %v2614
    %3827 = vmatpush.bf16.msra.mxu0 %v2606
    %3828 = vmatpush.bf16.msra.mxu0 %v2598
    %3829 = vmatpush.bf16.msra.mxu0 %v2590
    %3830 = vmatpush.bf16.msra.mxu0 %v2582
    %3831 = vmatpush.bf16.msra.mxu0 %v2574
    %3832 = vmatpush.bf16.msra.mxu0 %v2566
    %3833 = vmatpush.bf16.msra.mxu0 %v2558
    %3834 = vmatmul.bf16.gmra.mxu0 %v750
    %v3835 = vpop.f32.mrf.mxu0
    %v3836 = vadd.f32 %v3822, %v3835
    %v3837 = vpop.f32.mrf.mxu0
    %v3838 = vadd.f32 %v3824, %v3837
    %3839 = vdwg.mxu0
    %3840 = vmatpush.bf16.msra.mxu0 %v2678
    %3841 = vmatpush.bf16.msra.mxu0 %v2670
    %3842 = vmatpush.bf16.msra.mxu0 %v2662
    %3843 = vmatpush.bf16.msra.mxu0 %v2654
    %3844 = vmatpush.bf16.msra.mxu0 %v2646
    %3845 = vmatpush.bf16.msra.mxu0 %v2638
    %3846 = vmatpush.bf16.msra.mxu0 %v2630
    %3847 = vmatpush.bf16.msra.mxu0 %v2622
    %3848 = vmatmul.bf16.gmra.mxu0 %v751
    %v3849 = vpop.f32.mrf.mxu0
    %v3850 = vadd.f32 %v3836, %v3849
    %v3851 = vpop.f32.mrf.mxu0
    %v3852 = vadd.f32 %v3838, %v3851
    %3853 = vdwg.mxu0
    %3854 = vmatpush.bf16.msra.mxu0 %v2742
    %3855 = vmatpush.bf16.msra.mxu0 %v2734
    %3856 = vmatpush.bf16.msra.mxu0 %v2726
    %3857 = vmatpush.bf16.msra.mxu0 %v2718
    %3858 = vmatpush.bf16.msra.mxu0 %v2710
    %3859 = vmatpush.bf16.msra.mxu0 %v2702
    %3860 = vmatpush.bf16.msra.mxu0 %v2694
    %3861 = vmatpush.bf16.msra.mxu0 %v2686
    %3862 = vmatmul.bf16.gmra.mxu0 %v752
    %v3863 = vpop.f32.mrf.mxu0
    %v3864 = vadd.f32 %v3850, %v3863
    %v3865 = vpop.f32.mrf.mxu0
    %v3866 = vadd.f32 %v3852, %v3865
    %3867 = vdwg.mxu0
    %3868 = vmatpush.bf16.msra.mxu0 %v2806
    %3869 = vmatpush.bf16.msra.mxu0 %v2798
    %3870 = vmatpush.bf16.msra.mxu0 %v2790
    %3871 = vmatpush.bf16.msra.mxu0 %v2782
    %3872 = vmatpush.bf16.msra.mxu0 %v2774
    %3873 = vmatpush.bf16.msra.mxu0 %v2766
    %3874 = vmatpush.bf16.msra.mxu0 %v2758
    %3875 = vmatpush.bf16.msra.mxu0 %v2750
    %3876 = vmatmul.bf16.gmra.mxu0 %v753
    %v3877 = vpop.f32.mrf.mxu0
    %v3878 = vadd.f32 %v3864, %v3877
    %v3879 = vpop.f32.mrf.mxu0
    %v3880 = vadd.f32 %v3866, %v3879
    %3881 = vdwg.mxu0
    %3882 = vmatpush.bf16.msra.mxu0 %v2359
    %3883 = vmatpush.bf16.msra.mxu0 %v2351
    %3884 = vmatpush.bf16.msra.mxu0 %v2343
    %3885 = vmatpush.bf16.msra.mxu0 %v2335
    %3886 = vmatpush.bf16.msra.mxu0 %v2327
    %3887 = vmatpush.bf16.msra.mxu0 %v2319
    %3888 = vmatpush.bf16.msra.mxu0 %v2311
    %3889 = vmatpush.bf16.msra.mxu0 %v2303
    %3890 = vmatmul.bf16.gmra.mxu0 %v746
    %v3891 = vpop.f32.mrf.mxu0
    %v3892 = vadd.f32 %v711, %v3891
    %v3893 = vpop.f32.mrf.mxu0
    %v3894 = vadd.f32 %v711, %v3893
    %3895 = vdwg.mxu0
    %3896 = vmatpush.bf16.msra.mxu0 %v2423
    %3897 = vmatpush.bf16.msra.mxu0 %v2415
    %3898 = vmatpush.bf16.msra.mxu0 %v2407
    %3899 = vmatpush.bf16.msra.mxu0 %v2399
    %3900 = vmatpush.bf16.msra.mxu0 %v2391
    %3901 = vmatpush.bf16.msra.mxu0 %v2383
    %3902 = vmatpush.bf16.msra.mxu0 %v2375
    %3903 = vmatpush.bf16.msra.mxu0 %v2367
    %3904 = vmatmul.bf16.gmra.mxu0 %v747
    %v3905 = vpop.f32.mrf.mxu0
    %v3906 = vadd.f32 %v3892, %v3905
    %v3907 = vpop.f32.mrf.mxu0
    %v3908 = vadd.f32 %v3894, %v3907
    %3909 = vdwg.mxu0
    %3910 = vmatpush.bf16.msra.mxu0 %v2487
    %3911 = vmatpush.bf16.msra.mxu0 %v2479
    %3912 = vmatpush.bf16.msra.mxu0 %v2471
    %3913 = vmatpush.bf16.msra.mxu0 %v2463
    %3914 = vmatpush.bf16.msra.mxu0 %v2455
    %3915 = vmatpush.bf16.msra.mxu0 %v2447
    %3916 = vmatpush.bf16.msra.mxu0 %v2439
    %3917 = vmatpush.bf16.msra.mxu0 %v2431
    %3918 = vmatmul.bf16.gmra.mxu0 %v748
    %v3919 = vpop.f32.mrf.mxu0
    %v3920 = vadd.f32 %v3906, %v3919
    %v3921 = vpop.f32.mrf.mxu0
    %v3922 = vadd.f32 %v3908, %v3921
    %3923 = vdwg.mxu0
    %3924 = vmatpush.bf16.msra.mxu0 %v2551
    %3925 = vmatpush.bf16.msra.mxu0 %v2543
    %3926 = vmatpush.bf16.msra.mxu0 %v2535
    %3927 = vmatpush.bf16.msra.mxu0 %v2527
    %3928 = vmatpush.bf16.msra.mxu0 %v2519
    %3929 = vmatpush.bf16.msra.mxu0 %v2511
    %3930 = vmatpush.bf16.msra.mxu0 %v2503
    %3931 = vmatpush.bf16.msra.mxu0 %v2495
    %3932 = vmatmul.bf16.gmra.mxu0 %v749
    %v3933 = vpop.f32.mrf.mxu0
    %v3934 = vadd.f32 %v3920, %v3933
    %v3935 = vpop.f32.mrf.mxu0
    %v3936 = vadd.f32 %v3922, %v3935
    %3937 = vdwg.mxu0
    %3938 = vmatpush.bf16.msra.mxu0 %v2615
    %3939 = vmatpush.bf16.msra.mxu0 %v2607
    %3940 = vmatpush.bf16.msra.mxu0 %v2599
    %3941 = vmatpush.bf16.msra.mxu0 %v2591
    %3942 = vmatpush.bf16.msra.mxu0 %v2583
    %3943 = vmatpush.bf16.msra.mxu0 %v2575
    %3944 = vmatpush.bf16.msra.mxu0 %v2567
    %3945 = vmatpush.bf16.msra.mxu0 %v2559
    %3946 = vmatmul.bf16.gmra.mxu0 %v750
    %v3947 = vpop.f32.mrf.mxu0
    %v3948 = vadd.f32 %v3934, %v3947
    %v3949 = vpop.f32.mrf.mxu0
    %v3950 = vadd.f32 %v3936, %v3949
    %3951 = vdwg.mxu0
    %3952 = vmatpush.bf16.msra.mxu0 %v2679
    %3953 = vmatpush.bf16.msra.mxu0 %v2671
    %3954 = vmatpush.bf16.msra.mxu0 %v2663
    %3955 = vmatpush.bf16.msra.mxu0 %v2655
    %3956 = vmatpush.bf16.msra.mxu0 %v2647
    %3957 = vmatpush.bf16.msra.mxu0 %v2639
    %3958 = vmatpush.bf16.msra.mxu0 %v2631
    %3959 = vmatpush.bf16.msra.mxu0 %v2623
    %3960 = vmatmul.bf16.gmra.mxu0 %v751
    %v3961 = vpop.f32.mrf.mxu0
    %v3962 = vadd.f32 %v3948, %v3961
    %v3963 = vpop.f32.mrf.mxu0
    %v3964 = vadd.f32 %v3950, %v3963
    %3965 = vdwg.mxu0
    %3966 = vmatpush.bf16.msra.mxu0 %v2743
    %3967 = vmatpush.bf16.msra.mxu0 %v2735
    %3968 = vmatpush.bf16.msra.mxu0 %v2727
    %3969 = vmatpush.bf16.msra.mxu0 %v2719
    %3970 = vmatpush.bf16.msra.mxu0 %v2711
    %3971 = vmatpush.bf16.msra.mxu0 %v2703
    %3972 = vmatpush.bf16.msra.mxu0 %v2695
    %3973 = vmatpush.bf16.msra.mxu0 %v2687
    %3974 = vmatmul.bf16.gmra.mxu0 %v752
    %v3975 = vpop.f32.mrf.mxu0
    %v3976 = vadd.f32 %v3962, %v3975
    %v3977 = vpop.f32.mrf.mxu0
    %v3978 = vadd.f32 %v3964, %v3977
    %3979 = vdwg.mxu0
    %3980 = vmatpush.bf16.msra.mxu0 %v2807
    %3981 = vmatpush.bf16.msra.mxu0 %v2799
    %3982 = vmatpush.bf16.msra.mxu0 %v2791
    %3983 = vmatpush.bf16.msra.mxu0 %v2783
    %3984 = vmatpush.bf16.msra.mxu0 %v2775
    %3985 = vmatpush.bf16.msra.mxu0 %v2767
    %3986 = vmatpush.bf16.msra.mxu0 %v2759
    %3987 = vmatpush.bf16.msra.mxu0 %v2751
    %3988 = vmatmul.bf16.gmra.mxu0 %v753
    %v3989 = vpop.f32.mrf.mxu0
    %v3990 = vadd.f32 %v3976, %v3989
    %v3991 = vpop.f32.mrf.mxu0
    %v3992 = vadd.f32 %v3978, %v3991
    %3993 = vdwg.mxu0
    %3994 = vmatpush.bf16.msra.mxu0 %v2360
    %3995 = vmatpush.bf16.msra.mxu0 %v2352
    %3996 = vmatpush.bf16.msra.mxu0 %v2344
    %3997 = vmatpush.bf16.msra.mxu0 %v2336
    %3998 = vmatpush.bf16.msra.mxu0 %v2328
    %3999 = vmatpush.bf16.msra.mxu0 %v2320
    %4000 = vmatpush.bf16.msra.mxu0 %v2312
    %4001 = vmatpush.bf16.msra.mxu0 %v2304
    %4002 = vmatmul.bf16.gmra.mxu0 %v746
    %v4003 = vpop.f32.mrf.mxu0
    %v4004 = vadd.f32 %v712, %v4003
    %v4005 = vpop.f32.mrf.mxu0
    %v4006 = vadd.f32 %v712, %v4005
    %4007 = vdwg.mxu0
    %4008 = vmatpush.bf16.msra.mxu0 %v2424
    %4009 = vmatpush.bf16.msra.mxu0 %v2416
    %4010 = vmatpush.bf16.msra.mxu0 %v2408
    %4011 = vmatpush.bf16.msra.mxu0 %v2400
    %4012 = vmatpush.bf16.msra.mxu0 %v2392
    %4013 = vmatpush.bf16.msra.mxu0 %v2384
    %4014 = vmatpush.bf16.msra.mxu0 %v2376
    %4015 = vmatpush.bf16.msra.mxu0 %v2368
    %4016 = vmatmul.bf16.gmra.mxu0 %v747
    %v4017 = vpop.f32.mrf.mxu0
    %v4018 = vadd.f32 %v4004, %v4017
    %v4019 = vpop.f32.mrf.mxu0
    %v4020 = vadd.f32 %v4006, %v4019
    %4021 = vdwg.mxu0
    %4022 = vmatpush.bf16.msra.mxu0 %v2488
    %4023 = vmatpush.bf16.msra.mxu0 %v2480
    %4024 = vmatpush.bf16.msra.mxu0 %v2472
    %4025 = vmatpush.bf16.msra.mxu0 %v2464
    %4026 = vmatpush.bf16.msra.mxu0 %v2456
    %4027 = vmatpush.bf16.msra.mxu0 %v2448
    %4028 = vmatpush.bf16.msra.mxu0 %v2440
    %4029 = vmatpush.bf16.msra.mxu0 %v2432
    %4030 = vmatmul.bf16.gmra.mxu0 %v748
    %v4031 = vpop.f32.mrf.mxu0
    %v4032 = vadd.f32 %v4018, %v4031
    %v4033 = vpop.f32.mrf.mxu0
    %v4034 = vadd.f32 %v4020, %v4033
    %4035 = vdwg.mxu0
    %4036 = vmatpush.bf16.msra.mxu0 %v2552
    %4037 = vmatpush.bf16.msra.mxu0 %v2544
    %4038 = vmatpush.bf16.msra.mxu0 %v2536
    %4039 = vmatpush.bf16.msra.mxu0 %v2528
    %4040 = vmatpush.bf16.msra.mxu0 %v2520
    %4041 = vmatpush.bf16.msra.mxu0 %v2512
    %4042 = vmatpush.bf16.msra.mxu0 %v2504
    %4043 = vmatpush.bf16.msra.mxu0 %v2496
    %4044 = vmatmul.bf16.gmra.mxu0 %v749
    %v4045 = vpop.f32.mrf.mxu0
    %v4046 = vadd.f32 %v4032, %v4045
    %v4047 = vpop.f32.mrf.mxu0
    %v4048 = vadd.f32 %v4034, %v4047
    %4049 = vdwg.mxu0
    %4050 = vmatpush.bf16.msra.mxu0 %v2616
    %4051 = vmatpush.bf16.msra.mxu0 %v2608
    %4052 = vmatpush.bf16.msra.mxu0 %v2600
    %4053 = vmatpush.bf16.msra.mxu0 %v2592
    %4054 = vmatpush.bf16.msra.mxu0 %v2584
    %4055 = vmatpush.bf16.msra.mxu0 %v2576
    %4056 = vmatpush.bf16.msra.mxu0 %v2568
    %4057 = vmatpush.bf16.msra.mxu0 %v2560
    %4058 = vmatmul.bf16.gmra.mxu0 %v750
    %v4059 = vpop.f32.mrf.mxu0
    %v4060 = vadd.f32 %v4046, %v4059
    %v4061 = vpop.f32.mrf.mxu0
    %v4062 = vadd.f32 %v4048, %v4061
    %4063 = vdwg.mxu0
    %4064 = vmatpush.bf16.msra.mxu0 %v2680
    %4065 = vmatpush.bf16.msra.mxu0 %v2672
    %4066 = vmatpush.bf16.msra.mxu0 %v2664
    %4067 = vmatpush.bf16.msra.mxu0 %v2656
    %4068 = vmatpush.bf16.msra.mxu0 %v2648
    %4069 = vmatpush.bf16.msra.mxu0 %v2640
    %4070 = vmatpush.bf16.msra.mxu0 %v2632
    %4071 = vmatpush.bf16.msra.mxu0 %v2624
    %4072 = vmatmul.bf16.gmra.mxu0 %v751
    %v4073 = vpop.f32.mrf.mxu0
    %v4074 = vadd.f32 %v4060, %v4073
    %v4075 = vpop.f32.mrf.mxu0
    %v4076 = vadd.f32 %v4062, %v4075
    %4077 = vdwg.mxu0
    %4078 = vmatpush.bf16.msra.mxu0 %v2744
    %4079 = vmatpush.bf16.msra.mxu0 %v2736
    %4080 = vmatpush.bf16.msra.mxu0 %v2728
    %4081 = vmatpush.bf16.msra.mxu0 %v2720
    %4082 = vmatpush.bf16.msra.mxu0 %v2712
    %4083 = vmatpush.bf16.msra.mxu0 %v2704
    %4084 = vmatpush.bf16.msra.mxu0 %v2696
    %4085 = vmatpush.bf16.msra.mxu0 %v2688
    %4086 = vmatmul.bf16.gmra.mxu0 %v752
    %v4087 = vpop.f32.mrf.mxu0
    %v4088 = vadd.f32 %v4074, %v4087
    %v4089 = vpop.f32.mrf.mxu0
    %v4090 = vadd.f32 %v4076, %v4089
    %4091 = vdwg.mxu0
    %4092 = vmatpush.bf16.msra.mxu0 %v2808
    %4093 = vmatpush.bf16.msra.mxu0 %v2800
    %4094 = vmatpush.bf16.msra.mxu0 %v2792
    %4095 = vmatpush.bf16.msra.mxu0 %v2784
    %4096 = vmatpush.bf16.msra.mxu0 %v2776
    %4097 = vmatpush.bf16.msra.mxu0 %v2768
    %4098 = vmatpush.bf16.msra.mxu0 %v2760
    %4099 = vmatpush.bf16.msra.mxu0 %v2752
    %4100 = vmatmul.bf16.gmra.mxu0 %v753
    %v4101 = vpop.f32.mrf.mxu0
    %v4102 = vadd.f32 %v4088, %v4101
    %v4103 = vpop.f32.mrf.mxu0
    %v4104 = vadd.f32 %v4090, %v4103
    %4105 = vdwg.mxu0
    %4106 = vmatpush.bf16.msra.mxu0 %v2361
    %4107 = vmatpush.bf16.msra.mxu0 %v2353
    %4108 = vmatpush.bf16.msra.mxu0 %v2345
    %4109 = vmatpush.bf16.msra.mxu0 %v2337
    %4110 = vmatpush.bf16.msra.mxu0 %v2329
    %4111 = vmatpush.bf16.msra.mxu0 %v2321
    %4112 = vmatpush.bf16.msra.mxu0 %v2313
    %4113 = vmatpush.bf16.msra.mxu0 %v2305
    %4114 = vmatmul.bf16.gmra.mxu0 %v746
    %v4115 = vpop.f32.mrf.mxu0
    %v4116 = vadd.f32 %v713, %v4115
    %v4117 = vpop.f32.mrf.mxu0
    %v4118 = vadd.f32 %v713, %v4117
    %4119 = vdwg.mxu0
    %4120 = vmatpush.bf16.msra.mxu0 %v2425
    %4121 = vmatpush.bf16.msra.mxu0 %v2417
    %4122 = vmatpush.bf16.msra.mxu0 %v2409
    %4123 = vmatpush.bf16.msra.mxu0 %v2401
    %4124 = vmatpush.bf16.msra.mxu0 %v2393
    %4125 = vmatpush.bf16.msra.mxu0 %v2385
    %4126 = vmatpush.bf16.msra.mxu0 %v2377
    %4127 = vmatpush.bf16.msra.mxu0 %v2369
    %4128 = vmatmul.bf16.gmra.mxu0 %v747
    %v4129 = vpop.f32.mrf.mxu0
    %v4130 = vadd.f32 %v4116, %v4129
    %v4131 = vpop.f32.mrf.mxu0
    %v4132 = vadd.f32 %v4118, %v4131
    %4133 = vdwg.mxu0
    %4134 = vmatpush.bf16.msra.mxu0 %v2489
    %4135 = vmatpush.bf16.msra.mxu0 %v2481
    %4136 = vmatpush.bf16.msra.mxu0 %v2473
    %4137 = vmatpush.bf16.msra.mxu0 %v2465
    %4138 = vmatpush.bf16.msra.mxu0 %v2457
    %4139 = vmatpush.bf16.msra.mxu0 %v2449
    %4140 = vmatpush.bf16.msra.mxu0 %v2441
    %4141 = vmatpush.bf16.msra.mxu0 %v2433
    %4142 = vmatmul.bf16.gmra.mxu0 %v748
    %v4143 = vpop.f32.mrf.mxu0
    %v4144 = vadd.f32 %v4130, %v4143
    %v4145 = vpop.f32.mrf.mxu0
    %v4146 = vadd.f32 %v4132, %v4145
    %4147 = vdwg.mxu0
    %4148 = vmatpush.bf16.msra.mxu0 %v2553
    %4149 = vmatpush.bf16.msra.mxu0 %v2545
    %4150 = vmatpush.bf16.msra.mxu0 %v2537
    %4151 = vmatpush.bf16.msra.mxu0 %v2529
    %4152 = vmatpush.bf16.msra.mxu0 %v2521
    %4153 = vmatpush.bf16.msra.mxu0 %v2513
    %4154 = vmatpush.bf16.msra.mxu0 %v2505
    %4155 = vmatpush.bf16.msra.mxu0 %v2497
    %4156 = vmatmul.bf16.gmra.mxu0 %v749
    %v4157 = vpop.f32.mrf.mxu0
    %v4158 = vadd.f32 %v4144, %v4157
    %v4159 = vpop.f32.mrf.mxu0
    %v4160 = vadd.f32 %v4146, %v4159
    %4161 = vdwg.mxu0
    %4162 = vmatpush.bf16.msra.mxu0 %v2617
    %4163 = vmatpush.bf16.msra.mxu0 %v2609
    %4164 = vmatpush.bf16.msra.mxu0 %v2601
    %4165 = vmatpush.bf16.msra.mxu0 %v2593
    %4166 = vmatpush.bf16.msra.mxu0 %v2585
    %4167 = vmatpush.bf16.msra.mxu0 %v2577
    %4168 = vmatpush.bf16.msra.mxu0 %v2569
    %4169 = vmatpush.bf16.msra.mxu0 %v2561
    %4170 = vmatmul.bf16.gmra.mxu0 %v750
    %v4171 = vpop.f32.mrf.mxu0
    %v4172 = vadd.f32 %v4158, %v4171
    %v4173 = vpop.f32.mrf.mxu0
    %v4174 = vadd.f32 %v4160, %v4173
    %4175 = vdwg.mxu0
    %4176 = vmatpush.bf16.msra.mxu0 %v2681
    %4177 = vmatpush.bf16.msra.mxu0 %v2673
    %4178 = vmatpush.bf16.msra.mxu0 %v2665
    %4179 = vmatpush.bf16.msra.mxu0 %v2657
    %4180 = vmatpush.bf16.msra.mxu0 %v2649
    %4181 = vmatpush.bf16.msra.mxu0 %v2641
    %4182 = vmatpush.bf16.msra.mxu0 %v2633
    %4183 = vmatpush.bf16.msra.mxu0 %v2625
    %4184 = vmatmul.bf16.gmra.mxu0 %v751
    %v4185 = vpop.f32.mrf.mxu0
    %v4186 = vadd.f32 %v4172, %v4185
    %v4187 = vpop.f32.mrf.mxu0
    %v4188 = vadd.f32 %v4174, %v4187
    %4189 = vdwg.mxu0
    %4190 = vmatpush.bf16.msra.mxu0 %v2745
    %4191 = vmatpush.bf16.msra.mxu0 %v2737
    %4192 = vmatpush.bf16.msra.mxu0 %v2729
    %4193 = vmatpush.bf16.msra.mxu0 %v2721
    %4194 = vmatpush.bf16.msra.mxu0 %v2713
    %4195 = vmatpush.bf16.msra.mxu0 %v2705
    %4196 = vmatpush.bf16.msra.mxu0 %v2697
    %4197 = vmatpush.bf16.msra.mxu0 %v2689
    %4198 = vmatmul.bf16.gmra.mxu0 %v752
    %v4199 = vpop.f32.mrf.mxu0
    %v4200 = vadd.f32 %v4186, %v4199
    %v4201 = vpop.f32.mrf.mxu0
    %v4202 = vadd.f32 %v4188, %v4201
    %4203 = vdwg.mxu0
    %4204 = vmatpush.bf16.msra.mxu0 %v2809
    %4205 = vmatpush.bf16.msra.mxu0 %v2801
    %4206 = vmatpush.bf16.msra.mxu0 %v2793
    %4207 = vmatpush.bf16.msra.mxu0 %v2785
    %4208 = vmatpush.bf16.msra.mxu0 %v2777
    %4209 = vmatpush.bf16.msra.mxu0 %v2769
    %4210 = vmatpush.bf16.msra.mxu0 %v2761
    %4211 = vmatpush.bf16.msra.mxu0 %v2753
    %4212 = vmatmul.bf16.gmra.mxu0 %v753
    %v4213 = vpop.f32.mrf.mxu0
    %v4214 = vadd.f32 %v4200, %v4213
    %v4215 = vpop.f32.mrf.mxu0
    %v4216 = vadd.f32 %v4202, %v4215
    %4217 = vdwg.mxu0
    %vm4218 = vcmp.gt.f32.partialorder %v3430, 0.0
    %vm4219 = vcmp.gt.f32.partialorder %v3542, 0.0
    %vm4220 = vcmp.gt.f32.partialorder %v3654, 0.0
    %vm4221 = vcmp.gt.f32.partialorder %v3766, 0.0
    %vm4222 = vcmp.gt.f32.partialorder %v3878, 0.0
    %vm4223 = vcmp.gt.f32.partialorder %v3990, 0.0
    %vm4224 = vcmp.gt.f32.partialorder %v4102, 0.0
    %vm4225 = vcmp.gt.f32.partialorder %v4214, 0.0
    %vm4226 = vcmp.gt.f32.partialorder %v3432, 0.0
    %vm4227 = vcmp.gt.f32.partialorder %v3544, 0.0
    %vm4228 = vcmp.gt.f32.partialorder %v3656, 0.0
    %vm4229 = vcmp.gt.f32.partialorder %v3768, 0.0
    %vm4230 = vcmp.gt.f32.partialorder %v3880, 0.0
    %vm4231 = vcmp.gt.f32.partialorder %v3992, 0.0
    %vm4232 = vcmp.gt.f32.partialorder %v4104, 0.0
    %vm4233 = vcmp.gt.f32.partialorder %v4216, 0.0
    %v4234 = vmul.f32 %v3430, 0.2
    %v4235 = vmul.f32 %v3542, 0.2
    %v4236 = vmul.f32 %v3654, 0.2
    %v4237 = vmul.f32 %v3766, 0.2
    %v4238 = vmul.f32 %v3878, 0.2
    %v4239 = vmul.f32 %v3990, 0.2
    %v4240 = vmul.f32 %v4102, 0.2
    %v4241 = vmul.f32 %v4214, 0.2
    %v4242 = vmul.f32 %v3432, 0.2
    %v4243 = vmul.f32 %v3544, 0.2
    %v4244 = vmul.f32 %v3656, 0.2
    %v4245 = vmul.f32 %v3768, 0.2
    %v4246 = vmul.f32 %v3880, 0.2
    %v4247 = vmul.f32 %v3992, 0.2
    %v4248 = vmul.f32 %v4104, 0.2
    %v4249 = vmul.f32 %v4216, 0.2
    %v4250 = vsel %vm4218, %v3430, %v4234
    %v4251 = vsel %vm4219, %v3542, %v4235
    %v4252 = vsel %vm4220, %v3654, %v4236
    %v4253 = vsel %vm4221, %v3766, %v4237
    %v4254 = vsel %vm4222, %v3878, %v4238
    %v4255 = vsel %vm4223, %v3990, %v4239
    %v4256 = vsel %vm4224, %v4102, %v4240
    %v4257 = vsel %vm4225, %v4214, %v4241
    %v4258 = vsel %vm4226, %v3432, %v4242
    %v4259 = vsel %vm4227, %v3544, %v4243
    %v4260 = vsel %vm4228, %v3656, %v4244
    %v4261 = vsel %vm4229, %v3768, %v4245
    %v4262 = vsel %vm4230, %v3880, %v4246
    %v4263 = vsel %vm4231, %v3992, %v4247
    %v4264 = vsel %vm4232, %v4104, %v4248
    %v4265 = vsel %vm4233, %v4216, %v4249
    %v4266 = vpack.c.bf16 %v4251, %v4250
    %v4267 = vpack.c.bf16 %v4253, %v4252
    %v4268 = vpack.c.bf16 %v4255, %v4254
    %v4269 = vpack.c.bf16 %v4257, %v4256
    %v4270 = vpack.c.bf16 %v4259, %v4258
    %v4271 = vpack.c.bf16 %v4261, %v4260
    %v4272 = vpack.c.bf16 %v4263, %v4262
    %v4273 = vpack.c.bf16 %v4265, %v4264
    %v4274 = vld [vmem:[#allocation8] sm:$0xff]
    %v4275 = vld [vmem:[#allocation8 + $0x8] sm:$0xff]
    %v4276 = vld [vmem:[#allocation8 + $0x10] sm:$0xff]
    %v4277 = vld [vmem:[#allocation8 + $0x18] sm:$0xff]
    %v4278 = vld [vmem:[#allocation8 + $0x20] sm:$0xff]
    %v4279 = vld [vmem:[#allocation8 + $0x28] sm:$0xff]
    %v4280 = vld [vmem:[#allocation8 + $0x30] sm:$0xff]
    %v4281 = vld [vmem:[#allocation8 + $0x38] sm:$0xff]
    %v4282 = vld [vmem:[#allocation8 + $0x40] sm:$0xff]
    %v4283 = vld [vmem:[#allocation8 + $0x48] sm:$0xff]
    %v4284 = vld [vmem:[#allocation8 + $0x50] sm:$0xff]
    %v4285 = vld [vmem:[#allocation8 + $0x58] sm:$0xff]
    %v4286 = vld [vmem:[#allocation8 + $0x60] sm:$0xff]
    %v4287 = vld [vmem:[#allocation8 + $0x68] sm:$0xff]
    %v4288 = vld [vmem:[#allocation8 + $0x70] sm:$0xff]
    %v4289 = vld [vmem:[#allocation8 + $0x78] sm:$0xff]
    %v4290 = vld [vmem:[#allocation8 + $0x80] sm:$0xff]
    %v4291 = vld [vmem:[#allocation8 + $0x88] sm:$0xff]
    %v4292 = vld [vmem:[#allocation8 + $0x90] sm:$0xff]
    %v4293 = vld [vmem:[#allocation8 + $0x98] sm:$0xff]
    %v4294 = vld [vmem:[#allocation8 + $0xa0] sm:$0xff]
    %v4295 = vld [vmem:[#allocation8 + $0xa8] sm:$0xff]
    %v4296 = vld [vmem:[#allocation8 + $0xb0] sm:$0xff]
    %v4297 = vld [vmem:[#allocation8 + $0xb8] sm:$0xff]
    %v4298 = vld [vmem:[#allocation8 + $0xc0] sm:$0xff]
    %v4299 = vld [vmem:[#allocation8 + $0xc8] sm:$0xff]
    %v4300 = vld [vmem:[#allocation8 + $0xd0] sm:$0xff]
    %v4301 = vld [vmem:[#allocation8 + $0xd8] sm:$0xff]
    %v4302 = vld [vmem:[#allocation8 + $0xe0] sm:$0xff]
    %v4303 = vld [vmem:[#allocation8 + $0xe8] sm:$0xff]
    %v4304 = vld [vmem:[#allocation8 + $0xf0] sm:$0xff]
    %v4305 = vld [vmem:[#allocation8 + $0xf8] sm:$0xff]
    %v4306 = vld [vmem:[#allocation8 + $0x100] sm:$0xff]
    %v4307 = vld [vmem:[#allocation8 + $0x108] sm:$0xff]
    %v4308 = vld [vmem:[#allocation8 + $0x110] sm:$0xff]
    %v4309 = vld [vmem:[#allocation8 + $0x118] sm:$0xff]
    %v4310 = vld [vmem:[#allocation8 + $0x120] sm:$0xff]
    %v4311 = vld [vmem:[#allocation8 + $0x128] sm:$0xff]
    %v4312 = vld [vmem:[#allocation8 + $0x130] sm:$0xff]
    %v4313 = vld [vmem:[#allocation8 + $0x138] sm:$0xff]
    %v4314 = vld [vmem:[#allocation8 + $0x140] sm:$0xff]
    %v4315 = vld [vmem:[#allocation8 + $0x148] sm:$0xff]
    %v4316 = vld [vmem:[#allocation8 + $0x150] sm:$0xff]
    %v4317 = vld [vmem:[#allocation8 + $0x158] sm:$0xff]
    %v4318 = vld [vmem:[#allocation8 + $0x160] sm:$0xff]
    %v4319 = vld [vmem:[#allocation8 + $0x168] sm:$0xff]
    %v4320 = vld [vmem:[#allocation8 + $0x170] sm:$0xff]
    %v4321 = vld [vmem:[#allocation8 + $0x178] sm:$0xff]
    %v4322 = vld [vmem:[#allocation8 + $0x180] sm:$0xff]
    %v4323 = vld [vmem:[#allocation8 + $0x188] sm:$0xff]
    %v4324 = vld [vmem:[#allocation8 + $0x190] sm:$0xff]
    %v4325 = vld [vmem:[#allocation8 + $0x198] sm:$0xff]
    %v4326 = vld [vmem:[#allocation8 + $0x1a0] sm:$0xff]
    %v4327 = vld [vmem:[#allocation8 + $0x1a8] sm:$0xff]
    %v4328 = vld [vmem:[#allocation8 + $0x1b0] sm:$0xff]
    %v4329 = vld [vmem:[#allocation8 + $0x1b8] sm:$0xff]
    %v4330 = vld [vmem:[#allocation8 + $0x1c0] sm:$0xff]
    %v4331 = vld [vmem:[#allocation8 + $0x1c8] sm:$0xff]
    %v4332 = vld [vmem:[#allocation8 + $0x1d0] sm:$0xff]
    %v4333 = vld [vmem:[#allocation8 + $0x1d8] sm:$0xff]
    %v4334 = vld [vmem:[#allocation8 + $0x1e0] sm:$0xff]
    %v4335 = vld [vmem:[#allocation8 + $0x1e8] sm:$0xff]
    %v4336 = vld [vmem:[#allocation8 + $0x1f0] sm:$0xff]
    %v4337 = vld [vmem:[#allocation8 + $0x1f8] sm:$0xff]
    %v4338 = vld [vmem:[#allocation10] sm:$0x3]
    %v4340 = vperm.slane %v4338, 0
    %v4341 = vperm.slane %v4338, 1
    %v4348 = vunpack.c.l.b16 %v4266
    %v4349 = vunpack.c.h.b16 %v4266
    %v4350 = vunpack.c.l.b16 %v4267
    %v4351 = vunpack.c.h.b16 %v4267
    %v4352 = vunpack.c.l.b16 %v4270
    %v4353 = vunpack.c.h.b16 %v4270
    %v4354 = vunpack.c.l.b16 %v4271
    %v4355 = vunpack.c.h.b16 %v4271
    %v4356 = vpack.c.b16 %v4352, %v4348
    %v4357 = vpack.c.b16 %v4353, %v4349
    %v4358 = vpack.c.b16 %v4354, %v4350
    %v4359 = vpack.c.b16 %v4355, %v4351
    %v4428 = vunpack.c.l.b16 %v4274
    %v4429 = vunpack.c.h.b16 %v4274
    %v4430 = vunpack.c.l.b16 %v4275
    %v4431 = vunpack.c.h.b16 %v4275
    %v4432 = vunpack.c.l.b16 %v4276
    %v4433 = vunpack.c.h.b16 %v4276
    %v4434 = vunpack.c.l.b16 %v4277
    %v4435 = vunpack.c.h.b16 %v4277
    %v4436 = vunpack.c.l.b16 %v4278
    %v4437 = vunpack.c.h.b16 %v4278
    %v4438 = vunpack.c.l.b16 %v4279
    %v4439 = vunpack.c.h.b16 %v4279
    %v4440 = vunpack.c.l.b16 %v4280
    %v4441 = vunpack.c.h.b16 %v4280
    %v4442 = vunpack.c.l.b16 %v4281
    %v4443 = vunpack.c.h.b16 %v4281
    %v4444 = vunpack.c.l.b16 %v4282
    %v4445 = vunpack.c.h.b16 %v4282
    %v4446 = vunpack.c.l.b16 %v4283
    %v4447 = vunpack.c.h.b16 %v4283
    %v4448 = vunpack.c.l.b16 %v4284
    %v4449 = vunpack.c.h.b16 %v4284
    %v4450 = vunpack.c.l.b16 %v4285
    %v4451 = vunpack.c.h.b16 %v4285
    %v4452 = vunpack.c.l.b16 %v4286
    %v4453 = vunpack.c.h.b16 %v4286
    %v4454 = vunpack.c.l.b16 %v4287
    %v4455 = vunpack.c.h.b16 %v4287
    %v4456 = vunpack.c.l.b16 %v4288
    %v4457 = vunpack.c.h.b16 %v4288
    %v4458 = vunpack.c.l.b16 %v4289
    %v4459 = vunpack.c.h.b16 %v4289
    %v4460 = vunpack.c.l.b16 %v4290
    %v4461 = vunpack.c.h.b16 %v4290
    %v4462 = vunpack.c.l.b16 %v4291
    %v4463 = vunpack.c.h.b16 %v4291
    %v4464 = vunpack.c.l.b16 %v4292
    %v4465 = vunpack.c.h.b16 %v4292
    %v4466 = vunpack.c.l.b16 %v4293
    %v4467 = vunpack.c.h.b16 %v4293
    %v4468 = vunpack.c.l.b16 %v4294
    %v4469 = vunpack.c.h.b16 %v4294
    %v4470 = vunpack.c.l.b16 %v4295
    %v4471 = vunpack.c.h.b16 %v4295
    %v4472 = vunpack.c.l.b16 %v4296
    %v4473 = vunpack.c.h.b16 %v4296
    %v4474 = vunpack.c.l.b16 %v4297
    %v4475 = vunpack.c.h.b16 %v4297
    %v4476 = vunpack.c.l.b16 %v4298
    %v4477 = vunpack.c.h.b16 %v4298
    %v4478 = vunpack.c.l.b16 %v4299
    %v4479 = vunpack.c.h.b16 %v4299
    %v4480 = vunpack.c.l.b16 %v4300
    %v4481 = vunpack.c.h.b16 %v4300
    %v4482 = vunpack.c.l.b16 %v4301
    %v4483 = vunpack.c.h.b16 %v4301
    %v4484 = vunpack.c.l.b16 %v4302
    %v4485 = vunpack.c.h.b16 %v4302
    %v4486 = vunpack.c.l.b16 %v4303
    %v4487 = vunpack.c.h.b16 %v4303
    %v4488 = vunpack.c.l.b16 %v4304
    %v4489 = vunpack.c.h.b16 %v4304
    %v4490 = vunpack.c.l.b16 %v4305
    %v4491 = vunpack.c.h.b16 %v4305
    %v4492 = vunpack.c.l.b16 %v4306
    %v4493 = vunpack.c.h.b16 %v4306
    %v4494 = vunpack.c.l.b16 %v4307
    %v4495 = vunpack.c.h.b16 %v4307
    %v4496 = vunpack.c.l.b16 %v4308
    %v4497 = vunpack.c.h.b16 %v4308
    %v4498 = vunpack.c.l.b16 %v4309
    %v4499 = vunpack.c.h.b16 %v4309
    %v4500 = vunpack.c.l.b16 %v4310
    %v4501 = vunpack.c.h.b16 %v4310
    %v4502 = vunpack.c.l.b16 %v4311
    %v4503 = vunpack.c.h.b16 %v4311
    %v4504 = vunpack.c.l.b16 %v4312
    %v4505 = vunpack.c.h.b16 %v4312
    %v4506 = vunpack.c.l.b16 %v4313
    %v4507 = vunpack.c.h.b16 %v4313
    %v4508 = vunpack.c.l.b16 %v4314
    %v4509 = vunpack.c.h.b16 %v4314
    %v4510 = vunpack.c.l.b16 %v4315
    %v4511 = vunpack.c.h.b16 %v4315
    %v4512 = vunpack.c.l.b16 %v4316
    %v4513 = vunpack.c.h.b16 %v4316
    %v4514 = vunpack.c.l.b16 %v4317
    %v4515 = vunpack.c.h.b16 %v4317
    %v4516 = vunpack.c.l.b16 %v4318
    %v4517 = vunpack.c.h.b16 %v4318
    %v4518 = vunpack.c.l.b16 %v4319
    %v4519 = vunpack.c.h.b16 %v4319
    %v4520 = vunpack.c.l.b16 %v4320
    %v4521 = vunpack.c.h.b16 %v4320
    %v4522 = vunpack.c.l.b16 %v4321
    %v4523 = vunpack.c.h.b16 %v4321
    %v4524 = vunpack.c.l.b16 %v4322
    %v4525 = vunpack.c.h.b16 %v4322
    %v4526 = vunpack.c.l.b16 %v4323
    %v4527 = vunpack.c.h.b16 %v4323
    %v4528 = vunpack.c.l.b16 %v4324
    %v4529 = vunpack.c.h.b16 %v4324
    %v4530 = vunpack.c.l.b16 %v4325
    %v4531 = vunpack.c.h.b16 %v4325
    %v4532 = vunpack.c.l.b16 %v4326
    %v4533 = vunpack.c.h.b16 %v4326
    %v4534 = vunpack.c.l.b16 %v4327
    %v4535 = vunpack.c.h.b16 %v4327
    %v4536 = vunpack.c.l.b16 %v4328
    %v4537 = vunpack.c.h.b16 %v4328
    %v4538 = vunpack.c.l.b16 %v4329
    %v4539 = vunpack.c.h.b16 %v4329
    %v4540 = vunpack.c.l.b16 %v4330
    %v4541 = vunpack.c.h.b16 %v4330
    %v4542 = vunpack.c.l.b16 %v4331
    %v4543 = vunpack.c.h.b16 %v4331
    %v4544 = vunpack.c.l.b16 %v4332
    %v4545 = vunpack.c.h.b16 %v4332
    %v4546 = vunpack.c.l.b16 %v4333
    %v4547 = vunpack.c.h.b16 %v4333
    %v4548 = vunpack.c.l.b16 %v4334
    %v4549 = vunpack.c.h.b16 %v4334
    %v4550 = vunpack.c.l.b16 %v4335
    %v4551 = vunpack.c.h.b16 %v4335
    %v4552 = vunpack.c.l.b16 %v4336
    %v4553 = vunpack.c.h.b16 %v4336
    %v4554 = vunpack.c.l.b16 %v4337
    %v4555 = vunpack.c.h.b16 %v4337
    %v4556 = vpack.c.b16 %v4430, %v4428
    %v4557 = vpack.c.b16 %v4431, %v4429
    %v4558 = vpack.c.b16 %v4434, %v4432
    %v4559 = vpack.c.b16 %v4435, %v4433
    %v4560 = vpack.c.b16 %v4438, %v4436
    %v4561 = vpack.c.b16 %v4439, %v4437
    %v4562 = vpack.c.b16 %v4442, %v4440
    %v4563 = vpack.c.b16 %v4443, %v4441
    %v4564 = vpack.c.b16 %v4446, %v4444
    %v4565 = vpack.c.b16 %v4447, %v4445
    %v4566 = vpack.c.b16 %v4450, %v4448
    %v4567 = vpack.c.b16 %v4451, %v4449
    %v4568 = vpack.c.b16 %v4454, %v4452
    %v4569 = vpack.c.b16 %v4455, %v4453
    %v4570 = vpack.c.b16 %v4458, %v4456
    %v4571 = vpack.c.b16 %v4459, %v4457
    %v4572 = vpack.c.b16 %v4462, %v4460
    %v4573 = vpack.c.b16 %v4463, %v4461
    %v4574 = vpack.c.b16 %v4466, %v4464
    %v4575 = vpack.c.b16 %v4467, %v4465
    %v4576 = vpack.c.b16 %v4470, %v4468
    %v4577 = vpack.c.b16 %v4471, %v4469
    %v4578 = vpack.c.b16 %v4474, %v4472
    %v4579 = vpack.c.b16 %v4475, %v4473
    %v4580 = vpack.c.b16 %v4478, %v4476
    %v4581 = vpack.c.b16 %v4479, %v4477
    %v4582 = vpack.c.b16 %v4482, %v4480
    %v4583 = vpack.c.b16 %v4483, %v4481
    %v4584 = vpack.c.b16 %v4486, %v4484
    %v4585 = vpack.c.b16 %v4487, %v4485
    %v4586 = vpack.c.b16 %v4490, %v4488
    %v4587 = vpack.c.b16 %v4491, %v4489
    %v4588 = vpack.c.b16 %v4494, %v4492
    %v4589 = vpack.c.b16 %v4495, %v4493
    %v4590 = vpack.c.b16 %v4498, %v4496
    %v4591 = vpack.c.b16 %v4499, %v4497
    %v4592 = vpack.c.b16 %v4502, %v4500
    %v4593 = vpack.c.b16 %v4503, %v4501
    %v4594 = vpack.c.b16 %v4506, %v4504
    %v4595 = vpack.c.b16 %v4507, %v4505
    %v4596 = vpack.c.b16 %v4510, %v4508
    %v4597 = vpack.c.b16 %v4511, %v4509
    %v4598 = vpack.c.b16 %v4514, %v4512
    %v4599 = vpack.c.b16 %v4515, %v4513
    %v4600 = vpack.c.b16 %v4518, %v4516
    %v4601 = vpack.c.b16 %v4519, %v4517
    %v4602 = vpack.c.b16 %v4522, %v4520
    %v4603 = vpack.c.b16 %v4523, %v4521
    %v4604 = vpack.c.b16 %v4526, %v4524
    %v4605 = vpack.c.b16 %v4527, %v4525
    %v4606 = vpack.c.b16 %v4530, %v4528
    %v4607 = vpack.c.b16 %v4531, %v4529
    %v4608 = vpack.c.b16 %v4534, %v4532
    %v4609 = vpack.c.b16 %v4535, %v4533
    %v4610 = vpack.c.b16 %v4538, %v4536
    %v4611 = vpack.c.b16 %v4539, %v4537
    %v4612 = vpack.c.b16 %v4542, %v4540
    %v4613 = vpack.c.b16 %v4543, %v4541
    %v4614 = vpack.c.b16 %v4546, %v4544
    %v4615 = vpack.c.b16 %v4547, %v4545
    %v4616 = vpack.c.b16 %v4550, %v4548
    %v4617 = vpack.c.b16 %v4551, %v4549
    %v4618 = vpack.c.b16 %v4554, %v4552
    %v4619 = vpack.c.b16 %v4555, %v4553
    %4684 = vmatpush.bf16.msra.mxu0 %v4570
    %4685 = vmatpush.bf16.msra.mxu0 %v4568
    %4686 = vmatpush.bf16.msra.mxu0 %v4566
    %4687 = vmatpush.bf16.msra.mxu0 %v4564
    %4688 = vmatpush.bf16.msra.mxu0 %v4562
    %4689 = vmatpush.bf16.msra.mxu0 %v4560
    %4690 = vmatpush.bf16.msra.mxu0 %v4558
    %4691 = vmatpush.bf16.msra.mxu0 %v4556
    %4692 = vmatmul.bf16.gmra.mxu0 %v4356
    %v4693 = vpop.f32.mrf.mxu0
    %v4694 = vadd.f32 %v4340, %v4693
    %v4695 = vpop.f32.mrf.mxu0
    %v4696 = vadd.f32 %v4340, %v4695
    %4697 = vdwg.mxu0
    %4698 = vmatpush.bf16.msra.mxu0 %v4586
    %4699 = vmatpush.bf16.msra.mxu0 %v4584
    %4700 = vmatpush.bf16.msra.mxu0 %v4582
    %4701 = vmatpush.bf16.msra.mxu0 %v4580
    %4702 = vmatpush.bf16.msra.mxu0 %v4578
    %4703 = vmatpush.bf16.msra.mxu0 %v4576
    %4704 = vmatpush.bf16.msra.mxu0 %v4574
    %4705 = vmatpush.bf16.msra.mxu0 %v4572
    %4706 = vmatmul.bf16.gmra.mxu0 %v4357
    %v4707 = vpop.f32.mrf.mxu0
    %v4708 = vadd.f32 %v4694, %v4707
    %v4709 = vpop.f32.mrf.mxu0
    %v4710 = vadd.f32 %v4696, %v4709
    %4711 = vdwg.mxu0
    %4712 = vmatpush.bf16.msra.mxu0 %v4602
    %4713 = vmatpush.bf16.msra.mxu0 %v4600
    %4714 = vmatpush.bf16.msra.mxu0 %v4598
    %4715 = vmatpush.bf16.msra.mxu0 %v4596
    %4716 = vmatpush.bf16.msra.mxu0 %v4594
    %4717 = vmatpush.bf16.msra.mxu0 %v4592
    %4718 = vmatpush.bf16.msra.mxu0 %v4590
    %4719 = vmatpush.bf16.msra.mxu0 %v4588
    %4720 = vmatmul.bf16.gmra.mxu0 %v4358
    %v4721 = vpop.f32.mrf.mxu0
    %v4722 = vadd.f32 %v4708, %v4721
    %v4723 = vpop.f32.mrf.mxu0
    %v4724 = vadd.f32 %v4710, %v4723
    %4725 = vdwg.mxu0
    %4726 = vmatpush.bf16.msra.mxu0 %v4618
    %4727 = vmatpush.bf16.msra.mxu0 %v4616
    %4728 = vmatpush.bf16.msra.mxu0 %v4614
    %4729 = vmatpush.bf16.msra.mxu0 %v4612
    %4730 = vmatpush.bf16.msra.mxu0 %v4610
    %4731 = vmatpush.bf16.msra.mxu0 %v4608
    %4732 = vmatpush.bf16.msra.mxu0 %v4606
    %4733 = vmatpush.bf16.msra.mxu0 %v4604
    %4734 = vmatmul.bf16.gmra.mxu0 %v4359
    %v4735 = vpop.f32.mrf.mxu0
    %v4736 = vadd.f32 %v4722, %v4735
    %v4737 = vpop.f32.mrf.mxu0
    %v4738 = vadd.f32 %v4724, %v4737
    %4739 = vdwg.mxu0
    %4740 = vmatpush.bf16.msra.mxu0 %v4571
    %4741 = vmatpush.bf16.msra.mxu0 %v4569
    %4742 = vmatpush.bf16.msra.mxu0 %v4567
    %4743 = vmatpush.bf16.msra.mxu0 %v4565
    %4744 = vmatpush.bf16.msra.mxu0 %v4563
    %4745 = vmatpush.bf16.msra.mxu0 %v4561
    %4746 = vmatpush.bf16.msra.mxu0 %v4559
    %4747 = vmatpush.bf16.msra.mxu0 %v4557
    %4748 = vmatmul.bf16.gmra.mxu0 %v4356
    %v4749 = vpop.f32.mrf.mxu0
    %v4750 = vadd.f32 %v4341, %v4749
    %v4751 = vpop.f32.mrf.mxu0
    %v4752 = vadd.f32 %v4341, %v4751
    %4753 = vdwg.mxu0
    %4754 = vmatpush.bf16.msra.mxu0 %v4587
    %4755 = vmatpush.bf16.msra.mxu0 %v4585
    %4756 = vmatpush.bf16.msra.mxu0 %v4583
    %4757 = vmatpush.bf16.msra.mxu0 %v4581
    %4758 = vmatpush.bf16.msra.mxu0 %v4579
    %4759 = vmatpush.bf16.msra.mxu0 %v4577
    %4760 = vmatpush.bf16.msra.mxu0 %v4575
    %4761 = vmatpush.bf16.msra.mxu0 %v4573
    %4762 = vmatmul.bf16.gmra.mxu0 %v4357
    %v4763 = vpop.f32.mrf.mxu0
    %v4764 = vadd.f32 %v4750, %v4763
    %v4765 = vpop.f32.mrf.mxu0
    %v4766 = vadd.f32 %v4752, %v4765
    %4767 = vdwg.mxu0
    %4768 = vmatpush.bf16.msra.mxu0 %v4603
    %4769 = vmatpush.bf16.msra.mxu0 %v4601
    %4770 = vmatpush.bf16.msra.mxu0 %v4599
    %4771 = vmatpush.bf16.msra.mxu0 %v4597
    %4772 = vmatpush.bf16.msra.mxu0 %v4595
    %4773 = vmatpush.bf16.msra.mxu0 %v4593
    %4774 = vmatpush.bf16.msra.mxu0 %v4591
    %4775 = vmatpush.bf16.msra.mxu0 %v4589
    %4776 = vmatmul.bf16.gmra.mxu0 %v4358
    %v4777 = vpop.f32.mrf.mxu0
    %v4778 = vadd.f32 %v4764, %v4777
    %v4779 = vpop.f32.mrf.mxu0
    %v4780 = vadd.f32 %v4766, %v4779
    %4781 = vdwg.mxu0
    %4782 = vmatpush.bf16.msra.mxu0 %v4619
    %4783 = vmatpush.bf16.msra.mxu0 %v4617
    %4784 = vmatpush.bf16.msra.mxu0 %v4615
    %4785 = vmatpush.bf16.msra.mxu0 %v4613
    %4786 = vmatpush.bf16.msra.mxu0 %v4611
    %4787 = vmatpush.bf16.msra.mxu0 %v4609
    %4788 = vmatpush.bf16.msra.mxu0 %v4607
    %4789 = vmatpush.bf16.msra.mxu0 %v4605
    %4790 = vmatmul.bf16.gmra.mxu0 %v4359
    %v4791 = vpop.f32.mrf.mxu0
    %v4792 = vadd.f32 %v4778, %v4791
    %v4793 = vpop.f32.mrf.mxu0
    %v4794 = vadd.f32 %v4780, %v4793
    %4795 = vdwg.mxu0
    %v4796 = vld [vmem:[#allocation11] sm:$0xff]
    %v4797 = vld [vmem:[#allocation11 + $0x8] sm:$0xff]
    %v4798 = vld [vmem:[#allocation11 + $0x10] sm:$0xff]
    %v4799 = vld [vmem:[#allocation11 + $0x18] sm:$0xff]
    %v4800 = vld [vmem:[#allocation11 + $0x20] sm:$0xff]
    %v4801 = vld [vmem:[#allocation11 + $0x28] sm:$0xff]
    %v4802 = vld [vmem:[#allocation11 + $0x30] sm:$0xff]
    %v4803 = vld [vmem:[#allocation11 + $0x38] sm:$0xff]
    %v4804 = vld [vmem:[#allocation11 + $0x40] sm:$0xff]
    %v4805 = vld [vmem:[#allocation11 + $0x48] sm:$0xff]
    %v4806 = vld [vmem:[#allocation11 + $0x50] sm:$0xff]
    %v4807 = vld [vmem:[#allocation11 + $0x58] sm:$0xff]
    %v4808 = vld [vmem:[#allocation11 + $0x60] sm:$0xff]
    %v4809 = vld [vmem:[#allocation11 + $0x68] sm:$0xff]
    %v4810 = vld [vmem:[#allocation11 + $0x70] sm:$0xff]
    %v4811 = vld [vmem:[#allocation11 + $0x78] sm:$0xff]
    %v4812 = vld [vmem:[#allocation11 + $0x80] sm:$0xff]
    %v4813 = vld [vmem:[#allocation11 + $0x88] sm:$0xff]
    %v4814 = vld [vmem:[#allocation11 + $0x90] sm:$0xff]
    %v4815 = vld [vmem:[#allocation11 + $0x98] sm:$0xff]
    %v4816 = vld [vmem:[#allocation11 + $0xa0] sm:$0xff]
    %v4817 = vld [vmem:[#allocation11 + $0xa8] sm:$0xff]
    %v4818 = vld [vmem:[#allocation11 + $0xb0] sm:$0xff]
    %v4819 = vld [vmem:[#allocation11 + $0xb8] sm:$0xff]
    %v4820 = vld [vmem:[#allocation11 + $0xc0] sm:$0xff]
    %v4821 = vld [vmem:[#allocation11 + $0xc8] sm:$0xff]
    %v4822 = vld [vmem:[#allocation11 + $0xd0] sm:$0xff]
    %v4823 = vld [vmem:[#allocation11 + $0xd8] sm:$0xff]
    %v4824 = vld [vmem:[#allocation11 + $0xe0] sm:$0xff]
    %v4825 = vld [vmem:[#allocation11 + $0xe8] sm:$0xff]
    %v4826 = vld [vmem:[#allocation11 + $0xf0] sm:$0xff]
    %v4827 = vld [vmem:[#allocation11 + $0xf8] sm:$0xff]
    %v4828 = vld [vmem:[#allocation11 + $0x100] sm:$0xff]
    %v4829 = vld [vmem:[#allocation11 + $0x108] sm:$0xff]
    %v4830 = vld [vmem:[#allocation11 + $0x110] sm:$0xff]
    %v4831 = vld [vmem:[#allocation11 + $0x118] sm:$0xff]
    %v4832 = vld [vmem:[#allocation11 + $0x120] sm:$0xff]
    %v4833 = vld [vmem:[#allocation11 + $0x128] sm:$0xff]
    %v4834 = vld [vmem:[#allocation11 + $0x130] sm:$0xff]
    %v4835 = vld [vmem:[#allocation11 + $0x138] sm:$0xff]
    %v4836 = vld [vmem:[#allocation11 + $0x140] sm:$0xff]
    %v4837 = vld [vmem:[#allocation11 + $0x148] sm:$0xff]
    %v4838 = vld [vmem:[#allocation11 + $0x150] sm:$0xff]
    %v4839 = vld [vmem:[#allocation11 + $0x158] sm:$0xff]
    %v4840 = vld [vmem:[#allocation11 + $0x160] sm:$0xff]
    %v4841 = vld [vmem:[#allocation11 + $0x168] sm:$0xff]
    %v4842 = vld [vmem:[#allocation11 + $0x170] sm:$0xff]
    %v4843 = vld [vmem:[#allocation11 + $0x178] sm:$0xff]
    %v4844 = vld [vmem:[#allocation11 + $0x180] sm:$0xff]
    %v4845 = vld [vmem:[#allocation11 + $0x188] sm:$0xff]
    %v4846 = vld [vmem:[#allocation11 + $0x190] sm:$0xff]
    %v4847 = vld [vmem:[#allocation11 + $0x198] sm:$0xff]
    %v4848 = vld [vmem:[#allocation11 + $0x1a0] sm:$0xff]
    %v4849 = vld [vmem:[#allocation11 + $0x1a8] sm:$0xff]
    %v4850 = vld [vmem:[#allocation11 + $0x1b0] sm:$0xff]
    %v4851 = vld [vmem:[#allocation11 + $0x1b8] sm:$0xff]
    %v4852 = vld [vmem:[#allocation11 + $0x1c0] sm:$0xff]
    %v4853 = vld [vmem:[#allocation11 + $0x1c8] sm:$0xff]
    %v4854 = vld [vmem:[#allocation11 + $0x1d0] sm:$0xff]
    %v4855 = vld [vmem:[#allocation11 + $0x1d8] sm:$0xff]
    %v4856 = vld [vmem:[#allocation11 + $0x1e0] sm:$0xff]
    %v4857 = vld [vmem:[#allocation11 + $0x1e8] sm:$0xff]
    %v4858 = vld [vmem:[#allocation11 + $0x1f0] sm:$0xff]
    %v4859 = vld [vmem:[#allocation11 + $0x1f8] sm:$0xff]
    %v4860 = vld [vmem:[#allocation13] sm:$0x3]
    %v4862 = vperm.slane %v4860, 0
    %v4863 = vperm.slane %v4860, 1
    %v4870 = vunpack.c.l.b16 %v4268
    %v4871 = vunpack.c.h.b16 %v4268
    %v4872 = vunpack.c.l.b16 %v4269
    %v4873 = vunpack.c.h.b16 %v4269
    %v4874 = vunpack.c.l.b16 %v4272
    %v4875 = vunpack.c.h.b16 %v4272
    %v4876 = vunpack.c.l.b16 %v4273
    %v4877 = vunpack.c.h.b16 %v4273
    %v4878 = vpack.c.b16 %v4874, %v4870
    %v4879 = vpack.c.b16 %v4875, %v4871
    %v4880 = vpack.c.b16 %v4876, %v4872
    %v4881 = vpack.c.b16 %v4877, %v4873
    %v4950 = vunpack.c.l.b16 %v4796
    %v4951 = vunpack.c.h.b16 %v4796
    %v4952 = vunpack.c.l.b16 %v4797
    %v4953 = vunpack.c.h.b16 %v4797
    %v4954 = vunpack.c.l.b16 %v4798
    %v4955 = vunpack.c.h.b16 %v4798
    %v4956 = vunpack.c.l.b16 %v4799
    %v4957 = vunpack.c.h.b16 %v4799
    %v4958 = vunpack.c.l.b16 %v4800
    %v4959 = vunpack.c.h.b16 %v4800
    %v4960 = vunpack.c.l.b16 %v4801
    %v4961 = vunpack.c.h.b16 %v4801
    %v4962 = vunpack.c.l.b16 %v4802
    %v4963 = vunpack.c.h.b16 %v4802
    %v4964 = vunpack.c.l.b16 %v4803
    %v4965 = vunpack.c.h.b16 %v4803
    %v4966 = vunpack.c.l.b16 %v4804
    %v4967 = vunpack.c.h.b16 %v4804
    %v4968 = vunpack.c.l.b16 %v4805
    %v4969 = vunpack.c.h.b16 %v4805
    %v4970 = vunpack.c.l.b16 %v4806
    %v4971 = vunpack.c.h.b16 %v4806
    %v4972 = vunpack.c.l.b16 %v4807
    %v4973 = vunpack.c.h.b16 %v4807
    %v4974 = vunpack.c.l.b16 %v4808
    %v4975 = vunpack.c.h.b16 %v4808
    %v4976 = vunpack.c.l.b16 %v4809
    %v4977 = vunpack.c.h.b16 %v4809
    %v4978 = vunpack.c.l.b16 %v4810
    %v4979 = vunpack.c.h.b16 %v4810
    %v4980 = vunpack.c.l.b16 %v4811
    %v4981 = vunpack.c.h.b16 %v4811
    %v4982 = vunpack.c.l.b16 %v4812
    %v4983 = vunpack.c.h.b16 %v4812
    %v4984 = vunpack.c.l.b16 %v4813
    %v4985 = vunpack.c.h.b16 %v4813
    %v4986 = vunpack.c.l.b16 %v4814
    %v4987 = vunpack.c.h.b16 %v4814
    %v4988 = vunpack.c.l.b16 %v4815
    %v4989 = vunpack.c.h.b16 %v4815
    %v4990 = vunpack.c.l.b16 %v4816
    %v4991 = vunpack.c.h.b16 %v4816
    %v4992 = vunpack.c.l.b16 %v4817
    %v4993 = vunpack.c.h.b16 %v4817
    %v4994 = vunpack.c.l.b16 %v4818
    %v4995 = vunpack.c.h.b16 %v4818
    %v4996 = vunpack.c.l.b16 %v4819
    %v4997 = vunpack.c.h.b16 %v4819
    %v4998 = vunpack.c.l.b16 %v4820
    %v4999 = vunpack.c.h.b16 %v4820
    %v5000 = vunpack.c.l.b16 %v4821
    %v5001 = vunpack.c.h.b16 %v4821
    %v5002 = vunpack.c.l.b16 %v4822
    %v5003 = vunpack.c.h.b16 %v4822
    %v5004 = vunpack.c.l.b16 %v4823
    %v5005 = vunpack.c.h.b16 %v4823
    %v5006 = vunpack.c.l.b16 %v4824
    %v5007 = vunpack.c.h.b16 %v4824
    %v5008 = vunpack.c.l.b16 %v4825
    %v5009 = vunpack.c.h.b16 %v4825
    %v5010 = vunpack.c.l.b16 %v4826
    %v5011 = vunpack.c.h.b16 %v4826
    %v5012 = vunpack.c.l.b16 %v4827
    %v5013 = vunpack.c.h.b16 %v4827
    %v5014 = vunpack.c.l.b16 %v4828
    %v5015 = vunpack.c.h.b16 %v4828
    %v5016 = vunpack.c.l.b16 %v4829
    %v5017 = vunpack.c.h.b16 %v4829
    %v5018 = vunpack.c.l.b16 %v4830
    %v5019 = vunpack.c.h.b16 %v4830
    %v5020 = vunpack.c.l.b16 %v4831
    %v5021 = vunpack.c.h.b16 %v4831
    %v5022 = vunpack.c.l.b16 %v4832
    %v5023 = vunpack.c.h.b16 %v4832
    %v5024 = vunpack.c.l.b16 %v4833
    %v5025 = vunpack.c.h.b16 %v4833
    %v5026 = vunpack.c.l.b16 %v4834
    %v5027 = vunpack.c.h.b16 %v4834
    %v5028 = vunpack.c.l.b16 %v4835
    %v5029 = vunpack.c.h.b16 %v4835
    %v5030 = vunpack.c.l.b16 %v4836
    %v5031 = vunpack.c.h.b16 %v4836
    %v5032 = vunpack.c.l.b16 %v4837
    %v5033 = vunpack.c.h.b16 %v4837
    %v5034 = vunpack.c.l.b16 %v4838
    %v5035 = vunpack.c.h.b16 %v4838
    %v5036 = vunpack.c.l.b16 %v4839
    %v5037 = vunpack.c.h.b16 %v4839
    %v5038 = vunpack.c.l.b16 %v4840
    %v5039 = vunpack.c.h.b16 %v4840
    %v5040 = vunpack.c.l.b16 %v4841
    %v5041 = vunpack.c.h.b16 %v4841
    %v5042 = vunpack.c.l.b16 %v4842
    %v5043 = vunpack.c.h.b16 %v4842
    %v5044 = vunpack.c.l.b16 %v4843
    %v5045 = vunpack.c.h.b16 %v4843
    %v5046 = vunpack.c.l.b16 %v4844
    %v5047 = vunpack.c.h.b16 %v4844
    %v5048 = vunpack.c.l.b16 %v4845
    %v5049 = vunpack.c.h.b16 %v4845
    %v5050 = vunpack.c.l.b16 %v4846
    %v5051 = vunpack.c.h.b16 %v4846
    %v5052 = vunpack.c.l.b16 %v4847
    %v5053 = vunpack.c.h.b16 %v4847
    %v5054 = vunpack.c.l.b16 %v4848
    %v5055 = vunpack.c.h.b16 %v4848
    %v5056 = vunpack.c.l.b16 %v4849
    %v5057 = vunpack.c.h.b16 %v4849
    %v5058 = vunpack.c.l.b16 %v4850
    %v5059 = vunpack.c.h.b16 %v4850
    %v5060 = vunpack.c.l.b16 %v4851
    %v5061 = vunpack.c.h.b16 %v4851
    %v5062 = vunpack.c.l.b16 %v4852
    %v5063 = vunpack.c.h.b16 %v4852
    %v5064 = vunpack.c.l.b16 %v4853
    %v5065 = vunpack.c.h.b16 %v4853
    %v5066 = vunpack.c.l.b16 %v4854
    %v5067 = vunpack.c.h.b16 %v4854
    %v5068 = vunpack.c.l.b16 %v4855
    %v5069 = vunpack.c.h.b16 %v4855
    %v5070 = vunpack.c.l.b16 %v4856
    %v5071 = vunpack.c.h.b16 %v4856
    %v5072 = vunpack.c.l.b16 %v4857
    %v5073 = vunpack.c.h.b16 %v4857
    %v5074 = vunpack.c.l.b16 %v4858
    %v5075 = vunpack.c.h.b16 %v4858
    %v5076 = vunpack.c.l.b16 %v4859
    %v5077 = vunpack.c.h.b16 %v4859
    %v5078 = vpack.c.b16 %v4952, %v4950
    %v5079 = vpack.c.b16 %v4953, %v4951
    %v5080 = vpack.c.b16 %v4956, %v4954
    %v5081 = vpack.c.b16 %v4957, %v4955
    %v5082 = vpack.c.b16 %v4960, %v4958
    %v5083 = vpack.c.b16 %v4961, %v4959
    %v5084 = vpack.c.b16 %v4964, %v4962
    %v5085 = vpack.c.b16 %v4965, %v4963
    %v5086 = vpack.c.b16 %v4968, %v4966
    %v5087 = vpack.c.b16 %v4969, %v4967
    %v5088 = vpack.c.b16 %v4972, %v4970
    %v5089 = vpack.c.b16 %v4973, %v4971
    %v5090 = vpack.c.b16 %v4976, %v4974
    %v5091 = vpack.c.b16 %v4977, %v4975
    %v5092 = vpack.c.b16 %v4980, %v4978
    %v5093 = vpack.c.b16 %v4981, %v4979
    %v5094 = vpack.c.b16 %v4984, %v4982
    %v5095 = vpack.c.b16 %v4985, %v4983
    %v5096 = vpack.c.b16 %v4988, %v4986
    %v5097 = vpack.c.b16 %v4989, %v4987
    %v5098 = vpack.c.b16 %v4992, %v4990
    %v5099 = vpack.c.b16 %v4993, %v4991
    %v5100 = vpack.c.b16 %v4996, %v4994
    %v5101 = vpack.c.b16 %v4997, %v4995
    %v5102 = vpack.c.b16 %v5000, %v4998
    %v5103 = vpack.c.b16 %v5001, %v4999
    %v5104 = vpack.c.b16 %v5004, %v5002
    %v5105 = vpack.c.b16 %v5005, %v5003
    %v5106 = vpack.c.b16 %v5008, %v5006
    %v5107 = vpack.c.b16 %v5009, %v5007
    %v5108 = vpack.c.b16 %v5012, %v5010
    %v5109 = vpack.c.b16 %v5013, %v5011
    %v5110 = vpack.c.b16 %v5016, %v5014
    %v5111 = vpack.c.b16 %v5017, %v5015
    %v5112 = vpack.c.b16 %v5020, %v5018
    %v5113 = vpack.c.b16 %v5021, %v5019
    %v5114 = vpack.c.b16 %v5024, %v5022
    %v5115 = vpack.c.b16 %v5025, %v5023
    %v5116 = vpack.c.b16 %v5028, %v5026
    %v5117 = vpack.c.b16 %v5029, %v5027
    %v5118 = vpack.c.b16 %v5032, %v5030
    %v5119 = vpack.c.b16 %v5033, %v5031
    %v5120 = vpack.c.b16 %v5036, %v5034
    %v5121 = vpack.c.b16 %v5037, %v5035
    %v5122 = vpack.c.b16 %v5040, %v5038
    %v5123 = vpack.c.b16 %v5041, %v5039
    %v5124 = vpack.c.b16 %v5044, %v5042
    %v5125 = vpack.c.b16 %v5045, %v5043
    %v5126 = vpack.c.b16 %v5048, %v5046
    %v5127 = vpack.c.b16 %v5049, %v5047
    %v5128 = vpack.c.b16 %v5052, %v5050
    %v5129 = vpack.c.b16 %v5053, %v5051
    %v5130 = vpack.c.b16 %v5056, %v5054
    %v5131 = vpack.c.b16 %v5057, %v5055
    %v5132 = vpack.c.b16 %v5060, %v5058
    %v5133 = vpack.c.b16 %v5061, %v5059
    %v5134 = vpack.c.b16 %v5064, %v5062
    %v5135 = vpack.c.b16 %v5065, %v5063
    %v5136 = vpack.c.b16 %v5068, %v5066
    %v5137 = vpack.c.b16 %v5069, %v5067
    %v5138 = vpack.c.b16 %v5072, %v5070
    %v5139 = vpack.c.b16 %v5073, %v5071
    %v5140 = vpack.c.b16 %v5076, %v5074
    %v5141 = vpack.c.b16 %v5077, %v5075
    %5206 = vmatpush.bf16.msra.mxu0 %v5092
    %5207 = vmatpush.bf16.msra.mxu0 %v5090
    %5208 = vmatpush.bf16.msra.mxu0 %v5088
    %5209 = vmatpush.bf16.msra.mxu0 %v5086
    %5210 = vmatpush.bf16.msra.mxu0 %v5084
    %5211 = vmatpush.bf16.msra.mxu0 %v5082
    %5212 = vmatpush.bf16.msra.mxu0 %v5080
    %5213 = vmatpush.bf16.msra.mxu0 %v5078
    %5214 = vmatmul.bf16.gmra.mxu0 %v4878
    %v5215 = vpop.f32.mrf.mxu0
    %v5216 = vadd.f32 %v4862, %v5215
    %v5217 = vpop.f32.mrf.mxu0
    %v5218 = vadd.f32 %v4862, %v5217
    %5219 = vdwg.mxu0
    %5220 = vmatpush.bf16.msra.mxu0 %v5108
    %5221 = vmatpush.bf16.msra.mxu0 %v5106
    %5222 = vmatpush.bf16.msra.mxu0 %v5104
    %5223 = vmatpush.bf16.msra.mxu0 %v5102
    %5224 = vmatpush.bf16.msra.mxu0 %v5100
    %5225 = vmatpush.bf16.msra.mxu0 %v5098
    %5226 = vmatpush.bf16.msra.mxu0 %v5096
    %5227 = vmatpush.bf16.msra.mxu0 %v5094
    %5228 = vmatmul.bf16.gmra.mxu0 %v4879
    %v5229 = vpop.f32.mrf.mxu0
    %v5230 = vadd.f32 %v5216, %v5229
    %v5231 = vpop.f32.mrf.mxu0
    %v5232 = vadd.f32 %v5218, %v5231
    %5233 = vdwg.mxu0
    %5234 = vmatpush.bf16.msra.mxu0 %v5124
    %5235 = vmatpush.bf16.msra.mxu0 %v5122
    %5236 = vmatpush.bf16.msra.mxu0 %v5120
    %5237 = vmatpush.bf16.msra.mxu0 %v5118
    %5238 = vmatpush.bf16.msra.mxu0 %v5116
    %5239 = vmatpush.bf16.msra.mxu0 %v5114
    %5240 = vmatpush.bf16.msra.mxu0 %v5112
    %5241 = vmatpush.bf16.msra.mxu0 %v5110
    %5242 = vmatmul.bf16.gmra.mxu0 %v4880
    %v5243 = vpop.f32.mrf.mxu0
    %v5244 = vadd.f32 %v5230, %v5243
    %v5245 = vpop.f32.mrf.mxu0
    %v5246 = vadd.f32 %v5232, %v5245
    %5247 = vdwg.mxu0
    %5248 = vmatpush.bf16.msra.mxu0 %v5140
    %5249 = vmatpush.bf16.msra.mxu0 %v5138
    %5250 = vmatpush.bf16.msra.mxu0 %v5136
    %5251 = vmatpush.bf16.msra.mxu0 %v5134
    %5252 = vmatpush.bf16.msra.mxu0 %v5132
    %5253 = vmatpush.bf16.msra.mxu0 %v5130
    %5254 = vmatpush.bf16.msra.mxu0 %v5128
    %5255 = vmatpush.bf16.msra.mxu0 %v5126
    %5256 = vmatmul.bf16.gmra.mxu0 %v4881
    %v5257 = vpop.f32.mrf.mxu0
    %v5258 = vadd.f32 %v5244, %v5257
    %v5259 = vpop.f32.mrf.mxu0
    %v5260 = vadd.f32 %v5246, %v5259
    %5261 = vdwg.mxu0
    %5262 = vmatpush.bf16.msra.mxu0 %v5093
    %5263 = vmatpush.bf16.msra.mxu0 %v5091
    %5264 = vmatpush.bf16.msra.mxu0 %v5089
    %5265 = vmatpush.bf16.msra.mxu0 %v5087
    %5266 = vmatpush.bf16.msra.mxu0 %v5085
    %5267 = vmatpush.bf16.msra.mxu0 %v5083
    %5268 = vmatpush.bf16.msra.mxu0 %v5081
    %5269 = vmatpush.bf16.msra.mxu0 %v5079
    %5270 = vmatmul.bf16.gmra.mxu0 %v4878
    %v5271 = vpop.f32.mrf.mxu0
    %v5272 = vadd.f32 %v4863, %v5271
    %v5273 = vpop.f32.mrf.mxu0
    %v5274 = vadd.f32 %v4863, %v5273
    %5275 = vdwg.mxu0
    %5276 = vmatpush.bf16.msra.mxu0 %v5109
    %5277 = vmatpush.bf16.msra.mxu0 %v5107
    %5278 = vmatpush.bf16.msra.mxu0 %v5105
    %5279 = vmatpush.bf16.msra.mxu0 %v5103
    %5280 = vmatpush.bf16.msra.mxu0 %v5101
    %5281 = vmatpush.bf16.msra.mxu0 %v5099
    %5282 = vmatpush.bf16.msra.mxu0 %v5097
    %5283 = vmatpush.bf16.msra.mxu0 %v5095
    %5284 = vmatmul.bf16.gmra.mxu0 %v4879
    %v5285 = vpop.f32.mrf.mxu0
    %v5286 = vadd.f32 %v5272, %v5285
    %v5287 = vpop.f32.mrf.mxu0
    %v5288 = vadd.f32 %v5274, %v5287
    %5289 = vdwg.mxu0
    %5290 = vmatpush.bf16.msra.mxu0 %v5125
    %5291 = vmatpush.bf16.msra.mxu0 %v5123
    %5292 = vmatpush.bf16.msra.mxu0 %v5121
    %5293 = vmatpush.bf16.msra.mxu0 %v5119
    %5294 = vmatpush.bf16.msra.mxu0 %v5117
    %5295 = vmatpush.bf16.msra.mxu0 %v5115
    %5296 = vmatpush.bf16.msra.mxu0 %v5113
    %5297 = vmatpush.bf16.msra.mxu0 %v5111
    %5298 = vmatmul.bf16.gmra.mxu0 %v4880
    %v5299 = vpop.f32.mrf.mxu0
    %v5300 = vadd.f32 %v5286, %v5299
    %v5301 = vpop.f32.mrf.mxu0
    %v5302 = vadd.f32 %v5288, %v5301
    %5303 = vdwg.mxu0
    %5304 = vmatpush.bf16.msra.mxu0 %v5141
    %5305 = vmatpush.bf16.msra.mxu0 %v5139
    %5306 = vmatpush.bf16.msra.mxu0 %v5137
    %5307 = vmatpush.bf16.msra.mxu0 %v5135
    %5308 = vmatpush.bf16.msra.mxu0 %v5133
    %5309 = vmatpush.bf16.msra.mxu0 %v5131
    %5310 = vmatpush.bf16.msra.mxu0 %v5129
    %5311 = vmatpush.bf16.msra.mxu0 %v5127
    %5312 = vmatmul.bf16.gmra.mxu0 %v4881
    %v5313 = vpop.f32.mrf.mxu0
    %v5314 = vadd.f32 %v5300, %v5313
    %v5315 = vpop.f32.mrf.mxu0
    %v5316 = vadd.f32 %v5302, %v5315
    %5317 = vdwg.mxu0
    %vm5318 = vcmp.gt.f32.partialorder %v4736, 0.0
    %vm5319 = vcmp.gt.f32.partialorder %v4792, 0.0
    %vm5320 = vcmp.gt.f32.partialorder %v4738, 0.0
    %vm5321 = vcmp.gt.f32.partialorder %v4794, 0.0
    %v5322 = vmul.f32 %v4736, 0.2
    %v5323 = vmul.f32 %v4792, 0.2
    %v5324 = vmul.f32 %v4738, 0.2
    %v5325 = vmul.f32 %v4794, 0.2
    %v5326 = vsel %vm5318, %v4736, %v5322
    %v5327 = vsel %vm5319, %v4792, %v5323
    %v5328 = vsel %vm5320, %v4738, %v5324
    %v5329 = vsel %vm5321, %v4794, %v5325
    %v5330 = vpack.c.bf16 %v5328, %v5326
    %v5331 = vpack.c.bf16 %v5329, %v5327
    %vm5332 = vcmp.gt.f32.partialorder %v5258, 0.0
    %vm5333 = vcmp.gt.f32.partialorder %v5314, 0.0
    %vm5334 = vcmp.gt.f32.partialorder %v5260, 0.0
    %vm5335 = vcmp.gt.f32.partialorder %v5316, 0.0
    %v5336 = vmul.f32 %v5258, 0.2
    %v5337 = vmul.f32 %v5314, 0.2
    %v5338 = vmul.f32 %v5260, 0.2
    %v5339 = vmul.f32 %v5316, 0.2
    %v5340 = vsel %vm5332, %v5258, %v5336
    %v5341 = vsel %vm5333, %v5314, %v5337
    %v5342 = vsel %vm5334, %v5260, %v5338
    %v5343 = vsel %vm5335, %v5316, %v5339
    %v5344 = vpack.c.bf16 %v5342, %v5340
    %v5345 = vpack.c.bf16 %v5343, %v5341
    %v5346 = vld [vmem:[#allocation14] sm:$0xf]
    %v5347 = vld [vmem:[#allocation14 + $0x4] sm:$0xf]
    %v5348 = vld [vmem:[#allocation14 + $0x8] sm:$0xf]
    %v5349 = vld [vmem:[#allocation14 + $0xc] sm:$0xf]
    %v5350 = vld [vmem:[#allocation14 + $0x10] sm:$0xf]
    %v5351 = vld [vmem:[#allocation14 + $0x14] sm:$0xf]
    %v5352 = vld [vmem:[#allocation14 + $0x18] sm:$0xf]
    %v5353 = vld [vmem:[#allocation14 + $0x1c] sm:$0xf]
    %v5354 = vld [vmem:[#allocation14 + $0x20] sm:$0xf]
    %v5355 = vld [vmem:[#allocation14 + $0x24] sm:$0xf]
    %v5356 = vld [vmem:[#allocation14 + $0x28] sm:$0xf]
    %v5357 = vld [vmem:[#allocation14 + $0x2c] sm:$0xf]
    %v5358 = vld [vmem:[#allocation14 + $0x30] sm:$0xf]
    %v5359 = vld [vmem:[#allocation14 + $0x34] sm:$0xf]
    %v5360 = vld [vmem:[#allocation14 + $0x38] sm:$0xf]
    %v5361 = vld [vmem:[#allocation14 + $0x3c] sm:$0xf]
    %v5362 = vld [vmem:[#allocation14 + $0x40] sm:$0xf]
    %v5363 = vld [vmem:[#allocation14 + $0x44] sm:$0xf]
    %v5364 = vld [vmem:[#allocation14 + $0x48] sm:$0xf]
    %v5365 = vld [vmem:[#allocation14 + $0x4c] sm:$0xf]
    %v5366 = vld [vmem:[#allocation14 + $0x50] sm:$0xf]
    %v5367 = vld [vmem:[#allocation14 + $0x54] sm:$0xf]
    %v5368 = vld [vmem:[#allocation14 + $0x58] sm:$0xf]
    %v5369 = vld [vmem:[#allocation14 + $0x5c] sm:$0xf]
    %v5370 = vld [vmem:[#allocation14 + $0x60] sm:$0xf]
    %v5371 = vld [vmem:[#allocation14 + $0x64] sm:$0xf]
    %v5372 = vld [vmem:[#allocation14 + $0x68] sm:$0xf]
    %v5373 = vld [vmem:[#allocation14 + $0x6c] sm:$0xf]
    %v5374 = vld [vmem:[#allocation14 + $0x70] sm:$0xf]
    %v5375 = vld [vmem:[#allocation14 + $0x74] sm:$0xf]
    %v5376 = vld [vmem:[#allocation14 + $0x78] sm:$0xf]
    %v5377 = vld [vmem:[#allocation14 + $0x7c] sm:$0xf]
    %v5378 = vld [vmem:[#allocation16] sm:$0xf]
    %v5379 = vld [vmem:[#allocation16 + $0x4] sm:$0xf]
    %v5380 = vld [vmem:[#allocation16 + $0x8] sm:$0xf]
    %v5381 = vld [vmem:[#allocation16 + $0xc] sm:$0xf]
    %v5382 = vld [vmem:[#allocation16 + $0x10] sm:$0xf]
    %v5383 = vld [vmem:[#allocation16 + $0x14] sm:$0xf]
    %v5384 = vld [vmem:[#allocation16 + $0x18] sm:$0xf]
    %v5385 = vld [vmem:[#allocation16 + $0x1c] sm:$0xf]
    %v5386 = vld [vmem:[#allocation16 + $0x20] sm:$0xf]
    %v5387 = vld [vmem:[#allocation16 + $0x24] sm:$0xf]
    %v5388 = vld [vmem:[#allocation16 + $0x28] sm:$0xf]
    %v5389 = vld [vmem:[#allocation16 + $0x2c] sm:$0xf]
    %v5390 = vld [vmem:[#allocation16 + $0x30] sm:$0xf]
    %v5391 = vld [vmem:[#allocation16 + $0x34] sm:$0xf]
    %v5392 = vld [vmem:[#allocation16 + $0x38] sm:$0xf]
    %v5393 = vld [vmem:[#allocation16 + $0x3c] sm:$0xf]
    %v5394 = vld [vmem:[#allocation16 + $0x40] sm:$0xf]
    %v5395 = vld [vmem:[#allocation16 + $0x44] sm:$0xf]
    %v5396 = vld [vmem:[#allocation16 + $0x48] sm:$0xf]
    %v5397 = vld [vmem:[#allocation16 + $0x4c] sm:$0xf]
    %v5398 = vld [vmem:[#allocation16 + $0x50] sm:$0xf]
    %v5399 = vld [vmem:[#allocation16 + $0x54] sm:$0xf]
    %v5400 = vld [vmem:[#allocation16 + $0x58] sm:$0xf]
    %v5401 = vld [vmem:[#allocation16 + $0x5c] sm:$0xf]
    %v5402 = vld [vmem:[#allocation16 + $0x60] sm:$0xf]
    %v5403 = vld [vmem:[#allocation16 + $0x64] sm:$0xf]
    %v5404 = vld [vmem:[#allocation16 + $0x68] sm:$0xf]
    %v5405 = vld [vmem:[#allocation16 + $0x6c] sm:$0xf]
    %v5406 = vld [vmem:[#allocation16 + $0x70] sm:$0xf]
    %v5407 = vld [vmem:[#allocation16 + $0x74] sm:$0xf]
    %v5408 = vld [vmem:[#allocation16 + $0x78] sm:$0xf]
    %v5409 = vld [vmem:[#allocation16 + $0x7c] sm:$0xf]
    %v5442 = vunpack.c.l.b16 %v5378
    %v5443 = vunpack.c.l.b16 %v5379
    %v5444 = vunpack.c.l.b16 %v5380
    %v5445 = vunpack.c.l.b16 %v5381
    %v5446 = vunpack.c.l.b16 %v5382
    %v5447 = vunpack.c.l.b16 %v5383
    %v5448 = vunpack.c.l.b16 %v5384
    %v5449 = vunpack.c.l.b16 %v5385
    %v5450 = vunpack.c.l.b16 %v5386
    %v5451 = vunpack.c.l.b16 %v5387
    %v5452 = vunpack.c.l.b16 %v5388
    %v5453 = vunpack.c.l.b16 %v5389
    %v5454 = vunpack.c.l.b16 %v5390
    %v5455 = vunpack.c.l.b16 %v5391
    %v5456 = vunpack.c.l.b16 %v5392
    %v5457 = vunpack.c.l.b16 %v5393
    %v5458 = vunpack.c.l.b16 %v5394
    %v5459 = vunpack.c.l.b16 %v5395
    %v5460 = vunpack.c.l.b16 %v5396
    %v5461 = vunpack.c.l.b16 %v5397
    %v5462 = vunpack.c.l.b16 %v5398
    %v5463 = vunpack.c.l.b16 %v5399
    %v5464 = vunpack.c.l.b16 %v5400
    %v5465 = vunpack.c.l.b16 %v5401
    %v5466 = vunpack.c.l.b16 %v5402
    %v5467 = vunpack.c.l.b16 %v5403
    %v5468 = vunpack.c.l.b16 %v5404
    %v5469 = vunpack.c.l.b16 %v5405
    %v5470 = vunpack.c.l.b16 %v5406
    %v5471 = vunpack.c.l.b16 %v5407
    %v5472 = vunpack.c.l.b16 %v5408
    %v5473 = vunpack.c.l.b16 %v5409
    %v5474 = vpack.c.b16 %v5443, %v5442
    %v5475 = vpack.c.b16 %v5445, %v5444
    %v5476 = vpack.c.b16 %v5447, %v5446
    %v5477 = vpack.c.b16 %v5449, %v5448
    %v5478 = vpack.c.b16 %v5451, %v5450
    %v5479 = vpack.c.b16 %v5453, %v5452
    %v5480 = vpack.c.b16 %v5455, %v5454
    %v5481 = vpack.c.b16 %v5457, %v5456
    %v5482 = vpack.c.b16 %v5459, %v5458
    %v5483 = vpack.c.b16 %v5461, %v5460
    %v5484 = vpack.c.b16 %v5463, %v5462
    %v5485 = vpack.c.b16 %v5465, %v5464
    %v5486 = vpack.c.b16 %v5467, %v5466
    %v5487 = vpack.c.b16 %v5469, %v5468
    %v5488 = vpack.c.b16 %v5471, %v5470
    %v5489 = vpack.c.b16 %v5473, %v5472
    %5506 = vmatpush.bf16.msra.mxu0 %v5481
    %5507 = vmatpush.bf16.msra.mxu0 %v5480
    %5508 = vmatpush.bf16.msra.mxu0 %v5479
    %5509 = vmatpush.bf16.msra.mxu0 %v5478
    %5510 = vmatpush.bf16.msra.mxu0 %v5477
    %5511 = vmatpush.bf16.msra.mxu0 %v5476
    %5512 = vmatpush.bf16.msra.mxu0 %v5475
    %5513 = vmatpush.bf16.msra.mxu0 %v5474
    %5514 = vmatmul.bf16.gmra.mxu0 %v5344
    %v5515 = vpop.f32.mrf.mxu0
    %v5516 = vadd.f32 0.0, %v5515
    %v5517 = vpop.f32.mrf.mxu0
    %v5518 = vadd.f32 0.0, %v5517
    %5519 = vdwg.mxu0
    %5520 = vmatpush.bf16.msra.mxu0 %v5489
    %5521 = vmatpush.bf16.msra.mxu0 %v5488
    %5522 = vmatpush.bf16.msra.mxu0 %v5487
    %5523 = vmatpush.bf16.msra.mxu0 %v5486
    %5524 = vmatpush.bf16.msra.mxu0 %v5485
    %5525 = vmatpush.bf16.msra.mxu0 %v5484
    %5526 = vmatpush.bf16.msra.mxu0 %v5483
    %5527 = vmatpush.bf16.msra.mxu0 %v5482
    %5528 = vmatmul.bf16.gmra.mxu0 %v5345
    %v5529 = vpop.f32.mrf.mxu0
    %v5530 = vadd.f32 %v5516, %v5529
    %v5531 = vpop.f32.mrf.mxu0
    %v5532 = vadd.f32 %v5518, %v5531
    %5533 = vdwg.mxu0
    %v5566 = vunpack.c.l.b16 %v5346
    %v5567 = vunpack.c.l.b16 %v5347
    %v5568 = vunpack.c.l.b16 %v5348
    %v5569 = vunpack.c.l.b16 %v5349
    %v5570 = vunpack.c.l.b16 %v5350
    %v5571 = vunpack.c.l.b16 %v5351
    %v5572 = vunpack.c.l.b16 %v5352
    %v5573 = vunpack.c.l.b16 %v5353
    %v5574 = vunpack.c.l.b16 %v5354
    %v5575 = vunpack.c.l.b16 %v5355
    %v5576 = vunpack.c.l.b16 %v5356
    %v5577 = vunpack.c.l.b16 %v5357
    %v5578 = vunpack.c.l.b16 %v5358
    %v5579 = vunpack.c.l.b16 %v5359
    %v5580 = vunpack.c.l.b16 %v5360
    %v5581 = vunpack.c.l.b16 %v5361
    %v5582 = vunpack.c.l.b16 %v5362
    %v5583 = vunpack.c.l.b16 %v5363
    %v5584 = vunpack.c.l.b16 %v5364
    %v5585 = vunpack.c.l.b16 %v5365
    %v5586 = vunpack.c.l.b16 %v5366
    %v5587 = vunpack.c.l.b16 %v5367
    %v5588 = vunpack.c.l.b16 %v5368
    %v5589 = vunpack.c.l.b16 %v5369
    %v5590 = vunpack.c.l.b16 %v5370
    %v5591 = vunpack.c.l.b16 %v5371
    %v5592 = vunpack.c.l.b16 %v5372
    %v5593 = vunpack.c.l.b16 %v5373
    %v5594 = vunpack.c.l.b16 %v5374
    %v5595 = vunpack.c.l.b16 %v5375
    %v5596 = vunpack.c.l.b16 %v5376
    %v5597 = vunpack.c.l.b16 %v5377
    %v5598 = vpack.c.b16 %v5567, %v5566
    %v5599 = vpack.c.b16 %v5569, %v5568
    %v5600 = vpack.c.b16 %v5571, %v5570
    %v5601 = vpack.c.b16 %v5573, %v5572
    %v5602 = vpack.c.b16 %v5575, %v5574
    %v5603 = vpack.c.b16 %v5577, %v5576
    %v5604 = vpack.c.b16 %v5579, %v5578
    %v5605 = vpack.c.b16 %v5581, %v5580
    %v5606 = vpack.c.b16 %v5583, %v5582
    %v5607 = vpack.c.b16 %v5585, %v5584
    %v5608 = vpack.c.b16 %v5587, %v5586
    %v5609 = vpack.c.b16 %v5589, %v5588
    %v5610 = vpack.c.b16 %v5591, %v5590
    %v5611 = vpack.c.b16 %v5593, %v5592
    %v5612 = vpack.c.b16 %v5595, %v5594
    %v5613 = vpack.c.b16 %v5597, %v5596
    %5630 = vmatpush.bf16.msra.mxu0 %v5605
    %5631 = vmatpush.bf16.msra.mxu0 %v5604
    %5632 = vmatpush.bf16.msra.mxu0 %v5603
    %5633 = vmatpush.bf16.msra.mxu0 %v5602
    %5634 = vmatpush.bf16.msra.mxu0 %v5601
    %5635 = vmatpush.bf16.msra.mxu0 %v5600
    %5636 = vmatpush.bf16.msra.mxu0 %v5599
    %5637 = vmatpush.bf16.msra.mxu0 %v5598
    %5638 = vmatmul.bf16.gmra.mxu0 %v5330
    %v5639 = vpop.f32.mrf.mxu0
    %v5640 = vadd.f32 %v5530, %v5639
    %v5641 = vpop.f32.mrf.mxu0
    %v5642 = vadd.f32 %v5532, %v5641
    %5643 = vdwg.mxu0
    %5644 = vmatpush.bf16.msra.mxu0 %v5613
    %5645 = vmatpush.bf16.msra.mxu0 %v5612
    %5646 = vmatpush.bf16.msra.mxu0 %v5611
    %5647 = vmatpush.bf16.msra.mxu0 %v5610
    %5648 = vmatpush.bf16.msra.mxu0 %v5609
    %5649 = vmatpush.bf16.msra.mxu0 %v5608
    %5650 = vmatpush.bf16.msra.mxu0 %v5607
    %5651 = vmatpush.bf16.msra.mxu0 %v5606
    %5652 = vmatmul.bf16.gmra.mxu0 %v5331
    %v5653 = vpop.f32.mrf.mxu0
    %v5654 = vadd.f32 %v5640, %v5653
    %v5655 = vpop.f32.mrf.mxu0
    %v5656 = vadd.f32 %v5642, %v5655
    %5657 = vdwg.mxu0
    %v5658 = vld [vmem:[#allocation17] sm:$0x1]
    %v5660 = vperm.slane %v5658, 0
    %v5662 = vadd.f32 %v5654, %v5660
    %v5663 = vadd.f32 %v5656, %v5660
    %v5664 = vlaneseq
    %v5665 = vand.u32 %v5664, 127
    %vm5666 = vcmp.ge.s32.totalorder %v5665, 1
    %vm5667 = vcmp.lt.s32.totalorder %v5665, 18
    %vm5668 = vmand %vm5666, %vm5667
    %v5669 = vsel %vm5668, %v5662, -1e+30
    %v5670 = vsel %vm5668, %v5663, -1e+30
    %5671 = vmax.xlane.f32.xlu0 %v5669
    %v5672 = vpop.xlane.xlu0 %5671
    %5673 = vmax.xlane.f32.xlu0 %v5670
    %v5674 = vpop.xlane.xlu0 %5673
    %vm5675 = vcmp.eq.s32.totalorder %v5665, 0
    %v5676 = vsub.f32 0.0, %v5662
    %v5677 = vsub.f32 0.0, %v5663
    %v5678 = vsub.f32 %v5669, %v5672
    %v5679 = vsub.f32 %v5670, %v5674
    %v5680 = vsel %vm5675, %v5676, %v5678
    %v5681 = vsel %vm5675, %v5677, %v5679
    %v5682 = vmin.f32 %v5680, 80.0
    %v5683 = vmin.f32 %v5681, 80.0
    %v5684 = vmul.f32 %v5682, 1.442695
    %v5685 = vpow.pop %v5684
    %v5686 = vmul.f32 %v5683, 1.442695
    %v5687 = vpow.pop %v5686
    %v5688 = vsel %vm5675, 0.0, %v5685
    %v5689 = vsel %vm5675, 0.0, %v5687
    %5690 = vadd.xlane.f32.xlu0 %v5688
    %v5691 = vpop.xlane.xlu0 %5690
    %5692 = vadd.xlane.f32.xlu0 %v5689
    %v5693 = vpop.xlane.xlu0 %5692
    %v5694 = vadd.f32 %v5685, 1.0
    %v5695 = vadd.f32 %v5687, 1.0
    %v5696 = vrcp.pop %v5694
    %v5697 = vrcp.pop %v5695
    %v5698 = vrcp.pop %v5691
    %v5699 = vrcp.pop %v5693
    %v5700 = vmul.f32 %v5685, %v5698
    %v5701 = vmul.f32 %v5687, %v5699
    %v5702 = vsel %vm5675, %v5696, %v5700
    %v5703 = vsel %vm5675, %v5697, %v5701
    %5704 = vst [vmem:[#allocation19] sm:$0xff] %v5702
    %5705 = vst [vmem:[#allocation19 + $0x8] sm:$0xff] %v5703
    // Predicated region
    $region82: #{tpu_custom_call.1} parent=1 // pred_check
      _
    $region83: #{tpu_custom_call.1} parent=1 // pred_check_branch
      %5707 = sbr.rel (0) target = $region85
    $region84: #{tpu_custom_call.1} parent=1 // pred_region
      %5709 = vsyncadd [#allocation4], 0
      %s5710 = sshll.u32 [#allocation19], 4
      %s5711 = int_to_ptr.vmem [resolvable:$true] %s5710
      %s5712 = sshll.u32 %s10, 4
      %s5713 = int_to_ptr.hbm [resolvable:$true] %s5712
      %5718 = dma.vmem_to_hbm [thread:$0]  %s5711, 256, %s5713, [#allocation4], 128, 128, 8
    $region85: #{tpu_custom_call.1} parent=1 // pred_fallthru
      _
    // Predicated region
    $region86: #{tpu_custom_call.1} parent=1 // pred_check
      _
    $region87: #{tpu_custom_call.1} parent=1 // pred_check_branch
      %5720 = sbr.rel (0) target = $region89
    $region88: #{tpu_custom_call.1} parent=1 // pred_region
      %5722 = dma.done [#allocation4], 256
    $region89: #{tpu_custom_call.1} parent=1 // pred_fallthru
      _
    %5723 = vsyncpa [#allocation3], 1
    %5724 = vsyncpa [#allocation6], 1
    %5725 = vsyncpa [#allocation9], 1
    %5726 = vsyncpa [#allocation12], 1
    %5727 = vsyncpa [#allocation15], 1
    %5728 = vsyncpa [#allocation18], 1
    %5729 = vsyncpa [#allocation4], 1

</llo_original>
